<compile_context>
chip_gen: v7x
topology: tpu7x:2x2x1
jax: 0.10.0
libtpu: 0.0.40
codegen_flags: <defaults>
</compile_context>

<pallas_src>
import math

import jax
import jax.numpy as jnp
import numpy as np
from jax.experimental import pallas as pl
from jax.experimental.pallas import tpu as pltpu

# ---------------- model hyper-params (small, consistent with the module) ----
HIDDEN = 64          # hidden_dim (module default 640; must be divisible by 8)
HEAD = 8
HEAD_SIZE = HIDDEN // HEAD
BATCH = 2
NX = 8               # query / self sequence length
NY = 8               # cross (y) sequence length
LN_EPS = 1e-5
NEG_INF = -65504.0   # same fill value as the PyTorch module


# ---------------------------- in-kernel helpers -----------------------------
def _split_heads(t, col0):
    """(rows, C) -> (HEAD, rows, HEAD_SIZE); head h = t[:, col0+h*HS : col0+(h+1)*HS]."""
    return jnp.stack(
        [t[:, col0 + h * HEAD_SIZE: col0 + (h + 1) * HEAD_SIZE] for h in range(HEAD)],
        axis=0)


def _attention(q_h, k_h, v_h, bias, wm_h, bm):
    """Head-batched attention on batch-stacked sequences.
    q_h: (HEAD, Nq, HS), k_h/v_h: (HEAD, Nk, HS), bias: (Nq, Nk) additive,
    wm_h: (HEAD, HS, H), bm: (1, H).  The 1/sqrt(HS) scale is already folded
    into the Q projection weights host-side."""
    s = jnp.einsum("hqd,hkd->hqk", q_h, k_h, preferred_element_type=jnp.float32)
    s = s + bias[None, :, :]                       # one add instead of cmp+select per head
    s = s - jnp.max(s, axis=-1, keepdims=True)
    p = jnp.exp(s)
    # NOTE: approx=True would push this onto the EUP (essentially free); kept
    # exact so the numerical self-check below stays at 2e-5.
    p = p * pl.reciprocal(jnp.sum(p, axis=-1, keepdims=True), approx=False)
    ctx = jnp.einsum("hqk,hkd->hqd", p, v_h, preferred_element_type=jnp.float32)
    # merge projection folded per head: sum_h ctx_h @ Wm[h*HS:(h+1)*HS, :]
    # (replaces the per-head lane concatenate of the previous version)
    merged = jnp.einsum("hqd,hdo->hqo", ctx, wm_h, preferred_element_type=jnp.float32)
    return jnp.sum(merged, axis=0) + bm


def _layernorm(v, g, b):
    mu = jnp.mean(v, axis=-1, keepdims=True)
    var = jnp.mean((v - mu) ** 2, axis=-1, keepdims=True)
    return (v - mu) * jax.lax.rsqrt(var + LN_EPS) * g + b


# ------------------------------- Pallas kernel -------------------------------
def decoder_kernel(x_ref, y_ref, bself_ref, bcross_ref,
                   wqkv1_ref, bqkv1_ref, wm1_ref, bm1_ref,
                   wq2_ref, bq2_ref, wkv2_ref, bkv2_ref, wm2_ref, bm2_ref,
                   wf1_ref, bf1_ref, wf2_ref, bf2_ref, ln_ref,
                   o_ref):
    x = x_ref[...]                    # (B*NX, H) batch-stacked along sublanes
    y = y_ref[...]                    # (B*NY, H)

    # ---- block 1: self-attention + residual + norm1 -------------------------
    qkv = jnp.dot(x, wqkv1_ref[...], preferred_element_type=jnp.float32) + bqkv1_ref[...]
    q1 = _split_heads(qkv, 0)
    k1 = _split_heads(qkv, HIDDEN)
    v1 = _split_heads(qkv, 2 * HIDDEN)
    att1 = _attention(q1, k1, v1, bself_ref[...], wm1_ref[...], bm1_ref[...])
    x = _layernorm(x + att1, ln_ref[0], ln_ref[1])

    # ---- block 2: cross-attention (q from x, k/v from y) + norm2 ------------
    qf = jnp.dot(x, wq2_ref[...], preferred_element_type=jnp.float32) + bq2_ref[...]
    kv = jnp.dot(y, wkv2_ref[...], preferred_element_type=jnp.float32) + bkv2_ref[...]
    q2 = _split_heads(qf, 0)
    k2 = _split_heads(kv, 0)
    v2 = _split_heads(kv, HIDDEN)
    att2 = _attention(q2, k2, v2, bcross_ref[...], wm2_ref[...], bm2_ref[...])
    x = _layernorm(x + att2, ln_ref[2], ln_ref[3])

    # ---- block 3: position-wise FFN + norm3 ----------------------------------
    h = jnp.dot(x, wf1_ref[...], preferred_element_type=jnp.float32) + bf1_ref[...]
    h = jnp.maximum(h, 0.0)
    ffn = jnp.dot(h, wf2_ref[...], preferred_element_type=jnp.float32) + bf2_ref[...]
    x = _layernorm(x + ffn, ln_ref[4], ln_ref[5])

    # ---- lane-dense store: (B*NX, H) -> (NX, B*H) = (8, 128), unmasked vst ---
    out = jnp.concatenate([x[b * NX:(b + 1) * NX, :] for b in range(BATCH)], axis=-1)
    o_ref[...] = out.astype(o_ref.dtype)


# ------------------------ host-side parameter packing ------------------------
def pack_decoder_params(W_attn, B_attn, W1, b1, W2, b2, LN):
    """Rearrange per-layer weights into the kernel layout.
    W_attn: (8, H, H) = [q1,k1,v1,merge1,q2,k2,v2,merge2] stored (in, out);
    B_attn: (8, H); W1:(H,2H), b1:(1,2H), W2:(2H,H), b2:(1,H); LN:(6,H)."""
    scale = 1.0 / math.sqrt(HEAD_SIZE)
    Wq1, Wk1, Wv1, Wm1 = W_attn[0], W_attn[1], W_attn[2], W_attn[3]
    bq1, bk1, bv1, bm1 = B_attn[0], B_attn[1], B_attn[2], B_attn[3]
    Wq2, Wk2, Wv2, Wm2 = W_attn[4], W_attn[5], W_attn[6], W_attn[7]
    bq2, bk2, bv2, bm2 = B_attn[4], B_attn[5], B_attn[6], B_attn[7]

    Wqkv1 = jnp.concatenate([Wq1 * scale, Wk1, Wv1], axis=1)       # (H, 3H), scale folded
    bqkv1 = jnp.concatenate([bq1 * scale, bk1, bv1])[None, :]      # (1, 3H)
    Wm1h = Wm1.reshape(HEAD, HEAD_SIZE, HIDDEN)                    # (HEAD, HS, H)
    Wkv2 = jnp.concatenate([Wk2, Wv2], axis=1)                     # (H, 2H)
    bkv2 = jnp.concatenate([bk2, bv2])[None, :]                    # (1, 2H)
    Wm2h = Wm2.reshape(HEAD, HEAD_SIZE, HIDDEN)
    return (Wqkv1, bqkv1, Wm1h, bm1[None, :],
            Wq2 * scale, (bq2 * scale)[None, :], Wkv2, bkv2, Wm2h, bm2[None, :],
            W1, b1, W2, b2, LN)


def _block_diag_bias(B, q_len, k_len, key_mask):
    """Additive attention bias for batch-stacked sequences.
    key_mask: (B, 1, k_len) float, 1.0 == masked.  Returns (B*q_len, B*k_len)."""
    bq = jnp.repeat(jnp.arange(B), q_len)
    bk = jnp.repeat(jnp.arange(B), k_len)
    other_batch = bq[:, None] != bk[None, :]
    masked_key = (key_mask[:, 0, :].reshape(-1) > 0.5)[None, :]
    return jnp.where(other_batch | masked_key, NEG_INF, 0.0).astype(jnp.float32)


# --------------------------------- wrapper -----------------------------------
def decoder_forward(x, y, x_mask, y_mask, kparams):
    B, Nx, H = x.shape
    Ny = y.shape[1]
    assert (B, Nx, Ny, H) == (BATCH, NX, NY, HIDDEN)

    x2 = x.reshape(B * Nx, H)                     # batch stacked along sublanes
    y2 = y.reshape(B * Ny, H)
    bias_self = _block_diag_bias(B, Nx, Nx, x_mask)
    bias_cross = _block_diag_bias(B, Nx, Ny, y_mask)

    inputs = (x2, y2, bias_self, bias_cross) + tuple(kparams)

    def full_spec(a):
        n = a.ndim
        return pl.BlockSpec(a.shape, lambda i: (0,) * n)

    grid_spec = pltpu.PrefetchScalarGridSpec(
        num_scalar_prefetch=0,
        grid=(1,),                                # whole problem in one step
        in_specs=[full_spec(a) for a in inputs],
        out_specs=pl.BlockSpec((Nx, B * H), lambda i: (0, 0)),
    )

    # advisory cost estimate so XLA can schedule around the custom call
    flops = 2 * (
        (B * Nx) * H * (3 * H)                        # fused QKV (self)
        + 2 * HEAD * (B * Nx) * (B * Nx) * HEAD_SIZE  # scores + PV (self)
        + (B * Nx) * H * H                            # merge (self)
        + (B * Nx) * H * H                            # Q proj (cross)
        + (B * Ny) * H * (2 * H)                      # KV proj (cross)
        + 2 * HEAD * (B * Nx) * (B * Ny) * HEAD_SIZE  # scores + PV (cross)
        + (B * Nx) * H * H                            # merge (cross)
        + 2 * (B * Nx) * H * (2 * H)                  # FFN
    )
    transcendentals = HEAD * (B * Nx) * (B * Nx + B * Ny)
    bytes_accessed = sum(int(a.size) * a.dtype.itemsize for a in inputs) + Nx * B * H * 4

    out = pl.pallas_call(
        decoder_kernel,
        out_shape=jax.ShapeDtypeStruct((Nx, B * H), jnp.float32),
        grid_spec=grid_spec,
        compiler_params=pltpu.CompilerParams(
            dimension_semantics=("arbitrary",),
            vmem_limit_bytes=32 * 1024 * 1024),
        cost_estimate=pl.CostEstimate(flops=int(flops),
                                      transcendentals=int(transcendentals),
                                      bytes_accessed=int(bytes_accessed)),
    )(*inputs)

    # (NX, B*H) lane-dense slab -> (B, NX, H)
    return out.reshape(Nx, B, H).transpose(1, 0, 2)


# ---------------------- pure-JAX reference (for checking) --------------------
def _ref_mha(q_in, kv_in, Wq, bq, Wk, bk, Wv, bv, Wm, bm, mask):
    B = q_in.shape[0]
    q = q_in @ Wq + bq
    k = kv_in @ Wk + bk
    v = kv_in @ Wv + bv

    def split(t):
        return t.reshape(B, -1, HEAD, HEAD_SIZE).transpose(0, 2, 1, 3)

    q, k, v = split(q), split(k), split(v)
    s = jnp.einsum("bhqd,bhkd->bhqk", q, k) / math.sqrt(HEAD_SIZE)
    s = jnp.where(mask[:, None, :, :] > 0.5, NEG_INF, s)
    p = jax.nn.softmax(s, axis=-1)
    o = jnp.einsum("bhqk,bhkd->bhqd", p, v)
    o = o.transpose(0, 2, 1, 3).reshape(B, -1, HIDDEN)
    return o @ Wm + bm


def _ref_ln(x, g, b):
    mu = jnp.mean(x, axis=-1, keepdims=True)
    var = jnp.mean((x - mu) ** 2, axis=-1, keepdims=True)
    return (x - mu) / jnp.sqrt(var + LN_EPS) * g + b


def decoder_reference(x, y, x_mask, y_mask, raw_params):
    W_attn, B_attn, W1, b1, W2, b2, LN = raw_params
    a1 = _ref_mha(x, x, W_attn[0], B_attn[0], W_attn[1], B_attn[1],
                  W_attn[2], B_attn[2], W_attn[3], B_attn[3], x_mask)
    x = _ref_ln(x + a1, LN[0], LN[1])
    a2 = _ref_mha(x, y, W_attn[4], B_attn[4], W_attn[5], B_attn[5],
                  W_attn[6], B_attn[6], W_attn[7], B_attn[7], y_mask)
    x = _ref_ln(x + a2, LN[2], LN[3])
    ffn = jnp.maximum(x @ W1 + b1[0], 0.0) @ W2 + b2[0]
    return _ref_ln(x + ffn, LN[4], LN[5])


# ----------------------------------- main ------------------------------------
if __name__ == "__main__":
    key = jax.random.PRNGKey(0)
    keys = jax.random.split(key, 10)

    x = jax.random.normal(keys[0], (BATCH, NX, HIDDEN), jnp.float32)
    y = jax.random.normal(keys[1], (BATCH, NY, HIDDEN), jnp.float32)
    # masks: mark the last position of each sequence as masked (1.0 == masked)
    x_mask = jnp.zeros((BATCH, 1, NX), jnp.float32).at[:, :, -1].set(1.0)
    y_mask = jnp.zeros((BATCH, 1, NY), jnp.float32).at[:, :, -1].set(1.0)

    # deterministic parameter init (weights stored as (in_dim, out_dim))
    # order of the 8 (H,H) attention weights: [q1, k1, v1, merge1, q2, k2, v2, merge2]
    W_attn = 0.05 * jax.random.normal(keys[2], (8, HIDDEN, HIDDEN), jnp.float32)
    B_attn = 0.01 * jax.random.normal(keys[3], (8, HIDDEN), jnp.float32)
    W1 = 0.05 * jax.random.normal(keys[4], (HIDDEN, 2 * HIDDEN), jnp.float32)
    b1 = 0.01 * jax.random.normal(keys[5], (1, 2 * HIDDEN), jnp.float32)
    W2 = 0.05 * jax.random.normal(keys[6], (2 * HIDDEN, HIDDEN), jnp.float32)
    b2 = 0.01 * jax.random.normal(keys[7], (1, HIDDEN), jnp.float32)
    # layernorm [g1, b1, g2, b2, g3, b3]: gammas=1, betas=0 (PyTorch default)
    LN = jnp.stack([jnp.ones(HIDDEN), jnp.zeros(HIDDEN),
                    jnp.ones(HIDDEN), jnp.zeros(HIDDEN),
                    jnp.ones(HIDDEN), jnp.zeros(HIDDEN)]).astype(jnp.float32)

    raw_params = (W_attn, B_attn, W1, b1, W2, b2, LN)
    kparams = pack_decoder_params(*raw_params)

    out = jax.block_until_ready(decoder_forward(x, y, x_mask, y_mask, kparams))
    ref = jax.block_until_ready(decoder_reference(x, y, x_mask, y_mask, raw_params))
    np.testing.assert_allclose(np.asarray(out), np.asarray(ref), atol=2e-5, rtol=2e-5)

    print("KERNEL_OK")
</pallas_src>

<mosaic_0001>
module attributes {stable_mosaic.version = 11 : i64} {
  func.func @decoder_kernel(%arg0: i32, %arg1: memref<16x64xf32, #tpu.memory_space<vmem>>, %arg2: memref<16x64xf32, #tpu.memory_space<vmem>>, %arg3: memref<16x16xf32, #tpu.memory_space<vmem>>, %arg4: memref<16x16xf32, #tpu.memory_space<vmem>>, %arg5: memref<64x192xf32, #tpu.memory_space<vmem>>, %arg6: memref<1x192xf32, #tpu.memory_space<vmem>>, %arg7: memref<8x8x64xf32, #tpu.memory_space<vmem>>, %arg8: memref<1x64xf32, #tpu.memory_space<vmem>>, %arg9: memref<64x64xf32, #tpu.memory_space<vmem>>, %arg10: memref<1x64xf32, #tpu.memory_space<vmem>>, %arg11: memref<64x128xf32, #tpu.memory_space<vmem>>, %arg12: memref<1x128xf32, #tpu.memory_space<vmem>>, %arg13: memref<8x8x64xf32, #tpu.memory_space<vmem>>, %arg14: memref<1x64xf32, #tpu.memory_space<vmem>>, %arg15: memref<64x128xf32, #tpu.memory_space<vmem>>, %arg16: memref<1x128xf32, #tpu.memory_space<vmem>>, %arg17: memref<128x64xf32, #tpu.memory_space<vmem>>, %arg18: memref<1x64xf32, #tpu.memory_space<vmem>>, %arg19: memref<6x64xf32, #tpu.memory_space<vmem>>, %arg20: memref<8x128xf32, #tpu.memory_space<vmem>>) attributes {dimension_semantics = [#tpu.dimension_semantics<arbitrary>], iteration_bounds = array<i64: 1>, scalar_prefetch = 0 : i64, scratch_operands = 0 : i64, tpu.core_type = #tpu.core_type<tc>, window_params = [{pipeline_mode = #tpu.pipeline_mode<synchronous>, transform_indices = @transform_0, window_bounds = array<i64: 16, 64>}, {pipeline_mode = #tpu.pipeline_mode<synchronous>, transform_indices = @transform_1, window_bounds = array<i64: 16, 64>}, {pipeline_mode = #tpu.pipeline_mode<synchronous>, transform_indices = @transform_2, window_bounds = array<i64: 16, 16>}, {pipeline_mode = #tpu.pipeline_mode<synchronous>, transform_indices = @transform_3, window_bounds = array<i64: 16, 16>}, {pipeline_mode = #tpu.pipeline_mode<synchronous>, transform_indices = @transform_4, window_bounds = array<i64: 64, 192>}, {pipeline_mode = #tpu.pipeline_mode<synchronous>, transform_indices = @transform_5, window_bounds = array<i64: 1, 192>}, {pipeline_mode = #tpu.pipeline_mode<synchronous>, transform_indices = @transform_6, window_bounds = array<i64: 8, 8, 64>}, {pipeline_mode = #tpu.pipeline_mode<synchronous>, transform_indices = @transform_7, window_bounds = array<i64: 1, 64>}, {pipeline_mode = #tpu.pipeline_mode<synchronous>, transform_indices = @transform_8, window_bounds = array<i64: 64, 64>}, {pipeline_mode = #tpu.pipeline_mode<synchronous>, transform_indices = @transform_9, window_bounds = array<i64: 1, 64>}, {pipeline_mode = #tpu.pipeline_mode<synchronous>, transform_indices = @transform_10, window_bounds = array<i64: 64, 128>}, {pipeline_mode = #tpu.pipeline_mode<synchronous>, transform_indices = @transform_11, window_bounds = array<i64: 1, 128>}, {pipeline_mode = #tpu.pipeline_mode<synchronous>, transform_indices = @transform_12, window_bounds = array<i64: 8, 8, 64>}, {pipeline_mode = #tpu.pipeline_mode<synchronous>, transform_indices = @transform_13, window_bounds = array<i64: 1, 64>}, {pipeline_mode = #tpu.pipeline_mode<synchronous>, transform_indices = @transform_14, window_bounds = array<i64: 64, 128>}, {pipeline_mode = #tpu.pipeline_mode<synchronous>, transform_indices = @transform_15, window_bounds = array<i64: 1, 128>}, {pipeline_mode = #tpu.pipeline_mode<synchronous>, transform_indices = @transform_16, window_bounds = array<i64: 128, 64>}, {pipeline_mode = #tpu.pipeline_mode<synchronous>, transform_indices = @transform_17, window_bounds = array<i64: 1, 64>}, {pipeline_mode = #tpu.pipeline_mode<synchronous>, transform_indices = @transform_18, window_bounds = array<i64: 6, 64>}, {pipeline_mode = #tpu.pipeline_mode<synchronous>, transform_indices = @transform_19, window_bounds = array<i64: 8, 128>}]} {
    %c0 = arith.constant 0 : index
    %c0_0 = arith.constant 0 : index
    %0 = vector.load %arg1[%c0, %c0_0] : memref<16x64xf32, #tpu.memory_space<vmem>>, vector<16x64xf32>
    %c0_1 = arith.constant 0 : index
    %c0_2 = arith.constant 0 : index
    %1 = vector.load %arg2[%c0_1, %c0_2] : memref<16x64xf32, #tpu.memory_space<vmem>>, vector<16x64xf32>
    %c0_3 = arith.constant 0 : index
    %c0_4 = arith.constant 0 : index
    %2 = vector.load %arg5[%c0_3, %c0_4] : memref<64x192xf32, #tpu.memory_space<vmem>>, vector<64x192xf32>
    %cst = arith.constant dense<0.000000e+00> : vector<16x192xf32>
    %3 = tpu.matmul %0, %2, %cst {dimension_numbers = #tpu.dot_dimension_numbers<[1], [0], [0], [1], [0, 0, 1, 1], [], []>} : vector<16x64xf32>, vector<64x192xf32>, vector<16x192xf32> -> vector<16x192xf32>
    %c0_5 = arith.constant 0 : index
    %c0_6 = arith.constant 0 : index
    %4 = vector.load %arg6[%c0_5, %c0_6] : memref<1x192xf32, #tpu.memory_space<vmem>>, vector<1x192xf32>
    %5 = vector.broadcast %4 : vector<1x192xf32> to vector<16x192xf32>
    %6 = arith.addf %3, %5 : vector<16x192xf32>
    %7 = vector.extract_strided_slice %6 {offsets = [0, 0], sizes = [16, 8], strides = [1, 1]} : vector<16x192xf32> to vector<16x8xf32>
    %8 = vector.extract_strided_slice %6 {offsets = [0, 8], sizes = [16, 8], strides = [1, 1]} : vector<16x192xf32> to vector<16x8xf32>
    %9 = vector.extract_strided_slice %6 {offsets = [0, 16], sizes = [16, 8], strides = [1, 1]} : vector<16x192xf32> to vector<16x8xf32>
    %10 = vector.extract_strided_slice %6 {offsets = [0, 24], sizes = [16, 8], strides = [1, 1]} : vector<16x192xf32> to vector<16x8xf32>
    %11 = vector.extract_strided_slice %6 {offsets = [0, 32], sizes = [16, 8], strides = [1, 1]} : vector<16x192xf32> to vector<16x8xf32>
    %12 = vector.extract_strided_slice %6 {offsets = [0, 40], sizes = [16, 8], strides = [1, 1]} : vector<16x192xf32> to vector<16x8xf32>
    %13 = vector.extract_strided_slice %6 {offsets = [0, 48], sizes = [16, 8], strides = [1, 1]} : vector<16x192xf32> to vector<16x8xf32>
    %14 = vector.extract_strided_slice %6 {offsets = [0, 56], sizes = [16, 8], strides = [1, 1]} : vector<16x192xf32> to vector<16x8xf32>
    %15 = vector.shape_cast %7 : vector<16x8xf32> to vector<1x16x8xf32>
    %16 = vector.shape_cast %8 : vector<16x8xf32> to vector<1x16x8xf32>
    %17 = vector.shape_cast %9 : vector<16x8xf32> to vector<1x16x8xf32>
    %18 = vector.shape_cast %10 : vector<16x8xf32> to vector<1x16x8xf32>
    %19 = vector.shape_cast %11 : vector<16x8xf32> to vector<1x16x8xf32>
    %20 = vector.shape_cast %12 : vector<16x8xf32> to vector<1x16x8xf32>
    %21 = vector.shape_cast %13 : vector<16x8xf32> to vector<1x16x8xf32>
    %22 = vector.shape_cast %14 : vector<16x8xf32> to vector<1x16x8xf32>
    %23 = tpu.concatenate %15, %16, %17, %18, %19, %20, %21, %22 in 0 : vector<1x16x8xf32>, vector<1x16x8xf32>, vector<1x16x8xf32>, vector<1x16x8xf32>, vector<1x16x8xf32>, vector<1x16x8xf32>, vector<1x16x8xf32>, vector<1x16x8xf32> -> vector<8x16x8xf32>
    %24 = vector.extract_strided_slice %6 {offsets = [0, 64], sizes = [16, 8], strides = [1, 1]} : vector<16x192xf32> to vector<16x8xf32>
    %25 = vector.extract_strided_slice %6 {offsets = [0, 72], sizes = [16, 8], strides = [1, 1]} : vector<16x192xf32> to vector<16x8xf32>
    %26 = vector.extract_strided_slice %6 {offsets = [0, 80], sizes = [16, 8], strides = [1, 1]} : vector<16x192xf32> to vector<16x8xf32>
    %27 = vector.extract_strided_slice %6 {offsets = [0, 88], sizes = [16, 8], strides = [1, 1]} : vector<16x192xf32> to vector<16x8xf32>
    %28 = vector.extract_strided_slice %6 {offsets = [0, 96], sizes = [16, 8], strides = [1, 1]} : vector<16x192xf32> to vector<16x8xf32>
    %29 = vector.extract_strided_slice %6 {offsets = [0, 104], sizes = [16, 8], strides = [1, 1]} : vector<16x192xf32> to vector<16x8xf32>
    %30 = vector.extract_strided_slice %6 {offsets = [0, 112], sizes = [16, 8], strides = [1, 1]} : vector<16x192xf32> to vector<16x8xf32>
    %31 = vector.extract_strided_slice %6 {offsets = [0, 120], sizes = [16, 8], strides = [1, 1]} : vector<16x192xf32> to vector<16x8xf32>
    %32 = vector.shape_cast %24 : vector<16x8xf32> to vector<1x16x8xf32>
    %33 = vector.shape_cast %25 : vector<16x8xf32> to vector<1x16x8xf32>
    %34 = vector.shape_cast %26 : vector<16x8xf32> to vector<1x16x8xf32>
    %35 = vector.shape_cast %27 : vector<16x8xf32> to vector<1x16x8xf32>
    %36 = vector.shape_cast %28 : vector<16x8xf32> to vector<1x16x8xf32>
    %37 = vector.shape_cast %29 : vector<16x8xf32> to vector<1x16x8xf32>
    %38 = vector.shape_cast %30 : vector<16x8xf32> to vector<1x16x8xf32>
    %39 = vector.shape_cast %31 : vector<16x8xf32> to vector<1x16x8xf32>
    %40 = tpu.concatenate %32, %33, %34, %35, %36, %37, %38, %39 in 0 : vector<1x16x8xf32>, vector<1x16x8xf32>, vector<1x16x8xf32>, vector<1x16x8xf32>, vector<1x16x8xf32>, vector<1x16x8xf32>, vector<1x16x8xf32>, vector<1x16x8xf32> -> vector<8x16x8xf32>
    %41 = vector.extract_strided_slice %6 {offsets = [0, 128], sizes = [16, 8], strides = [1, 1]} : vector<16x192xf32> to vector<16x8xf32>
    %42 = vector.extract_strided_slice %6 {offsets = [0, 136], sizes = [16, 8], strides = [1, 1]} : vector<16x192xf32> to vector<16x8xf32>
    %43 = vector.extract_strided_slice %6 {offsets = [0, 144], sizes = [16, 8], strides = [1, 1]} : vector<16x192xf32> to vector<16x8xf32>
    %44 = vector.extract_strided_slice %6 {offsets = [0, 152], sizes = [16, 8], strides = [1, 1]} : vector<16x192xf32> to vector<16x8xf32>
    %45 = vector.extract_strided_slice %6 {offsets = [0, 160], sizes = [16, 8], strides = [1, 1]} : vector<16x192xf32> to vector<16x8xf32>
    %46 = vector.extract_strided_slice %6 {offsets = [0, 168], sizes = [16, 8], strides = [1, 1]} : vector<16x192xf32> to vector<16x8xf32>
    %47 = vector.extract_strided_slice %6 {offsets = [0, 176], sizes = [16, 8], strides = [1, 1]} : vector<16x192xf32> to vector<16x8xf32>
    %48 = vector.extract_strided_slice %6 {offsets = [0, 184], sizes = [16, 8], strides = [1, 1]} : vector<16x192xf32> to vector<16x8xf32>
    %49 = vector.shape_cast %41 : vector<16x8xf32> to vector<1x16x8xf32>
    %50 = vector.shape_cast %42 : vector<16x8xf32> to vector<1x16x8xf32>
    %51 = vector.shape_cast %43 : vector<16x8xf32> to vector<1x16x8xf32>
    %52 = vector.shape_cast %44 : vector<16x8xf32> to vector<1x16x8xf32>
    %53 = vector.shape_cast %45 : vector<16x8xf32> to vector<1x16x8xf32>
    %54 = vector.shape_cast %46 : vector<16x8xf32> to vector<1x16x8xf32>
    %55 = vector.shape_cast %47 : vector<16x8xf32> to vector<1x16x8xf32>
    %56 = vector.shape_cast %48 : vector<16x8xf32> to vector<1x16x8xf32>
    %57 = tpu.concatenate %49, %50, %51, %52, %53, %54, %55, %56 in 0 : vector<1x16x8xf32>, vector<1x16x8xf32>, vector<1x16x8xf32>, vector<1x16x8xf32>, vector<1x16x8xf32>, vector<1x16x8xf32>, vector<1x16x8xf32>, vector<1x16x8xf32> -> vector<8x16x8xf32>
    %c0_7 = arith.constant 0 : index
    %c0_8 = arith.constant 0 : index
    %58 = vector.load %arg3[%c0_7, %c0_8] : memref<16x16xf32, #tpu.memory_space<vmem>>, vector<16x16xf32>
    %c0_9 = arith.constant 0 : index
    %c0_10 = arith.constant 0 : index
    %c0_11 = arith.constant 0 : index
    %59 = vector.load %arg7[%c0_9, %c0_10, %c0_11] : memref<8x8x64xf32, #tpu.memory_space<vmem>>, vector<8x8x64xf32>
    %c0_12 = arith.constant 0 : index
    %c0_13 = arith.constant 0 : index
    %60 = vector.load %arg8[%c0_12, %c0_13] : memref<1x64xf32, #tpu.memory_space<vmem>>, vector<1x64xf32>
    "tpu.trace_start"() <{level = 10 : i32, message = "hqd,hkd->hqk"}> : () -> ()
    %cst_14 = arith.constant dense<0.000000e+00> : vector<8x16x16xf32>
    %61 = tpu.matmul %23, %40, %cst_14 {dimension_numbers = #tpu.dot_dimension_numbers<[2], [2], [1], [1], [0, 0, 0, 1, 1, 1], [0], [0]>} : vector<8x16x8xf32>, vector<8x16x8xf32>, vector<8x16x16xf32> -> vector<8x16x16xf32>
    "tpu.trace_stop"() : () -> ()
    %62 = vector.shape_cast %58 : vector<16x16xf32> to vector<1x16x16xf32>
    %63 = vector.broadcast %62 : vector<1x16x16xf32> to vector<8x16x16xf32>
    %64 = arith.addf %61, %63 : vector<8x16x16xf32>
    %cst_15 = arith.constant dense<0xFF800000> : vector<8x16xf32>
    %65 = vector.multi_reduction <maximumf>, %64, %cst_15 [2] : vector<8x16x16xf32> to vector<8x16xf32>
    %66 = vector.shape_cast %65 : vector<8x16xf32> to vector<8x16x1xf32>
    %67 = vector.broadcast %66 : vector<8x16x1xf32> to vector<8x16x16xf32>
    %68 = arith.subf %64, %67 : vector<8x16x16xf32>
    %69 = math.exp %68 : vector<8x16x16xf32>
    %cst_16 = arith.constant dense<0.000000e+00> : vector<8x16xf32>
    %70 = vector.multi_reduction <add>, %69, %cst_16 [2] : vector<8x16x16xf32> to vector<8x16xf32>
    %71 = vector.shape_cast %70 : vector<8x16xf32> to vector<8x16x1xf32>
    %72 = tpu.reciprocal %71 : vector<8x16x1xf32> -> vector<8x16x1xf32>
    %73 = vector.broadcast %72 : vector<8x16x1xf32> to vector<8x16x16xf32>
    %74 = arith.mulf %69, %73 : vector<8x16x16xf32>
    "tpu.trace_start"() <{level = 10 : i32, message = "hqk,hkd->hqd"}> : () -> ()
    %cst_17 = arith.constant dense<0.000000e+00> : vector<8x16x8xf32>
    %75 = tpu.matmul %74, %57, %cst_17 {dimension_numbers = #tpu.dot_dimension_numbers<[2], [1], [1], [2], [0, 0, 0, 1, 1, 2], [0], [0]>} : vector<8x16x16xf32>, vector<8x16x8xf32>, vector<8x16x8xf32> -> vector<8x16x8xf32>
    "tpu.trace_stop"() : () -> ()
    "tpu.trace_start"() <{level = 10 : i32, message = "hqd,hdo->hqo"}> : () -> ()
    %cst_18 = arith.constant dense<0.000000e+00> : vector<8x16x64xf32>
    %76 = tpu.matmul %75, %59, %cst_18 {dimension_numbers = #tpu.dot_dimension_numbers<[2], [1], [1], [2], [0, 0, 0, 1, 1, 2], [0], [0]>} : vector<8x16x8xf32>, vector<8x8x64xf32>, vector<8x16x64xf32> -> vector<8x16x64xf32>
    "tpu.trace_stop"() : () -> ()
    %cst_19 = arith.constant dense<0.000000e+00> : vector<16x64xf32>
    %77 = vector.multi_reduction <add>, %76, %cst_19 [0] : vector<8x16x64xf32> to vector<16x64xf32>
    %78 = vector.broadcast %60 : vector<1x64xf32> to vector<16x64xf32>
    %79 = arith.addf %77, %78 : vector<16x64xf32>
    %80 = arith.addf %0, %79 : vector<16x64xf32>
    %c0_20 = arith.constant 0 : index
    %c0_21 = arith.constant 0 : index
    %81 = vector.load %arg19[%c0_20, %c0_21] : memref<6x64xf32, #tpu.memory_space<vmem>>, vector<1x64xf32>
    %82 = vector.shape_cast %81 : vector<1x64xf32> to vector<64xf32>
    %c1 = arith.constant 1 : index
    %c0_22 = arith.constant 0 : index
    %83 = vector.load %arg19[%c1, %c0_22] : memref<6x64xf32, #tpu.memory_space<vmem>>, vector<1x64xf32>
    %84 = vector.shape_cast %83 : vector<1x64xf32> to vector<64xf32>
    %cst_23 = arith.constant dense<0.000000e+00> : vector<16xf32>
    %85 = vector.multi_reduction <add>, %80, %cst_23 [1] : vector<16x64xf32> to vector<16xf32>
    %86 = vector.shape_cast %85 : vector<16xf32> to vector<16x1xf32>
    %cst_24 = arith.constant 6.400000e+01 : f32
    %87 = vector.broadcast %cst_24 : f32 to vector<16x1xf32>
    %88 = arith.divf %86, %87 : vector<16x1xf32>
    %89 = vector.broadcast %88 : vector<16x1xf32> to vector<16x64xf32>
    %90 = arith.subf %80, %89 : vector<16x64xf32>
    %91 = arith.mulf %90, %90 : vector<16x64xf32>
    %cst_25 = arith.constant dense<0.000000e+00> : vector<16xf32>
    %92 = vector.multi_reduction <add>, %91, %cst_25 [1] : vector<16x64xf32> to vector<16xf32>
    %93 = vector.shape_cast %92 : vector<16xf32> to vector<16x1xf32>
    %cst_26 = arith.constant 6.400000e+01 : f32
    %94 = vector.broadcast %cst_26 : f32 to vector<16x1xf32>
    %95 = arith.divf %93, %94 : vector<16x1xf32>
    %96 = vector.broadcast %88 : vector<16x1xf32> to vector<16x64xf32>
    %97 = arith.subf %80, %96 : vector<16x64xf32>
    %cst_27 = arith.constant 9.99999974E-6 : f32
    %98 = vector.broadcast %cst_27 : f32 to vector<16x1xf32>
    %99 = arith.addf %95, %98 : vector<16x1xf32>
    %100 = math.rsqrt %99 : vector<16x1xf32>
    %101 = vector.broadcast %100 : vector<16x1xf32> to vector<16x64xf32>
    %102 = arith.mulf %97, %101 : vector<16x64xf32>
    %103 = vector.shape_cast %82 : vector<64xf32> to vector<1x64xf32>
    %104 = vector.broadcast %103 : vector<1x64xf32> to vector<16x64xf32>
    %105 = arith.mulf %102, %104 : vector<16x64xf32>
    %106 = vector.shape_cast %84 : vector<64xf32> to vector<1x64xf32>
    %107 = vector.broadcast %106 : vector<1x64xf32> to vector<16x64xf32>
    %108 = arith.addf %105, %107 : vector<16x64xf32>
    %c0_28 = arith.constant 0 : index
    %c0_29 = arith.constant 0 : index
    %109 = vector.load %arg9[%c0_28, %c0_29] : memref<64x64xf32, #tpu.memory_space<vmem>>, vector<64x64xf32>
    %cst_30 = arith.constant dense<0.000000e+00> : vector<16x64xf32>
    %110 = tpu.matmul %108, %109, %cst_30 {dimension_numbers = #tpu.dot_dimension_numbers<[1], [0], [0], [1], [0, 0, 1, 1], [], []>} : vector<16x64xf32>, vector<64x64xf32>, vector<16x64xf32> -> vector<16x64xf32>
    %c0_31 = arith.constant 0 : index
    %c0_32 = arith.constant 0 : index
    %111 = vector.load %arg10[%c0_31, %c0_32] : memref<1x64xf32, #tpu.memory_space<vmem>>, vector<1x64xf32>
    %112 = vector.broadcast %111 : vector<1x64xf32> to vector<16x64xf32>
    %113 = arith.addf %110, %112 : vector<16x64xf32>
    %c0_33 = arith.constant 0 : index
    %c0_34 = arith.constant 0 : index
    %114 = vector.load %arg11[%c0_33, %c0_34] : memref<64x128xf32, #tpu.memory_space<vmem>>, vector<64x128xf32>
    %cst_35 = arith.constant dense<0.000000e+00> : vector<16x128xf32>
    %115 = tpu.matmul %1, %114, %cst_35 {dimension_numbers = #tpu.dot_dimension_numbers<[1], [0], [0], [1], [0, 0, 1, 1], [], []>} : vector<16x64xf32>, vector<64x128xf32>, vector<16x128xf32> -> vector<16x128xf32>
    %c0_36 = arith.constant 0 : index
    %c0_37 = arith.constant 0 : index
    %116 = vector.load %arg12[%c0_36, %c0_37] : memref<1x128xf32, #tpu.memory_space<vmem>>, vector<1x128xf32>
    %117 = vector.broadcast %116 : vector<1x128xf32> to vector<16x128xf32>
    %118 = arith.addf %115, %117 : vector<16x128xf32>
    %119 = vector.extract_strided_slice %113 {offsets = [0, 0], sizes = [16, 8], strides = [1, 1]} : vector<16x64xf32> to vector<16x8xf32>
    %120 = vector.extract_strided_slice %113 {offsets = [0, 8], sizes = [16, 8], strides = [1, 1]} : vector<16x64xf32> to vector<16x8xf32>
    %121 = vector.extract_strided_slice %113 {offsets = [0, 16], sizes = [16, 8], strides = [1, 1]} : vector<16x64xf32> to vector<16x8xf32>
    %122 = vector.extract_strided_slice %113 {offsets = [0, 24], sizes = [16, 8], strides = [1, 1]} : vector<16x64xf32> to vector<16x8xf32>
    %123 = vector.extract_strided_slice %113 {offsets = [0, 32], sizes = [16, 8], strides = [1, 1]} : vector<16x64xf32> to vector<16x8xf32>
    %124 = vector.extract_strided_slice %113 {offsets = [0, 40], sizes = [16, 8], strides = [1, 1]} : vector<16x64xf32> to vector<16x8xf32>
    %125 = vector.extract_strided_slice %113 {offsets = [0, 48], sizes = [16, 8], strides = [1, 1]} : vector<16x64xf32> to vector<16x8xf32>
    %126 = vector.extract_strided_slice %113 {offsets = [0, 56], sizes = [16, 8], strides = [1, 1]} : vector<16x64xf32> to vector<16x8xf32>
    %127 = vector.shape_cast %119 : vector<16x8xf32> to vector<1x16x8xf32>
    %128 = vector.shape_cast %120 : vector<16x8xf32> to vector<1x16x8xf32>
    %129 = vector.shape_cast %121 : vector<16x8xf32> to vector<1x16x8xf32>
    %130 = vector.shape_cast %122 : vector<16x8xf32> to vector<1x16x8xf32>
    %131 = vector.shape_cast %123 : vector<16x8xf32> to vector<1x16x8xf32>
    %132 = vector.shape_cast %124 : vector<16x8xf32> to vector<1x16x8xf32>
    %133 = vector.shape_cast %125 : vector<16x8xf32> to vector<1x16x8xf32>
    %134 = vector.shape_cast %126 : vector<16x8xf32> to vector<1x16x8xf32>
    %135 = tpu.concatenate %127, %128, %129, %130, %131, %132, %133, %134 in 0 : vector<1x16x8xf32>, vector<1x16x8xf32>, vector<1x16x8xf32>, vector<1x16x8xf32>, vector<1x16x8xf32>, vector<1x16x8xf32>, vector<1x16x8xf32>, vector<1x16x8xf32> -> vector<8x16x8xf32>
    %136 = vector.extract_strided_slice %118 {offsets = [0, 0], sizes = [16, 8], strides = [1, 1]} : vector<16x128xf32> to vector<16x8xf32>
    %137 = vector.extract_strided_slice %118 {offsets = [0, 8], sizes = [16, 8], strides = [1, 1]} : vector<16x128xf32> to vector<16x8xf32>
    %138 = vector.extract_strided_slice %118 {offsets = [0, 16], sizes = [16, 8], strides = [1, 1]} : vector<16x128xf32> to vector<16x8xf32>
    %139 = vector.extract_strided_slice %118 {offsets = [0, 24], sizes = [16, 8], strides = [1, 1]} : vector<16x128xf32> to vector<16x8xf32>
    %140 = vector.extract_strided_slice %118 {offsets = [0, 32], sizes = [16, 8], strides = [1, 1]} : vector<16x128xf32> to vector<16x8xf32>
    %141 = vector.extract_strided_slice %118 {offsets = [0, 40], sizes = [16, 8], strides = [1, 1]} : vector<16x128xf32> to vector<16x8xf32>
    %142 = vector.extract_strided_slice %118 {offsets = [0, 48], sizes = [16, 8], strides = [1, 1]} : vector<16x128xf32> to vector<16x8xf32>
    %143 = vector.extract_strided_slice %118 {offsets = [0, 56], sizes = [16, 8], strides = [1, 1]} : vector<16x128xf32> to vector<16x8xf32>
    %144 = vector.shape_cast %136 : vector<16x8xf32> to vector<1x16x8xf32>
    %145 = vector.shape_cast %137 : vector<16x8xf32> to vector<1x16x8xf32>
    %146 = vector.shape_cast %138 : vector<16x8xf32> to vector<1x16x8xf32>
    %147 = vector.shape_cast %139 : vector<16x8xf32> to vector<1x16x8xf32>
    %148 = vector.shape_cast %140 : vector<16x8xf32> to vector<1x16x8xf32>
    %149 = vector.shape_cast %141 : vector<16x8xf32> to vector<1x16x8xf32>
    %150 = vector.shape_cast %142 : vector<16x8xf32> to vector<1x16x8xf32>
    %151 = vector.shape_cast %143 : vector<16x8xf32> to vector<1x16x8xf32>
    %152 = tpu.concatenate %144, %145, %146, %147, %148, %149, %150, %151 in 0 : vector<1x16x8xf32>, vector<1x16x8xf32>, vector<1x16x8xf32>, vector<1x16x8xf32>, vector<1x16x8xf32>, vector<1x16x8xf32>, vector<1x16x8xf32>, vector<1x16x8xf32> -> vector<8x16x8xf32>
    %153 = vector.extract_strided_slice %118 {offsets = [0, 64], sizes = [16, 8], strides = [1, 1]} : vector<16x128xf32> to vector<16x8xf32>
    %154 = vector.extract_strided_slice %118 {offsets = [0, 72], sizes = [16, 8], strides = [1, 1]} : vector<16x128xf32> to vector<16x8xf32>
    %155 = vector.extract_strided_slice %118 {offsets = [0, 80], sizes = [16, 8], strides = [1, 1]} : vector<16x128xf32> to vector<16x8xf32>
    %156 = vector.extract_strided_slice %118 {offsets = [0, 88], sizes = [16, 8], strides = [1, 1]} : vector<16x128xf32> to vector<16x8xf32>
    %157 = vector.extract_strided_slice %118 {offsets = [0, 96], sizes = [16, 8], strides = [1, 1]} : vector<16x128xf32> to vector<16x8xf32>
    %158 = vector.extract_strided_slice %118 {offsets = [0, 104], sizes = [16, 8], strides = [1, 1]} : vector<16x128xf32> to vector<16x8xf32>
    %159 = vector.extract_strided_slice %118 {offsets = [0, 112], sizes = [16, 8], strides = [1, 1]} : vector<16x128xf32> to vector<16x8xf32>
    %160 = vector.extract_strided_slice %118 {offsets = [0, 120], sizes = [16, 8], strides = [1, 1]} : vector<16x128xf32> to vector<16x8xf32>
    %161 = vector.shape_cast %153 : vector<16x8xf32> to vector<1x16x8xf32>
    %162 = vector.shape_cast %154 : vector<16x8xf32> to vector<1x16x8xf32>
    %163 = vector.shape_cast %155 : vector<16x8xf32> to vector<1x16x8xf32>
    %164 = vector.shape_cast %156 : vector<16x8xf32> to vector<1x16x8xf32>
    %165 = vector.shape_cast %157 : vector<16x8xf32> to vector<1x16x8xf32>
    %166 = vector.shape_cast %158 : vector<16x8xf32> to vector<1x16x8xf32>
    %167 = vector.shape_cast %159 : vector<16x8xf32> to vector<1x16x8xf32>
    %168 = vector.shape_cast %160 : vector<16x8xf32> to vector<1x16x8xf32>
    %169 = tpu.concatenate %161, %162, %163, %164, %165, %166, %167, %168 in 0 : vector<1x16x8xf32>, vector<1x16x8xf32>, vector<1x16x8xf32>, vector<1x16x8xf32>, vector<1x16x8xf32>, vector<1x16x8xf32>, vector<1x16x8xf32>, vector<1x16x8xf32> -> vector<8x16x8xf32>
    %c0_38 = arith.constant 0 : index
    %c0_39 = arith.constant 0 : index
    %170 = vector.load %arg4[%c0_38, %c0_39] : memref<16x16xf32, #tpu.memory_space<vmem>>, vector<16x16xf32>
    %c0_40 = arith.constant 0 : index
    %c0_41 = arith.constant 0 : index
    %c0_42 = arith.constant 0 : index
    %171 = vector.load %arg13[%c0_40, %c0_41, %c0_42] : memref<8x8x64xf32, #tpu.memory_space<vmem>>, vector<8x8x64xf32>
    %c0_43 = arith.constant 0 : index
    %c0_44 = arith.constant 0 : index
    %172 = vector.load %arg14[%c0_43, %c0_44] : memref<1x64xf32, #tpu.memory_space<vmem>>, vector<1x64xf32>
    "tpu.trace_start"() <{level = 10 : i32, message = "hqd,hkd->hqk"}> : () -> ()
    %cst_45 = arith.constant dense<0.000000e+00> : vector<8x16x16xf32>
    %173 = tpu.matmul %135, %152, %cst_45 {dimension_numbers = #tpu.dot_dimension_numbers<[2], [2], [1], [1], [0, 0, 0, 1, 1, 1], [0], [0]>} : vector<8x16x8xf32>, vector<8x16x8xf32>, vector<8x16x16xf32> -> vector<8x16x16xf32>
    "tpu.trace_stop"() : () -> ()
    %174 = vector.shape_cast %170 : vector<16x16xf32> to vector<1x16x16xf32>
    %175 = vector.broadcast %174 : vector<1x16x16xf32> to vector<8x16x16xf32>
    %176 = arith.addf %173, %175 : vector<8x16x16xf32>
    %cst_46 = arith.constant dense<0xFF800000> : vector<8x16xf32>
    %177 = vector.multi_reduction <maximumf>, %176, %cst_46 [2] : vector<8x16x16xf32> to vector<8x16xf32>
    %178 = vector.shape_cast %177 : vector<8x16xf32> to vector<8x16x1xf32>
    %179 = vector.broadcast %178 : vector<8x16x1xf32> to vector<8x16x16xf32>
    %180 = arith.subf %176, %179 : vector<8x16x16xf32>
    %181 = math.exp %180 : vector<8x16x16xf32>
    %cst_47 = arith.constant dense<0.000000e+00> : vector<8x16xf32>
    %182 = vector.multi_reduction <add>, %181, %cst_47 [2] : vector<8x16x16xf32> to vector<8x16xf32>
    %183 = vector.shape_cast %182 : vector<8x16xf32> to vector<8x16x1xf32>
    %184 = tpu.reciprocal %183 : vector<8x16x1xf32> -> vector<8x16x1xf32>
    %185 = vector.broadcast %184 : vector<8x16x1xf32> to vector<8x16x16xf32>
    %186 = arith.mulf %181, %185 : vector<8x16x16xf32>
    "tpu.trace_start"() <{level = 10 : i32, message = "hqk,hkd->hqd"}> : () -> ()
    %cst_48 = arith.constant dense<0.000000e+00> : vector<8x16x8xf32>
    %187 = tpu.matmul %186, %169, %cst_48 {dimension_numbers = #tpu.dot_dimension_numbers<[2], [1], [1], [2], [0, 0, 0, 1, 1, 2], [0], [0]>} : vector<8x16x16xf32>, vector<8x16x8xf32>, vector<8x16x8xf32> -> vector<8x16x8xf32>
    "tpu.trace_stop"() : () -> ()
    "tpu.trace_start"() <{level = 10 : i32, message = "hqd,hdo->hqo"}> : () -> ()
    %cst_49 = arith.constant dense<0.000000e+00> : vector<8x16x64xf32>
    %188 = tpu.matmul %187, %171, %cst_49 {dimension_numbers = #tpu.dot_dimension_numbers<[2], [1], [1], [2], [0, 0, 0, 1, 1, 2], [0], [0]>} : vector<8x16x8xf32>, vector<8x8x64xf32>, vector<8x16x64xf32> -> vector<8x16x64xf32>
    "tpu.trace_stop"() : () -> ()
    %cst_50 = arith.constant dense<0.000000e+00> : vector<16x64xf32>
    %189 = vector.multi_reduction <add>, %188, %cst_50 [0] : vector<8x16x64xf32> to vector<16x64xf32>
    %190 = vector.broadcast %172 : vector<1x64xf32> to vector<16x64xf32>
    %191 = arith.addf %189, %190 : vector<16x64xf32>
    %192 = arith.addf %108, %191 : vector<16x64xf32>
    %c2 = arith.constant 2 : index
    %c0_51 = arith.constant 0 : index
    %193 = vector.load %arg19[%c2, %c0_51] : memref<6x64xf32, #tpu.memory_space<vmem>>, vector<1x64xf32>
    %194 = vector.shape_cast %193 : vector<1x64xf32> to vector<64xf32>
    %c3 = arith.constant 3 : index
    %c0_52 = arith.constant 0 : index
    %195 = vector.load %arg19[%c3, %c0_52] : memref<6x64xf32, #tpu.memory_space<vmem>>, vector<1x64xf32>
    %196 = vector.shape_cast %195 : vector<1x64xf32> to vector<64xf32>
    %cst_53 = arith.constant dense<0.000000e+00> : vector<16xf32>
    %197 = vector.multi_reduction <add>, %192, %cst_53 [1] : vector<16x64xf32> to vector<16xf32>
    %198 = vector.shape_cast %197 : vector<16xf32> to vector<16x1xf32>
    %cst_54 = arith.constant 6.400000e+01 : f32
    %199 = vector.broadcast %cst_54 : f32 to vector<16x1xf32>
    %200 = arith.divf %198, %199 : vector<16x1xf32>
    %201 = vector.broadcast %200 : vector<16x1xf32> to vector<16x64xf32>
    %202 = arith.subf %192, %201 : vector<16x64xf32>
    %203 = arith.mulf %202, %202 : vector<16x64xf32>
    %cst_55 = arith.constant dense<0.000000e+00> : vector<16xf32>
    %204 = vector.multi_reduction <add>, %203, %cst_55 [1] : vector<16x64xf32> to vector<16xf32>
    %205 = vector.shape_cast %204 : vector<16xf32> to vector<16x1xf32>
    %cst_56 = arith.constant 6.400000e+01 : f32
    %206 = vector.broadcast %cst_56 : f32 to vector<16x1xf32>
    %207 = arith.divf %205, %206 : vector<16x1xf32>
    %208 = vector.broadcast %200 : vector<16x1xf32> to vector<16x64xf32>
    %209 = arith.subf %192, %208 : vector<16x64xf32>
    %cst_57 = arith.constant 9.99999974E-6 : f32
    %210 = vector.broadcast %cst_57 : f32 to vector<16x1xf32>
    %211 = arith.addf %207, %210 : vector<16x1xf32>
    %212 = math.rsqrt %211 : vector<16x1xf32>
    %213 = vector.broadcast %212 : vector<16x1xf32> to vector<16x64xf32>
    %214 = arith.mulf %209, %213 : vector<16x64xf32>
    %215 = vector.shape_cast %194 : vector<64xf32> to vector<1x64xf32>
    %216 = vector.broadcast %215 : vector<1x64xf32> to vector<16x64xf32>
    %217 = arith.mulf %214, %216 : vector<16x64xf32>
    %218 = vector.shape_cast %196 : vector<64xf32> to vector<1x64xf32>
    %219 = vector.broadcast %218 : vector<1x64xf32> to vector<16x64xf32>
    %220 = arith.addf %217, %219 : vector<16x64xf32>
    %c0_58 = arith.constant 0 : index
    %c0_59 = arith.constant 0 : index
    %221 = vector.load %arg15[%c0_58, %c0_59] : memref<64x128xf32, #tpu.memory_space<vmem>>, vector<64x128xf32>
    %cst_60 = arith.constant dense<0.000000e+00> : vector<16x128xf32>
    %222 = tpu.matmul %220, %221, %cst_60 {dimension_numbers = #tpu.dot_dimension_numbers<[1], [0], [0], [1], [0, 0, 1, 1], [], []>} : vector<16x64xf32>, vector<64x128xf32>, vector<16x128xf32> -> vector<16x128xf32>
    %c0_61 = arith.constant 0 : index
    %c0_62 = arith.constant 0 : index
    %223 = vector.load %arg16[%c0_61, %c0_62] : memref<1x128xf32, #tpu.memory_space<vmem>>, vector<1x128xf32>
    %224 = vector.broadcast %223 : vector<1x128xf32> to vector<16x128xf32>
    %225 = arith.addf %222, %224 : vector<16x128xf32>
    %cst_63 = arith.constant 0.000000e+00 : f32
    %226 = vector.broadcast %cst_63 : f32 to vector<16x128xf32>
    %227 = arith.maximumf %225, %226 : vector<16x128xf32>
    %c0_64 = arith.constant 0 : index
    %c0_65 = arith.constant 0 : index
    %228 = vector.load %arg17[%c0_64, %c0_65] : memref<128x64xf32, #tpu.memory_space<vmem>>, vector<128x64xf32>
    %cst_66 = arith.constant dense<0.000000e+00> : vector<16x64xf32>
    %229 = tpu.matmul %227, %228, %cst_66 {dimension_numbers = #tpu.dot_dimension_numbers<[1], [0], [0], [1], [0, 0, 1, 1], [], []>} : vector<16x128xf32>, vector<128x64xf32>, vector<16x64xf32> -> vector<16x64xf32>
    %c0_67 = arith.constant 0 : index
    %c0_68 = arith.constant 0 : index
    %230 = vector.load %arg18[%c0_67, %c0_68] : memref<1x64xf32, #tpu.memory_space<vmem>>, vector<1x64xf32>
    %231 = vector.broadcast %230 : vector<1x64xf32> to vector<16x64xf32>
    %232 = arith.addf %229, %231 : vector<16x64xf32>
    %233 = arith.addf %220, %232 : vector<16x64xf32>
    %c4 = arith.constant 4 : index
    %c0_69 = arith.constant 0 : index
    %234 = vector.load %arg19[%c4, %c0_69] : memref<6x64xf32, #tpu.memory_space<vmem>>, vector<1x64xf32>
    %235 = vector.shape_cast %234 : vector<1x64xf32> to vector<64xf32>
    %c5 = arith.constant 5 : index
    %c0_70 = arith.constant 0 : index
    %236 = vector.load %arg19[%c5, %c0_70] : memref<6x64xf32, #tpu.memory_space<vmem>>, vector<1x64xf32>
    %237 = vector.shape_cast %236 : vector<1x64xf32> to vector<64xf32>
    %cst_71 = arith.constant dense<0.000000e+00> : vector<16xf32>
    %238 = vector.multi_reduction <add>, %233, %cst_71 [1] : vector<16x64xf32> to vector<16xf32>
    %239 = vector.shape_cast %238 : vector<16xf32> to vector<16x1xf32>
    %cst_72 = arith.constant 6.400000e+01 : f32
    %240 = vector.broadcast %cst_72 : f32 to vector<16x1xf32>
    %241 = arith.divf %239, %240 : vector<16x1xf32>
    %242 = vector.broadcast %241 : vector<16x1xf32> to vector<16x64xf32>
    %243 = arith.subf %233, %242 : vector<16x64xf32>
    %244 = arith.mulf %243, %243 : vector<16x64xf32>
    %cst_73 = arith.constant dense<0.000000e+00> : vector<16xf32>
    %245 = vector.multi_reduction <add>, %244, %cst_73 [1] : vector<16x64xf32> to vector<16xf32>
    %246 = vector.shape_cast %245 : vector<16xf32> to vector<16x1xf32>
    %cst_74 = arith.constant 6.400000e+01 : f32
    %247 = vector.broadcast %cst_74 : f32 to vector<16x1xf32>
    %248 = arith.divf %246, %247 : vector<16x1xf32>
    %249 = vector.broadcast %241 : vector<16x1xf32> to vector<16x64xf32>
    %250 = arith.subf %233, %249 : vector<16x64xf32>
    %cst_75 = arith.constant 9.99999974E-6 : f32
    %251 = vector.broadcast %cst_75 : f32 to vector<16x1xf32>
    %252 = arith.addf %248, %251 : vector<16x1xf32>
    %253 = math.rsqrt %252 : vector<16x1xf32>
    %254 = vector.broadcast %253 : vector<16x1xf32> to vector<16x64xf32>
    %255 = arith.mulf %250, %254 : vector<16x64xf32>
    %256 = vector.shape_cast %235 : vector<64xf32> to vector<1x64xf32>
    %257 = vector.broadcast %256 : vector<1x64xf32> to vector<16x64xf32>
    %258 = arith.mulf %255, %257 : vector<16x64xf32>
    %259 = vector.shape_cast %237 : vector<64xf32> to vector<1x64xf32>
    %260 = vector.broadcast %259 : vector<1x64xf32> to vector<16x64xf32>
    %261 = arith.addf %258, %260 : vector<16x64xf32>
    %262 = vector.extract_strided_slice %261 {offsets = [0, 0], sizes = [8, 64], strides = [1, 1]} : vector<16x64xf32> to vector<8x64xf32>
    %263 = vector.extract_strided_slice %261 {offsets = [8, 0], sizes = [8, 64], strides = [1, 1]} : vector<16x64xf32> to vector<8x64xf32>
    %264 = tpu.concatenate %262, %263 in 1 : vector<8x64xf32>, vector<8x64xf32> -> vector<8x128xf32>
    %c0_76 = arith.constant 0 : index
    %c0_77 = arith.constant 0 : index
    %265 = vector.load %arg20[%c0_76, %c0_77] : memref<8x128xf32, #tpu.memory_space<vmem>>, vector<8x128xf32>
    tpu.vector_store %arg20[%c0_76, %c0_77], %264 {strides = array<i32>} : memref<8x128xf32, #tpu.memory_space<vmem>>, vector<8x128xf32>,
    return
  }
  func.func @transform_0(%arg0: i32) -> (i32, i32) {
    %c0_i32 = arith.constant 0 : i32
    %c0_i32_0 = arith.constant 0 : i32
    %c0_i32_1 = arith.constant 0 : i32
    return %c0_i32, %c0_i32_0 : i32, i32
  }
  func.func @transform_1(%arg0: i32) -> (i32, i32) {
    %c0_i32 = arith.constant 0 : i32
    %c0_i32_0 = arith.constant 0 : i32
    %c0_i32_1 = arith.constant 0 : i32
    return %c0_i32, %c0_i32_0 : i32, i32
  }
  func.func @transform_2(%arg0: i32) -> (i32, i32) {
    %c0_i32 = arith.constant 0 : i32
    %c0_i32_0 = arith.constant 0 : i32
    %c0_i32_1 = arith.constant 0 : i32
    return %c0_i32, %c0_i32_0 : i32, i32
  }
  func.func @transform_3(%arg0: i32) -> (i32, i32) {
    %c0_i32 = arith.constant 0 : i32
    %c0_i32_0 = arith.constant 0 : i32
    %c0_i32_1 = arith.constant 0 : i32
    return %c0_i32, %c0_i32_0 : i32, i32
  }
  func.func @transform_4(%arg0: i32) -> (i32, i32) {
    %c0_i32 = arith.constant 0 : i32
    %c0_i32_0 = arith.constant 0 : i32
    %c0_i32_1 = arith.constant 0 : i32
    return %c0_i32, %c0_i32_0 : i32, i32
  }
  func.func @transform_5(%arg0: i32) -> (i32, i32) {
    %c0_i32 = arith.constant 0 : i32
    %c0_i32_0 = arith.constant 0 : i32
    %c0_i32_1 = arith.constant 0 : i32
    return %c0_i32, %c0_i32_0 : i32, i32
  }
  func.func @transform_6(%arg0: i32) -> (i32, i32, i32) {
    %c0_i32 = arith.constant 0 : i32
    %c0_i32_0 = arith.constant 0 : i32
    %c0_i32_1 = arith.constant 0 : i32
    %c0_i32_2 = arith.constant 0 : i32
    return %c0_i32, %c0_i32_0, %c0_i32_1 : i32, i32, i32
  }
  func.func @transform_7(%arg0: i32) -> (i32, i32) {
    %c0_i32 = arith.constant 0 : i32
    %c0_i32_0 = arith.constant 0 : i32
    %c0_i32_1 = arith.constant 0 : i32
    return %c0_i32, %c0_i32_0 : i32, i32
  }
  func.func @transform_8(%arg0: i32) -> (i32, i32) {
    %c0_i32 = arith.constant 0 : i32
    %c0_i32_0 = arith.constant 0 : i32
    %c0_i32_1 = arith.constant 0 : i32
    return %c0_i32, %c0_i32_0 : i32, i32
  }
  func.func @transform_9(%arg0: i32) -> (i32, i32) {
    %c0_i32 = arith.constant 0 : i32
    %c0_i32_0 = arith.constant 0 : i32
    %c0_i32_1 = arith.constant 0 : i32
    return %c0_i32, %c0_i32_0 : i32, i32
  }
  func.func @transform_10(%arg0: i32) -> (i32, i32) {
    %c0_i32 = arith.constant 0 : i32
    %c0_i32_0 = arith.constant 0 : i32
    %c0_i32_1 = arith.constant 0 : i32
    return %c0_i32, %c0_i32_0 : i32, i32
  }
  func.func @transform_11(%arg0: i32) -> (i32, i32) {
    %c0_i32 = arith.constant 0 : i32
    %c0_i32_0 = arith.constant 0 : i32
    %c0_i32_1 = arith.constant 0 : i32
    return %c0_i32, %c0_i32_0 : i32, i32
  }
  func.func @transform_12(%arg0: i32) -> (i32, i32, i32) {
    %c0_i32 = arith.constant 0 : i32
    %c0_i32_0 = arith.constant 0 : i32
    %c0_i32_1 = arith.constant 0 : i32
    %c0_i32_2 = arith.constant 0 : i32
    return %c0_i32, %c0_i32_0, %c0_i32_1 : i32, i32, i32
  }
  func.func @transform_13(%arg0: i32) -> (i32, i32) {
    %c0_i32 = arith.constant 0 : i32
    %c0_i32_0 = arith.constant 0 : i32
    %c0_i32_1 = arith.constant 0 : i32
    return %c0_i32, %c0_i32_0 : i32, i32
  }
  func.func @transform_14(%arg0: i32) -> (i32, i32) {
    %c0_i32 = arith.constant 0 : i32
    %c0_i32_0 = arith.constant 0 : i32
    %c0_i32_1 = arith.constant 0 : i32
    return %c0_i32, %c0_i32_0 : i32, i32
  }
  func.func @transform_15(%arg0: i32) -> (i32, i32) {
    %c0_i32 = arith.constant 0 : i32
    %c0_i32_0 = arith.constant 0 : i32
    %c0_i32_1 = arith.constant 0 : i32
    return %c0_i32, %c0_i32_0 : i32, i32
  }
  func.func @transform_16(%arg0: i32) -> (i32, i32) {
    %c0_i32 = arith.constant 0 : i32
    %c0_i32_0 = arith.constant 0 : i32
    %c0_i32_1 = arith.constant 0 : i32
    return %c0_i32, %c0_i32_0 : i32, i32
  }
  func.func @transform_17(%arg0: i32) -> (i32, i32) {
    %c0_i32 = arith.constant 0 : i32
    %c0_i32_0 = arith.constant 0 : i32
    %c0_i32_1 = arith.constant 0 : i32
    return %c0_i32, %c0_i32_0 : i32, i32
  }
  func.func @transform_18(%arg0: i32) -> (i32, i32) {
    %c0_i32 = arith.constant 0 : i32
    %c0_i32_0 = arith.constant 0 : i32
    %c0_i32_1 = arith.constant 0 : i32
    return %c0_i32, %c0_i32_0 : i32, i32
  }
  func.func @transform_19(%arg0: i32) -> (i32, i32) {
    %c0_i32 = arith.constant 0 : i32
    %c0_i32_0 = arith.constant 0 : i32
    %c0_i32_1 = arith.constant 0 : i32
    return %c0_i32, %c0_i32_0 : i32, i32
  }
}

</mosaic_0001>

<llo_original>
// kernel: tpu_custom_call.1
$region0: #{tpu_custom_call.1}
  #allocation0 [shape = 'u32[]', space=smem, size = 0x4, offset = 0x4, fixed_abs, tag = 'smem constant byte address 0x4 - core index']
  #allocation1 [shape = 'u32[144,128]{1,0:T(1,128)}', space=vmem, size = 0x12000, scoped, tag = 'internal scratch']
  %s0 = inlined_call_operand.hbm [shape: f32[16,64], index: 0, kind: input, shape index: {}]
  %s1 = inlined_call_operand.hbm [shape: f32[16,64], index: 1, kind: input, shape index: {}]
  %s2 = inlined_call_operand.hbm [shape: f32[16,16], index: 2, kind: input, shape index: {}]
  %s3 = inlined_call_operand.hbm [shape: f32[16,16], index: 3, kind: input, shape index: {}]
  %s4 = inlined_call_operand.vmem [shape: f32[64,192], index: 4, kind: input, shape index: {}]
  %s5 = inlined_call_operand.vmem [shape: f32[1,192], index: 5, kind: input, shape index: {}]
  %s6 = inlined_call_operand.vmem [shape: f32[8,8,64], index: 6, kind: input, shape index: {}]
  %s7 = inlined_call_operand.vmem [shape: f32[1,64], index: 7, kind: input, shape index: {}]
  %s8 = inlined_call_operand.hbm [shape: f32[64,64], index: 8, kind: input, shape index: {}]
  %s9 = inlined_call_operand.vmem [shape: f32[1,64], index: 9, kind: input, shape index: {}]
  %s10 = inlined_call_operand.hbm [shape: f32[64,128], index: 10, kind: input, shape index: {}]
  %s11 = inlined_call_operand.vmem [shape: f32[1,128], index: 11, kind: input, shape index: {}]
  %s12 = inlined_call_operand.hbm [shape: f32[8,8,64], index: 12, kind: input, shape index: {}]
  %s13 = inlined_call_operand.vmem [shape: f32[1,64], index: 13, kind: input, shape index: {}]
  %s14 = inlined_call_operand.hbm [shape: f32[64,128], index: 14, kind: input, shape index: {}]
  %s15 = inlined_call_operand.vmem [shape: f32[1,128], index: 15, kind: input, shape index: {}]
  %s16 = inlined_call_operand.vmem [shape: f32[128,64], index: 16, kind: input, shape index: {}]
  %s17 = inlined_call_operand.vmem [shape: f32[1,64], index: 17, kind: input, shape index: {}]
  %s18 = inlined_call_operand.vmem [shape: f32[6,64], index: 18, kind: input, shape index: {}]
  %s19 = inlined_call_operand.hbm [shape: f32[8,128], index: 19, kind: output, shape index: {}]
  %s20 = sld [smem:[#allocation0]]
  $region118: #{tpu_custom_call.1} parent=0
    _
  %s22 = ssub.s32 1, %s20
  %s23 = scalar_select 0, %s22, %s20
  $region1: #{tpu_custom_call.1} parent=0
    #allocation2 [shape = 'u8[8192]{0}', space=vmem, size = 0x2000, scoped, tag = 'input window, operand 0, single buffered']
    #allocation3 [shape = 's32[1]{0}', space=sflag, size = 0x4, scoped, tag = 'scoped memory for tpu_custom_call.1']
    #allocation4 [shape = 's32[1]{0}', space=sflag, size = 0x4, scoped, tag = 'scoped memory for tpu_custom_call.1']
    #allocation5 [shape = 'u8[8192]{0}', space=vmem, size = 0x2000, scoped, tag = 'input window, operand 1, single buffered']
    #allocation6 [shape = 's32[1]{0}', space=sflag, size = 0x4, scoped, tag = 'scoped memory for tpu_custom_call.1']
    #allocation7 [shape = 'u8[8192]{0}', space=vmem, size = 0x2000, scoped, tag = 'input window, operand 2, single buffered']
    #allocation8 [shape = 'u8[8192]{0}', space=vmem, size = 0x2000, scoped, tag = 'input window, operand 3, single buffered']
    #allocation9 [shape = 's32[1]{0}', space=sflag, size = 0x4, scoped, tag = 'scoped memory for tpu_custom_call.1']
    #allocation10 [shape = 'u8[32768]{0}', space=vmem, size = 0x8000, scoped, tag = 'input window, operand 8, single buffered']
    #allocation11 [shape = 'u8[32768]{0}', space=vmem, size = 0x8000, scoped, tag = 'input window, operand 10, single buffered']
    #allocation12 [shape = 's32[1]{0}', space=sflag, size = 0x4, scoped, tag = 'scoped memory for tpu_custom_call.1']
    #allocation13 [shape = 'u8[32768]{0}', space=vmem, size = 0x8000, scoped, tag = 'input window, operand 12, single buffered']
    #allocation14 [shape = 'u8[32768]{0}', space=vmem, size = 0x8000, scoped, tag = 'input window, operand 14, single buffered']
    #allocation15 [shape = 's32[1]{0}', space=sflag, size = 0x4, scoped, tag = 'scoped memory for tpu_custom_call.1']
    #allocation16 [shape = 'u8[4096]{0}', space=vmem, size = 0x1000, scoped, tag = 'output window, operand 0, single buffered']
    %24 = vsyncpa [#allocation3], 0
    %25 = vsyncpa [#allocation6], 0
    %26 = vsyncpa [#allocation9], 0
    %27 = vsyncpa [#allocation12], 0
    %28 = vsyncpa [#allocation15], 0
    %29 = vsyncpa [#allocation4], 0
    // Predicated region
    $region2: #{tpu_custom_call.1} parent=1 // pred_check
      _
    $region3: #{tpu_custom_call.1} parent=1 // pred_check_branch
      %31 = sbr.rel (0) target = $region5
    $region4: #{tpu_custom_call.1} parent=1 // pred_region
      %s33 = ssub.s32 256, 256
      %34 = vsyncadd [#allocation3], %s33
      %s35 = sshll.u32 [#allocation2], 4
      %s36 = int_to_ptr.vmem [resolvable:$true] %s35
      %41 = dma.hbm_to_vmem [thread:$0]  %s0, 256, %s36, [#allocation3], 128, 128, 8
    $region5: #{tpu_custom_call.1} parent=1 // pred_fallthru
      _
    // Predicated region
    $region6: #{tpu_custom_call.1} parent=1 // pred_check
      _
    $region7: #{tpu_custom_call.1} parent=1 // pred_check_branch
      %43 = sbr.rel (0) target = $region9
    $region8: #{tpu_custom_call.1} parent=1 // pred_region
      %s45 = ssub.s32 256, 256
      %46 = vsyncadd [#allocation6], %s45
      %s47 = sshll.u32 [#allocation5], 4
      %s48 = int_to_ptr.vmem [resolvable:$true] %s47
      %53 = dma.hbm_to_vmem [thread:$0]  %s1, 256, %s48, [#allocation6], 128, 128, 8
    $region9: #{tpu_custom_call.1} parent=1 // pred_fallthru
      _
    // Predicated region
    $region10: #{tpu_custom_call.1} parent=1 // pred_check
      _
    $region11: #{tpu_custom_call.1} parent=1 // pred_check_branch
      %55 = sbr.rel (0) target = $region13
    $region12: #{tpu_custom_call.1} parent=1 // pred_region
      %s57 = ssub.s32 256, 256
      %58 = vsyncadd [#allocation6], %s57
      %s59 = sshll.u32 [#allocation7], 4
      %s60 = int_to_ptr.vmem [resolvable:$true] %s59
      %65 = dma.hbm_to_vmem [thread:$0]  %s2, 256, %s60, [#allocation6], 128, 128, 8
    $region13: #{tpu_custom_call.1} parent=1 // pred_fallthru
      _
    // Predicated region
    $region14: #{tpu_custom_call.1} parent=1 // pred_check
      _
    $region15: #{tpu_custom_call.1} parent=1 // pred_check_branch
      %67 = sbr.rel (0) target = $region17
    $region16: #{tpu_custom_call.1} parent=1 // pred_region
      %s69 = ssub.s32 256, 256
      %70 = vsyncadd [#allocation9], %s69
      %s71 = sshll.u32 [#allocation8], 4
      %s72 = int_to_ptr.vmem [resolvable:$true] %s71
      %77 = dma.hbm_to_vmem [thread:$0]  %s3, 256, %s72, [#allocation9], 128, 128, 8
    $region17: #{tpu_custom_call.1} parent=1 // pred_fallthru
      _
    // Predicated region
    $region18: #{tpu_custom_call.1} parent=1 // pred_check
      _
    $region19: #{tpu_custom_call.1} parent=1 // pred_check_branch
      %79 = sbr.rel (0) target = $region21
    $region20: #{tpu_custom_call.1} parent=1 // pred_region
      _
    $region21: #{tpu_custom_call.1} parent=1 // pred_fallthru
      _
    // Predicated region
    $region22: #{tpu_custom_call.1} parent=1 // pred_check
      _
    $region23: #{tpu_custom_call.1} parent=1 // pred_check_branch
      %81 = sbr.rel (0) target = $region25
    $region24: #{tpu_custom_call.1} parent=1 // pred_region
      _
    $region25: #{tpu_custom_call.1} parent=1 // pred_fallthru
      _
    // Predicated region
    $region26: #{tpu_custom_call.1} parent=1 // pred_check
      _
    $region27: #{tpu_custom_call.1} parent=1 // pred_check_branch
      %83 = sbr.rel (0) target = $region29
    $region28: #{tpu_custom_call.1} parent=1 // pred_region
      _
    $region29: #{tpu_custom_call.1} parent=1 // pred_fallthru
      _
    // Predicated region
    $region30: #{tpu_custom_call.1} parent=1 // pred_check
      _
    $region31: #{tpu_custom_call.1} parent=1 // pred_check_branch
      %85 = sbr.rel (0) target = $region33
    $region32: #{tpu_custom_call.1} parent=1 // pred_region
      _
    $region33: #{tpu_custom_call.1} parent=1 // pred_fallthru
      _
    // Predicated region
    $region34: #{tpu_custom_call.1} parent=1 // pred_check
      _
    $region35: #{tpu_custom_call.1} parent=1 // pred_check_branch
      %87 = sbr.rel (0) target = $region37
    $region36: #{tpu_custom_call.1} parent=1 // pred_region
      %s89 = ssub.s32 1024, 1024
      %90 = vsyncadd [#allocation9], %s89
      %s91 = sshll.u32 [#allocation10], 4
      %s92 = int_to_ptr.vmem [resolvable:$true] %s91
      %97 = dma.hbm_to_vmem [thread:$0]  %s8, 1024, %s92, [#allocation9], 128, 128, 8
    $region37: #{tpu_custom_call.1} parent=1 // pred_fallthru
      _
    // Predicated region
    $region38: #{tpu_custom_call.1} parent=1 // pred_check
      _
    $region39: #{tpu_custom_call.1} parent=1 // pred_check_branch
      %99 = sbr.rel (0) target = $region41
    $region40: #{tpu_custom_call.1} parent=1 // pred_region
      _
    $region41: #{tpu_custom_call.1} parent=1 // pred_fallthru
      _
    // Predicated region
    $region42: #{tpu_custom_call.1} parent=1 // pred_check
      _
    $region43: #{tpu_custom_call.1} parent=1 // pred_check_branch
      %101 = sbr.rel (0) target = $region45
    $region44: #{tpu_custom_call.1} parent=1 // pred_region
      %s103 = ssub.s32 1024, 1024
      %104 = vsyncadd [#allocation12], %s103
      %s105 = sshll.u32 [#allocation11], 4
      %s106 = int_to_ptr.vmem [resolvable:$true] %s105
      %111 = dma.hbm_to_vmem [thread:$0]  %s10, 1024, %s106, [#allocation12], 128, 128, 8
    $region45: #{tpu_custom_call.1} parent=1 // pred_fallthru
      _
    // Predicated region
    $region46: #{tpu_custom_call.1} parent=1 // pred_check
      _
    $region47: #{tpu_custom_call.1} parent=1 // pred_check_branch
      %113 = sbr.rel (0) target = $region49
    $region48: #{tpu_custom_call.1} parent=1 // pred_region
      _
    $region49: #{tpu_custom_call.1} parent=1 // pred_fallthru
      _
    // Predicated region
    $region50: #{tpu_custom_call.1} parent=1 // pred_check
      _
    $region51: #{tpu_custom_call.1} parent=1 // pred_check_branch
      %115 = sbr.rel (0) target = $region53
    $region52: #{tpu_custom_call.1} parent=1 // pred_region
      %s117 = ssub.s32 1024, 1024
      %118 = vsyncadd [#allocation12], %s117
      %s119 = sshll.u32 [#allocation13], 4
      %s120 = int_to_ptr.vmem [resolvable:$true] %s119
      %125 = dma.hbm_to_vmem [thread:$0]  %s12, 1024, %s120, [#allocation12], 128, 128, 8
    $region53: #{tpu_custom_call.1} parent=1 // pred_fallthru
      _
    // Predicated region
    $region54: #{tpu_custom_call.1} parent=1 // pred_check
      _
    $region55: #{tpu_custom_call.1} parent=1 // pred_check_branch
      %127 = sbr.rel (0) target = $region57
    $region56: #{tpu_custom_call.1} parent=1 // pred_region
      _
    $region57: #{tpu_custom_call.1} parent=1 // pred_fallthru
      _
    // Predicated region
    $region58: #{tpu_custom_call.1} parent=1 // pred_check
      _
    $region59: #{tpu_custom_call.1} parent=1 // pred_check_branch
      %129 = sbr.rel (0) target = $region61
    $region60: #{tpu_custom_call.1} parent=1 // pred_region
      %s131 = ssub.s32 1024, 1024
      %132 = vsyncadd [#allocation15], %s131
      %s133 = sshll.u32 [#allocation14], 4
      %s134 = int_to_ptr.vmem [resolvable:$true] %s133
      %139 = dma.hbm_to_vmem [thread:$0]  %s14, 1024, %s134, [#allocation15], 128, 128, 8
    $region61: #{tpu_custom_call.1} parent=1 // pred_fallthru
      _
    // Predicated region
    $region62: #{tpu_custom_call.1} parent=1 // pred_check
      _
    $region63: #{tpu_custom_call.1} parent=1 // pred_check_branch
      %141 = sbr.rel (0) target = $region65
    $region64: #{tpu_custom_call.1} parent=1 // pred_region
      _
    $region65: #{tpu_custom_call.1} parent=1 // pred_fallthru
      _
    // Predicated region
    $region66: #{tpu_custom_call.1} parent=1 // pred_check
      _
    $region67: #{tpu_custom_call.1} parent=1 // pred_check_branch
      %143 = sbr.rel (0) target = $region69
    $region68: #{tpu_custom_call.1} parent=1 // pred_region
      _
    $region69: #{tpu_custom_call.1} parent=1 // pred_fallthru
      _
    // Predicated region
    $region70: #{tpu_custom_call.1} parent=1 // pred_check
      _
    $region71: #{tpu_custom_call.1} parent=1 // pred_check_branch
      %145 = sbr.rel (0) target = $region73
    $region72: #{tpu_custom_call.1} parent=1 // pred_region
      _
    $region73: #{tpu_custom_call.1} parent=1 // pred_fallthru
      _
    // Predicated region
    $region74: #{tpu_custom_call.1} parent=1 // pred_check
      _
    $region75: #{tpu_custom_call.1} parent=1 // pred_check_branch
      %147 = sbr.rel (0) target = $region77
    $region76: #{tpu_custom_call.1} parent=1 // pred_region
      _
    $region77: #{tpu_custom_call.1} parent=1 // pred_fallthru
      _
    // Predicated region
    $region78: #{tpu_custom_call.1} parent=1 // pred_check
      _
    $region79: #{tpu_custom_call.1} parent=1 // pred_check_branch
      %149 = sbr.rel (0) target = $region81
    $region80: #{tpu_custom_call.1} parent=1 // pred_region
      %150 = dma.done [#allocation3], 256
    $region81: #{tpu_custom_call.1} parent=1 // pred_fallthru
      _
    // Predicated region
    $region82: #{tpu_custom_call.1} parent=1 // pred_check
      _
    $region83: #{tpu_custom_call.1} parent=1 // pred_check_branch
      %152 = sbr.rel (0) target = $region85
    $region84: #{tpu_custom_call.1} parent=1 // pred_region
      %153 = dma.done [#allocation6], 256
    $region85: #{tpu_custom_call.1} parent=1 // pred_fallthru
      _
    // Predicated region
    $region86: #{tpu_custom_call.1} parent=1 // pred_check
      _
    $region87: #{tpu_custom_call.1} parent=1 // pred_check_branch
      %155 = sbr.rel (0) target = $region89
    $region88: #{tpu_custom_call.1} parent=1 // pred_region
      %156 = dma.done [#allocation6], 256
    $region89: #{tpu_custom_call.1} parent=1 // pred_fallthru
      _
    // Predicated region
    $region90: #{tpu_custom_call.1} parent=1 // pred_check
      _
    $region91: #{tpu_custom_call.1} parent=1 // pred_check_branch
      %158 = sbr.rel (0) target = $region93
    $region92: #{tpu_custom_call.1} parent=1 // pred_region
      %159 = dma.done [#allocation9], 256
    $region93: #{tpu_custom_call.1} parent=1 // pred_fallthru
      _
    // Predicated region
    $region94: #{tpu_custom_call.1} parent=1 // pred_check
      _
    $region95: #{tpu_custom_call.1} parent=1 // pred_check_branch
      %161 = sbr.rel (0) target = $region97
    $region96: #{tpu_custom_call.1} parent=1 // pred_region
      %162 = dma.done [#allocation9], 1024
    $region97: #{tpu_custom_call.1} parent=1 // pred_fallthru
      _
    // Predicated region
    $region98: #{tpu_custom_call.1} parent=1 // pred_check
      _
    $region99: #{tpu_custom_call.1} parent=1 // pred_check_branch
      %164 = sbr.rel (0) target = $region101
    $region100: #{tpu_custom_call.1} parent=1 // pred_region
      %165 = dma.done [#allocation12], 1024
    $region101: #{tpu_custom_call.1} parent=1 // pred_fallthru
      _
    // Predicated region
    $region102: #{tpu_custom_call.1} parent=1 // pred_check
      _
    $region103: #{tpu_custom_call.1} parent=1 // pred_check_branch
      %167 = sbr.rel (0) target = $region105
    $region104: #{tpu_custom_call.1} parent=1 // pred_region
      %168 = dma.done [#allocation12], 1024
    $region105: #{tpu_custom_call.1} parent=1 // pred_fallthru
      _
    // Predicated region
    $region106: #{tpu_custom_call.1} parent=1 // pred_check
      _
    $region107: #{tpu_custom_call.1} parent=1 // pred_check_branch
      %170 = sbr.rel (0) target = $region109
    $region108: #{tpu_custom_call.1} parent=1 // pred_region
      %171 = dma.done [#allocation15], 1024
    $region109: #{tpu_custom_call.1} parent=1 // pred_fallthru
      _
    %v172 = vld [vmem:[#allocation2] sm:$0xff]
    %v173 = vld [vmem:[#allocation2 + $0x8] sm:$0xff]
    %v174 = vld [vmem:[#allocation5] sm:$0xff]
    %v175 = vld [vmem:[#allocation5 + $0x8] sm:$0xff]
    %v176 = vld [vmem:[%s4] sm:$0xff]
    %v177 = vld [vmem:[%s4 + $0x8] sm:$0xff]
    %v178 = vld [vmem:[%s4 + $0x10] sm:$0xff]
    %v179 = vld [vmem:[%s4 + $0x18] sm:$0xff]
    %v180 = vld [vmem:[%s4 + $0x20] sm:$0xff]
    %v181 = vld [vmem:[%s4 + $0x28] sm:$0xff]
    %v182 = vld [vmem:[%s4 + $0x30] sm:$0xff]
    %v183 = vld [vmem:[%s4 + $0x38] sm:$0xff]
    %v184 = vld [vmem:[%s4 + $0x40] sm:$0xff]
    %v185 = vld [vmem:[%s4 + $0x48] sm:$0xff]
    %v186 = vld [vmem:[%s4 + $0x50] sm:$0xff]
    %v187 = vld [vmem:[%s4 + $0x58] sm:$0xff]
    %v188 = vld [vmem:[%s4 + $0x60] sm:$0xff]
    %v189 = vld [vmem:[%s4 + $0x68] sm:$0xff]
    %v190 = vld [vmem:[%s4 + $0x70] sm:$0xff]
    %v191 = vld [vmem:[%s4 + $0x78] sm:$0xff]
    %v192 = vld [vmem:[%s5] sm:$0x3]
    %v194 = vlaneseq
    %v195 = vshrl.u32 %v194, 7
    %v196 = vsub.s32 0, %v195
    %v197 = vrot.slane %v192, %v196
    %v198 = vlaneseq
    %v199 = vshrl.u32 %v198, 7
    %v200 = vsub.s32 1, %v199
    %v201 = vrot.slane %v192, %v200
    %vm204 = vcmask 523264
    %v206 = vsel %vm204, %v172, 0
    %v209 = vsel %vm204, %v173, 0
    %211 = vmatprep.subr.mxu0 %v177
    %212 = vmatpush1.msra.mxu0 %v176
    %213 = vmatprep.subr.mxu0 %v179
    %214 = vmatpush1.msra.mxu0 %v178
    %215 = vmatprep.subr.mxu0 %v181
    %216 = vmatpush1.msra.mxu0 %v180
    %217 = vmatprep.subr.mxu0 %v183
    %218 = vmatpush1.msra.mxu0 %v182
    %219 = vmatprep.subr.mxu0 %v185
    %220 = vmatpush1.msra.mxu0 %v184
    %221 = vmatprep.subr.mxu0 %v187
    %222 = vmatpush1.msra.mxu0 %v186
    %223 = vmatprep.subr.mxu0 %v189
    %224 = vmatpush1.msra.mxu0 %v188
    %225 = vmatprep.subr.mxu0 %v191
    %226 = vmatpush1.msra.mxu0 %v190
    %227 = vmatprep.subr.mxu0 0.0
    %228 = vmatpush1.msra.mxu0 0.0
    %229 = vmatprep.subr.mxu0 0.0
    %230 = vmatpush1.msra.mxu0 0.0
    %231 = vmatprep.subr.mxu0 0.0
    %232 = vmatpush1.msra.mxu0 0.0
    %233 = vmatprep.subr.mxu0 0.0
    %234 = vmatpush1.msra.mxu0 0.0
    %235 = vmatprep.subr.mxu0 0.0
    %236 = vmatpush1.msra.mxu0 0.0
    %237 = vmatprep.subr.mxu0 0.0
    %238 = vmatpush1.msra.mxu0 0.0
    %239 = vmatprep.subr.mxu0 0.0
    %240 = vmatpush1.msra.mxu0 0.0
    %241 = vmatprep.subr.mxu0 0.0
    %242 = vmatpush1.msra.mxu0 0.0
    %243 = vmatprep.subr.mxu0 0.0
    %244 = vmatpush1.msra.mxu0 0.0
    %245 = vmatprep.subr.mxu0 0.0
    %246 = vmatpush1.msra.mxu0 0.0
    %247 = vmatprep.subr.mxu0 0.0
    %248 = vmatpush1.msra.mxu0 0.0
    %249 = vmatprep.subr.mxu0 0.0
    %250 = vmatpush1.msra.mxu0 0.0
    %251 = vmatprep.subr.mxu0 0.0
    %252 = vmatpush1.msra.mxu0 0.0
    %253 = vmatprep.subr.mxu0 0.0
    %254 = vmatpush1.msra.mxu0 0.0
    %255 = vmatprep.subr.mxu0 0.0
    %256 = vmatpush1.msra.mxu0 0.0
    %257 = vmatprep.subr.mxu0 0.0
    %258 = vmatpush1.msra.mxu0 0.0
    %259 = vmatprep.subr.mxu0 0.0
    %260 = vmatpush1.msra.mxu0 0.0
    %261 = vmatprep.subr.mxu0 0.0
    %262 = vmatpush1.msra.mxu0 0.0
    %263 = vmatprep.subr.mxu0 0.0
    %264 = vmatpush1.msra.mxu0 0.0
    %265 = vmatprep.subr.mxu0 0.0
    %266 = vmatpush1.msra.mxu0 0.0
    %267 = vmatprep.subr.mxu0 0.0
    %268 = vmatpush1.msra.mxu0 0.0
    %269 = vmatprep.subr.mxu0 0.0
    %270 = vmatpush1.msra.mxu0 0.0
    %271 = vmatprep.subr.mxu0 0.0
    %272 = vmatpush1.msra.mxu0 0.0
    %273 = vmatprep.subr.mxu0 0.0
    %274 = vmatpush1.msra.mxu0 0.0
    %275 = vmatprep.mubr.f32.mxu0 0.0
    %276 = vmatmul.mubr.f32.gmra.mrb[0].mxu0 %v206
    %v277 = vpop.f32.mrb[0].mxu0
    %v278 = vadd.f32 %v197, %v277
    %v279 = vpop.f32.mrb[0].mxu0
    %v280 = vadd.f32 %v201, %v279
    %281 = vmatprep.mubr.f32.mxu0 0.0
    %282 = vmatmul.mubr.f32.gmra.mrb[0].mxu0 %v209
    %v283 = vpop.f32.mrb[0].mxu0
    %v284 = vadd.f32 %v197, %v283
    %v285 = vpop.f32.mrb[0].mxu0
    %v286 = vadd.f32 %v201, %v285
    %287 = vdwg.mxu0
    %290 = vrot.lane.b32.xlu0 %v278, 120
    %v291 = vpop.permute.xlu0 %290
    %292 = vrot.lane.b32.xlu0 %v284, 120
    %v293 = vpop.permute.xlu0 %292
    %294 = vrot.lane.b32.xlu0 %v278, 112
    %v295 = vpop.permute.xlu0 %294
    %296 = vrot.lane.b32.xlu0 %v284, 112
    %v297 = vpop.permute.xlu0 %296
    %298 = vrot.lane.b32.xlu0 %v278, 104
    %v299 = vpop.permute.xlu0 %298
    %300 = vrot.lane.b32.xlu0 %v284, 104
    %v301 = vpop.permute.xlu0 %300
    %302 = vrot.lane.b32.xlu0 %v278, 96
    %v303 = vpop.permute.xlu0 %302
    %304 = vrot.lane.b32.xlu0 %v284, 96
    %v305 = vpop.permute.xlu0 %304
    %306 = vrot.lane.b32.xlu0 %v278, 88
    %v307 = vpop.permute.xlu0 %306
    %308 = vrot.lane.b32.xlu0 %v284, 88
    %v309 = vpop.permute.xlu0 %308
    %310 = vrot.lane.b32.xlu0 %v278, 80
    %v311 = vpop.permute.xlu0 %310
    %312 = vrot.lane.b32.xlu0 %v284, 80
    %v313 = vpop.permute.xlu0 %312
    %314 = vrot.lane.b32.xlu0 %v278, 72
    %v315 = vpop.permute.xlu0 %314
    %316 = vrot.lane.b32.xlu0 %v284, 72
    %v317 = vpop.permute.xlu0 %316
    %320 = vrot.lane.b32.xlu0 %v280, 120
    %v321 = vpop.permute.xlu0 %320
    %322 = vrot.lane.b32.xlu0 %v286, 120
    %v323 = vpop.permute.xlu0 %322
    %326 = vrot.lane.b32.xlu0 %v280, 112
    %v327 = vpop.permute.xlu0 %326
    %328 = vrot.lane.b32.xlu0 %v286, 112
    %v329 = vpop.permute.xlu0 %328
    %332 = vrot.lane.b32.xlu0 %v280, 104
    %v333 = vpop.permute.xlu0 %332
    %334 = vrot.lane.b32.xlu0 %v286, 104
    %v335 = vpop.permute.xlu0 %334
    %338 = vrot.lane.b32.xlu0 %v280, 96
    %v339 = vpop.permute.xlu0 %338
    %340 = vrot.lane.b32.xlu0 %v286, 96
    %v341 = vpop.permute.xlu0 %340
    %344 = vrot.lane.b32.xlu0 %v280, 88
    %v345 = vpop.permute.xlu0 %344
    %346 = vrot.lane.b32.xlu0 %v286, 88
    %v347 = vpop.permute.xlu0 %346
    %350 = vrot.lane.b32.xlu0 %v280, 80
    %v351 = vpop.permute.xlu0 %350
    %352 = vrot.lane.b32.xlu0 %v286, 80
    %v353 = vpop.permute.xlu0 %352
    %356 = vrot.lane.b32.xlu0 %v280, 72
    %v357 = vpop.permute.xlu0 %356
    %358 = vrot.lane.b32.xlu0 %v286, 72
    %v359 = vpop.permute.xlu0 %358
    %v362 = vld [vmem:[#allocation7] sm:$0xff]
    %v363 = vld [vmem:[#allocation7 + $0x8] sm:$0xff]
    %v364 = vld [vmem:[%s6] sm:$0xff]
    %v365 = vld [vmem:[%s6 + $0x8] sm:$0xff]
    %v366 = vld [vmem:[%s6 + $0x10] sm:$0xff]
    %v367 = vld [vmem:[%s6 + $0x18] sm:$0xff]
    %v368 = vld [vmem:[%s6 + $0x20] sm:$0xff]
    %v369 = vld [vmem:[%s6 + $0x28] sm:$0xff]
    %v370 = vld [vmem:[%s6 + $0x30] sm:$0xff]
    %v371 = vld [vmem:[%s6 + $0x38] sm:$0xff]
    %v372 = vld [vmem:[%s7] sm:$0x1]
    %373 = vrot.lane.b32.xlu0 %v278, 64
    %v374 = vpop.permute.xlu0 %373
    %375 = vrot.lane.b32.xlu0 %v284, 64
    %v376 = vpop.permute.xlu0 %375
    %vm377 = vcmask 64512
    %v378 = vsel %vm377, %v278, 0
    %v380 = vsel %vm377, %v284, 0
    %v382 = vsel %vm377, %v374, 0
    %v384 = vsel %vm377, %v376, 0
    %386 = vmatprep.subr.mxu0 0.0
    %387 = vmatpush1.xpose.msra.mxu0 %v382
    %388 = vmatprep.subr.mxu0 0.0
    %389 = vmatpush1.xpose.msra.mxu0 %v384
    %390 = vmatprep.subr.mxu0 0.0
    %391 = vmatpush1.xpose.msra.mxu0 0.0
    %392 = vmatprep.subr.mxu0 0.0
    %393 = vmatpush1.xpose.msra.mxu0 0.0
    %394 = vmatprep.subr.mxu0 0.0
    %395 = vmatpush1.xpose.msra.mxu0 0.0
    %396 = vmatprep.subr.mxu0 0.0
    %397 = vmatpush1.xpose.msra.mxu0 0.0
    %398 = vmatprep.subr.mxu0 0.0
    %399 = vmatpush1.xpose.msra.mxu0 0.0
    %400 = vmatprep.subr.mxu0 0.0
    %401 = vmatpush1.xpose.msra.mxu0 0.0
    %402 = vmatprep.subr.mxu0 0.0
    %403 = vmatpush1.xpose.msra.mxu0 0.0
    %404 = vmatprep.subr.mxu0 0.0
    %405 = vmatpush1.xpose.msra.mxu0 0.0
    %406 = vmatprep.subr.mxu0 0.0
    %407 = vmatpush1.xpose.msra.mxu0 0.0
    %408 = vmatprep.subr.mxu0 0.0
    %409 = vmatpush1.xpose.msra.mxu0 0.0
    %410 = vmatprep.subr.mxu0 0.0
    %411 = vmatpush1.xpose.msra.mxu0 0.0
    %412 = vmatprep.subr.mxu0 0.0
    %413 = vmatpush1.xpose.msra.mxu0 0.0
    %414 = vmatprep.subr.mxu0 0.0
    %415 = vmatpush1.xpose.msra.mxu0 0.0
    %416 = vmatprep.subr.mxu0 0.0
    %417 = vmatpush1.xpose.msra.mxu0 0.0
    %418 = vmatprep.subr.mxu0 0.0
    %419 = vmatpush1.xpose.msra.mxu0 0.0
    %420 = vmatprep.subr.mxu0 0.0
    %421 = vmatpush1.xpose.msra.mxu0 0.0
    %422 = vmatprep.subr.mxu0 0.0
    %423 = vmatpush1.xpose.msra.mxu0 0.0
    %424 = vmatprep.subr.mxu0 0.0
    %425 = vmatpush1.xpose.msra.mxu0 0.0
    %426 = vmatprep.subr.mxu0 0.0
    %427 = vmatpush1.xpose.msra.mxu0 0.0
    %428 = vmatprep.subr.mxu0 0.0
    %429 = vmatpush1.xpose.msra.mxu0 0.0
    %430 = vmatprep.subr.mxu0 0.0
    %431 = vmatpush1.xpose.msra.mxu0 0.0
    %432 = vmatprep.subr.mxu0 0.0
    %433 = vmatpush1.xpose.msra.mxu0 0.0
    %434 = vmatprep.subr.mxu0 0.0
    %435 = vmatpush1.xpose.msra.mxu0 0.0
    %436 = vmatprep.subr.mxu0 0.0
    %437 = vmatpush1.xpose.msra.mxu0 0.0
    %438 = vmatprep.subr.mxu0 0.0
    %439 = vmatpush1.xpose.msra.mxu0 0.0
    %440 = vmatprep.subr.mxu0 0.0
    %441 = vmatpush1.xpose.msra.mxu0 0.0
    %442 = vmatprep.subr.mxu0 0.0
    %443 = vmatpush1.xpose.msra.mxu0 0.0
    %444 = vmatprep.subr.mxu0 0.0
    %445 = vmatpush1.xpose.msra.mxu0 0.0
    %446 = vmatprep.subr.mxu0 0.0
    %447 = vmatpush1.xpose.msra.mxu0 0.0
    %448 = vmatprep.subr.mxu0 0.0
    %449 = vmatpush1.xpose.msra.mxu0 0.0
    %450 = vmatprep.mubr.f32.mxu0 0.0
    %451 = vmatmul.mubr.f32.gmra.mrb[0].mxu0 %v378
    %v452 = vpop.f32.mrb[0].mxu0
    %v453 = vadd.f32 %v362, %v452
    %v454 = vpop.f32.mrb[0].mxu0
    %455 = vmatprep.mubr.f32.mxu0 0.0
    %456 = vmatmul.mubr.f32.gmra.mrb[0].mxu0 %v380
    %v457 = vpop.f32.mrb[0].mxu0
    %v458 = vadd.f32 %v363, %v457
    %v459 = vpop.f32.mrb[0].mxu0
    %460 = vdwg.mxu0
    %461 = vrot.lane.b32.xlu0 %v291, 64
    %v462 = vpop.permute.xlu0 %461
    %463 = vrot.lane.b32.xlu0 %v293, 64
    %v464 = vpop.permute.xlu0 %463
    %v465 = vsel %vm377, %v291, 0
    %v467 = vsel %vm377, %v293, 0
    %v469 = vsel %vm377, %v462, 0
    %v471 = vsel %vm377, %v464, 0
    %473 = vmatprep.subr.mxu0 0.0
    %474 = vmatpush1.xpose.msra.mxu0 %v469
    %475 = vmatprep.subr.mxu0 0.0
    %476 = vmatpush1.xpose.msra.mxu0 %v471
    %477 = vmatprep.subr.mxu0 0.0
    %478 = vmatpush1.xpose.msra.mxu0 0.0
    %479 = vmatprep.subr.mxu0 0.0
    %480 = vmatpush1.xpose.msra.mxu0 0.0
    %481 = vmatprep.subr.mxu0 0.0
    %482 = vmatpush1.xpose.msra.mxu0 0.0
    %483 = vmatprep.subr.mxu0 0.0
    %484 = vmatpush1.xpose.msra.mxu0 0.0
    %485 = vmatprep.subr.mxu0 0.0
    %486 = vmatpush1.xpose.msra.mxu0 0.0
    %487 = vmatprep.subr.mxu0 0.0
    %488 = vmatpush1.xpose.msra.mxu0 0.0
    %489 = vmatprep.subr.mxu0 0.0
    %490 = vmatpush1.xpose.msra.mxu0 0.0
    %491 = vmatprep.subr.mxu0 0.0
    %492 = vmatpush1.xpose.msra.mxu0 0.0
    %493 = vmatprep.subr.mxu0 0.0
    %494 = vmatpush1.xpose.msra.mxu0 0.0
    %495 = vmatprep.subr.mxu0 0.0
    %496 = vmatpush1.xpose.msra.mxu0 0.0
    %497 = vmatprep.subr.mxu0 0.0
    %498 = vmatpush1.xpose.msra.mxu0 0.0
    %499 = vmatprep.subr.mxu0 0.0
    %500 = vmatpush1.xpose.msra.mxu0 0.0
    %501 = vmatprep.subr.mxu0 0.0
    %502 = vmatpush1.xpose.msra.mxu0 0.0
    %503 = vmatprep.subr.mxu0 0.0
    %504 = vmatpush1.xpose.msra.mxu0 0.0
    %505 = vmatprep.subr.mxu0 0.0
    %506 = vmatpush1.xpose.msra.mxu0 0.0
    %507 = vmatprep.subr.mxu0 0.0
    %508 = vmatpush1.xpose.msra.mxu0 0.0
    %509 = vmatprep.subr.mxu0 0.0
    %510 = vmatpush1.xpose.msra.mxu0 0.0
    %511 = vmatprep.subr.mxu0 0.0
    %512 = vmatpush1.xpose.msra.mxu0 0.0
    %513 = vmatprep.subr.mxu0 0.0
    %514 = vmatpush1.xpose.msra.mxu0 0.0
    %515 = vmatprep.subr.mxu0 0.0
    %516 = vmatpush1.xpose.msra.mxu0 0.0
    %517 = vmatprep.subr.mxu0 0.0
    %518 = vmatpush1.xpose.msra.mxu0 0.0
    %519 = vmatprep.subr.mxu0 0.0
    %520 = vmatpush1.xpose.msra.mxu0 0.0
    %521 = vmatprep.subr.mxu0 0.0
    %522 = vmatpush1.xpose.msra.mxu0 0.0
    %523 = vmatprep.subr.mxu0 0.0
    %524 = vmatpush1.xpose.msra.mxu0 0.0
    %525 = vmatprep.subr.mxu0 0.0
    %526 = vmatpush1.xpose.msra.mxu0 0.0
    %527 = vmatprep.subr.mxu0 0.0
    %528 = vmatpush1.xpose.msra.mxu0 0.0
    %529 = vmatprep.subr.mxu0 0.0
    %530 = vmatpush1.xpose.msra.mxu0 0.0
    %531 = vmatprep.subr.mxu0 0.0
    %532 = vmatpush1.xpose.msra.mxu0 0.0
    %533 = vmatprep.subr.mxu0 0.0
    %534 = vmatpush1.xpose.msra.mxu0 0.0
    %535 = vmatprep.subr.mxu0 0.0
    %536 = vmatpush1.xpose.msra.mxu0 0.0
    %537 = vmatprep.mubr.f32.mxu0 0.0
    %538 = vmatmul.mubr.f32.gmra.mrb[0].mxu0 %v465
    %v539 = vpop.f32.mrb[0].mxu0
    %v540 = vadd.f32 %v362, %v539
    %v541 = vpop.f32.mrb[0].mxu0
    %542 = vmatprep.mubr.f32.mxu0 0.0
    %543 = vmatmul.mubr.f32.gmra.mrb[0].mxu0 %v467
    %v544 = vpop.f32.mrb[0].mxu0
    %v545 = vadd.f32 %v363, %v544
    %v546 = vpop.f32.mrb[0].mxu0
    %547 = vdwg.mxu0
    %548 = vrot.lane.b32.xlu0 %v295, 64
    %v549 = vpop.permute.xlu0 %548
    %550 = vrot.lane.b32.xlu0 %v297, 64
    %v551 = vpop.permute.xlu0 %550
    %v552 = vsel %vm377, %v295, 0
    %v554 = vsel %vm377, %v297, 0
    %v556 = vsel %vm377, %v549, 0
    %v558 = vsel %vm377, %v551, 0
    %560 = vmatprep.subr.mxu0 0.0
    %561 = vmatpush1.xpose.msra.mxu0 %v556
    %562 = vmatprep.subr.mxu0 0.0
    %563 = vmatpush1.xpose.msra.mxu0 %v558
    %564 = vmatprep.subr.mxu0 0.0
    %565 = vmatpush1.xpose.msra.mxu0 0.0
    %566 = vmatprep.subr.mxu0 0.0
    %567 = vmatpush1.xpose.msra.mxu0 0.0
    %568 = vmatprep.subr.mxu0 0.0
    %569 = vmatpush1.xpose.msra.mxu0 0.0
    %570 = vmatprep.subr.mxu0 0.0
    %571 = vmatpush1.xpose.msra.mxu0 0.0
    %572 = vmatprep.subr.mxu0 0.0
    %573 = vmatpush1.xpose.msra.mxu0 0.0
    %574 = vmatprep.subr.mxu0 0.0
    %575 = vmatpush1.xpose.msra.mxu0 0.0
    %576 = vmatprep.subr.mxu0 0.0
    %577 = vmatpush1.xpose.msra.mxu0 0.0
    %578 = vmatprep.subr.mxu0 0.0
    %579 = vmatpush1.xpose.msra.mxu0 0.0
    %580 = vmatprep.subr.mxu0 0.0
    %581 = vmatpush1.xpose.msra.mxu0 0.0
    %582 = vmatprep.subr.mxu0 0.0
    %583 = vmatpush1.xpose.msra.mxu0 0.0
    %584 = vmatprep.subr.mxu0 0.0
    %585 = vmatpush1.xpose.msra.mxu0 0.0
    %586 = vmatprep.subr.mxu0 0.0
    %587 = vmatpush1.xpose.msra.mxu0 0.0
    %588 = vmatprep.subr.mxu0 0.0
    %589 = vmatpush1.xpose.msra.mxu0 0.0
    %590 = vmatprep.subr.mxu0 0.0
    %591 = vmatpush1.xpose.msra.mxu0 0.0
    %592 = vmatprep.subr.mxu0 0.0
    %593 = vmatpush1.xpose.msra.mxu0 0.0
    %594 = vmatprep.subr.mxu0 0.0
    %595 = vmatpush1.xpose.msra.mxu0 0.0
    %596 = vmatprep.subr.mxu0 0.0
    %597 = vmatpush1.xpose.msra.mxu0 0.0
    %598 = vmatprep.subr.mxu0 0.0
    %599 = vmatpush1.xpose.msra.mxu0 0.0
    %600 = vmatprep.subr.mxu0 0.0
    %601 = vmatpush1.xpose.msra.mxu0 0.0
    %602 = vmatprep.subr.mxu0 0.0
    %603 = vmatpush1.xpose.msra.mxu0 0.0
    %604 = vmatprep.subr.mxu0 0.0
    %605 = vmatpush1.xpose.msra.mxu0 0.0
    %606 = vmatprep.subr.mxu0 0.0
    %607 = vmatpush1.xpose.msra.mxu0 0.0
    %608 = vmatprep.subr.mxu0 0.0
    %609 = vmatpush1.xpose.msra.mxu0 0.0
    %610 = vmatprep.subr.mxu0 0.0
    %611 = vmatpush1.xpose.msra.mxu0 0.0
    %612 = vmatprep.subr.mxu0 0.0
    %613 = vmatpush1.xpose.msra.mxu0 0.0
    %614 = vmatprep.subr.mxu0 0.0
    %615 = vmatpush1.xpose.msra.mxu0 0.0
    %616 = vmatprep.subr.mxu0 0.0
    %617 = vmatpush1.xpose.msra.mxu0 0.0
    %618 = vmatprep.subr.mxu0 0.0
    %619 = vmatpush1.xpose.msra.mxu0 0.0
    %620 = vmatprep.subr.mxu0 0.0
    %621 = vmatpush1.xpose.msra.mxu0 0.0
    %622 = vmatprep.subr.mxu0 0.0
    %623 = vmatpush1.xpose.msra.mxu0 0.0
    %624 = vmatprep.mubr.f32.mxu0 0.0
    %625 = vmatmul.mubr.f32.gmra.mrb[0].mxu0 %v552
    %v626 = vpop.f32.mrb[0].mxu0
    %v627 = vadd.f32 %v362, %v626
    %v628 = vpop.f32.mrb[0].mxu0
    %629 = vmatprep.mubr.f32.mxu0 0.0
    %630 = vmatmul.mubr.f32.gmra.mrb[0].mxu0 %v554
    %v631 = vpop.f32.mrb[0].mxu0
    %v632 = vadd.f32 %v363, %v631
    %v633 = vpop.f32.mrb[0].mxu0
    %634 = vdwg.mxu0
    %635 = vrot.lane.b32.xlu0 %v299, 64
    %v636 = vpop.permute.xlu0 %635
    %637 = vrot.lane.b32.xlu0 %v301, 64
    %v638 = vpop.permute.xlu0 %637
    %v639 = vsel %vm377, %v299, 0
    %v641 = vsel %vm377, %v301, 0
    %v643 = vsel %vm377, %v636, 0
    %v645 = vsel %vm377, %v638, 0
    %647 = vmatprep.subr.mxu0 0.0
    %648 = vmatpush1.xpose.msra.mxu0 %v643
    %649 = vmatprep.subr.mxu0 0.0
    %650 = vmatpush1.xpose.msra.mxu0 %v645
    %651 = vmatprep.subr.mxu0 0.0
    %652 = vmatpush1.xpose.msra.mxu0 0.0
    %653 = vmatprep.subr.mxu0 0.0
    %654 = vmatpush1.xpose.msra.mxu0 0.0
    %655 = vmatprep.subr.mxu0 0.0
    %656 = vmatpush1.xpose.msra.mxu0 0.0
    %657 = vmatprep.subr.mxu0 0.0
    %658 = vmatpush1.xpose.msra.mxu0 0.0
    %659 = vmatprep.subr.mxu0 0.0
    %660 = vmatpush1.xpose.msra.mxu0 0.0
    %661 = vmatprep.subr.mxu0 0.0
    %662 = vmatpush1.xpose.msra.mxu0 0.0
    %663 = vmatprep.subr.mxu0 0.0
    %664 = vmatpush1.xpose.msra.mxu0 0.0
    %665 = vmatprep.subr.mxu0 0.0
    %666 = vmatpush1.xpose.msra.mxu0 0.0
    %667 = vmatprep.subr.mxu0 0.0
    %668 = vmatpush1.xpose.msra.mxu0 0.0
    %669 = vmatprep.subr.mxu0 0.0
    %670 = vmatpush1.xpose.msra.mxu0 0.0
    %671 = vmatprep.subr.mxu0 0.0
    %672 = vmatpush1.xpose.msra.mxu0 0.0
    %673 = vmatprep.subr.mxu0 0.0
    %674 = vmatpush1.xpose.msra.mxu0 0.0
    %675 = vmatprep.subr.mxu0 0.0
    %676 = vmatpush1.xpose.msra.mxu0 0.0
    %677 = vmatprep.subr.mxu0 0.0
    %678 = vmatpush1.xpose.msra.mxu0 0.0
    %679 = vmatprep.subr.mxu0 0.0
    %680 = vmatpush1.xpose.msra.mxu0 0.0
    %681 = vmatprep.subr.mxu0 0.0
    %682 = vmatpush1.xpose.msra.mxu0 0.0
    %683 = vmatprep.subr.mxu0 0.0
    %684 = vmatpush1.xpose.msra.mxu0 0.0
    %685 = vmatprep.subr.mxu0 0.0
    %686 = vmatpush1.xpose.msra.mxu0 0.0
    %687 = vmatprep.subr.mxu0 0.0
    %688 = vmatpush1.xpose.msra.mxu0 0.0
    %689 = vmatprep.subr.mxu0 0.0
    %690 = vmatpush1.xpose.msra.mxu0 0.0
    %691 = vmatprep.subr.mxu0 0.0
    %692 = vmatpush1.xpose.msra.mxu0 0.0
    %693 = vmatprep.subr.mxu0 0.0
    %694 = vmatpush1.xpose.msra.mxu0 0.0
    %695 = vmatprep.subr.mxu0 0.0
    %696 = vmatpush1.xpose.msra.mxu0 0.0
    %697 = vmatprep.subr.mxu0 0.0
    %698 = vmatpush1.xpose.msra.mxu0 0.0
    %699 = vmatprep.subr.mxu0 0.0
    %700 = vmatpush1.xpose.msra.mxu0 0.0
    %701 = vmatprep.subr.mxu0 0.0
    %702 = vmatpush1.xpose.msra.mxu0 0.0
    %703 = vmatprep.subr.mxu0 0.0
    %704 = vmatpush1.xpose.msra.mxu0 0.0
    %705 = vmatprep.subr.mxu0 0.0
    %706 = vmatpush1.xpose.msra.mxu0 0.0
    %707 = vmatprep.subr.mxu0 0.0
    %708 = vmatpush1.xpose.msra.mxu0 0.0
    %709 = vmatprep.subr.mxu0 0.0
    %710 = vmatpush1.xpose.msra.mxu0 0.0
    %711 = vmatprep.mubr.f32.mxu0 0.0
    %712 = vmatmul.mubr.f32.gmra.mrb[0].mxu0 %v639
    %v713 = vpop.f32.mrb[0].mxu0
    %v714 = vadd.f32 %v362, %v713
    %v715 = vpop.f32.mrb[0].mxu0
    %716 = vmatprep.mubr.f32.mxu0 0.0
    %717 = vmatmul.mubr.f32.gmra.mrb[0].mxu0 %v641
    %v718 = vpop.f32.mrb[0].mxu0
    %v719 = vadd.f32 %v363, %v718
    %v720 = vpop.f32.mrb[0].mxu0
    %721 = vdwg.mxu0
    %722 = vrot.lane.b32.xlu0 %v303, 64
    %v723 = vpop.permute.xlu0 %722
    %724 = vrot.lane.b32.xlu0 %v305, 64
    %v725 = vpop.permute.xlu0 %724
    %v726 = vsel %vm377, %v303, 0
    %v728 = vsel %vm377, %v305, 0
    %v730 = vsel %vm377, %v723, 0
    %v732 = vsel %vm377, %v725, 0
    %734 = vmatprep.subr.mxu0 0.0
    %735 = vmatpush1.xpose.msra.mxu0 %v730
    %736 = vmatprep.subr.mxu0 0.0
    %737 = vmatpush1.xpose.msra.mxu0 %v732
    %738 = vmatprep.subr.mxu0 0.0
    %739 = vmatpush1.xpose.msra.mxu0 0.0
    %740 = vmatprep.subr.mxu0 0.0
    %741 = vmatpush1.xpose.msra.mxu0 0.0
    %742 = vmatprep.subr.mxu0 0.0
    %743 = vmatpush1.xpose.msra.mxu0 0.0
    %744 = vmatprep.subr.mxu0 0.0
    %745 = vmatpush1.xpose.msra.mxu0 0.0
    %746 = vmatprep.subr.mxu0 0.0
    %747 = vmatpush1.xpose.msra.mxu0 0.0
    %748 = vmatprep.subr.mxu0 0.0
    %749 = vmatpush1.xpose.msra.mxu0 0.0
    %750 = vmatprep.subr.mxu0 0.0
    %751 = vmatpush1.xpose.msra.mxu0 0.0
    %752 = vmatprep.subr.mxu0 0.0
    %753 = vmatpush1.xpose.msra.mxu0 0.0
    %754 = vmatprep.subr.mxu0 0.0
    %755 = vmatpush1.xpose.msra.mxu0 0.0
    %756 = vmatprep.subr.mxu0 0.0
    %757 = vmatpush1.xpose.msra.mxu0 0.0
    %758 = vmatprep.subr.mxu0 0.0
    %759 = vmatpush1.xpose.msra.mxu0 0.0
    %760 = vmatprep.subr.mxu0 0.0
    %761 = vmatpush1.xpose.msra.mxu0 0.0
    %762 = vmatprep.subr.mxu0 0.0
    %763 = vmatpush1.xpose.msra.mxu0 0.0
    %764 = vmatprep.subr.mxu0 0.0
    %765 = vmatpush1.xpose.msra.mxu0 0.0
    %766 = vmatprep.subr.mxu0 0.0
    %767 = vmatpush1.xpose.msra.mxu0 0.0
    %768 = vmatprep.subr.mxu0 0.0
    %769 = vmatpush1.xpose.msra.mxu0 0.0
    %770 = vmatprep.subr.mxu0 0.0
    %771 = vmatpush1.xpose.msra.mxu0 0.0
    %772 = vmatprep.subr.mxu0 0.0
    %773 = vmatpush1.xpose.msra.mxu0 0.0
    %774 = vmatprep.subr.mxu0 0.0
    %775 = vmatpush1.xpose.msra.mxu0 0.0
    %776 = vmatprep.subr.mxu0 0.0
    %777 = vmatpush1.xpose.msra.mxu0 0.0
    %778 = vmatprep.subr.mxu0 0.0
    %779 = vmatpush1.xpose.msra.mxu0 0.0
    %780 = vmatprep.subr.mxu0 0.0
    %781 = vmatpush1.xpose.msra.mxu0 0.0
    %782 = vmatprep.subr.mxu0 0.0
    %783 = vmatpush1.xpose.msra.mxu0 0.0
    %784 = vmatprep.subr.mxu0 0.0
    %785 = vmatpush1.xpose.msra.mxu0 0.0
    %786 = vmatprep.subr.mxu0 0.0
    %787 = vmatpush1.xpose.msra.mxu0 0.0
    %788 = vmatprep.subr.mxu0 0.0
    %789 = vmatpush1.xpose.msra.mxu0 0.0
    %790 = vmatprep.subr.mxu0 0.0
    %791 = vmatpush1.xpose.msra.mxu0 0.0
    %792 = vmatprep.subr.mxu0 0.0
    %793 = vmatpush1.xpose.msra.mxu0 0.0
    %794 = vmatprep.subr.mxu0 0.0
    %795 = vmatpush1.xpose.msra.mxu0 0.0
    %796 = vmatprep.subr.mxu0 0.0
    %797 = vmatpush1.xpose.msra.mxu0 0.0
    %798 = vmatprep.mubr.f32.mxu0 0.0
    %799 = vmatmul.mubr.f32.gmra.mrb[0].mxu0 %v726
    %v800 = vpop.f32.mrb[0].mxu0
    %v801 = vadd.f32 %v362, %v800
    %v802 = vpop.f32.mrb[0].mxu0
    %803 = vmatprep.mubr.f32.mxu0 0.0
    %804 = vmatmul.mubr.f32.gmra.mrb[0].mxu0 %v728
    %v805 = vpop.f32.mrb[0].mxu0
    %v806 = vadd.f32 %v363, %v805
    %v807 = vpop.f32.mrb[0].mxu0
    %808 = vdwg.mxu0
    %809 = vrot.lane.b32.xlu0 %v307, 64
    %v810 = vpop.permute.xlu0 %809
    %811 = vrot.lane.b32.xlu0 %v309, 64
    %v812 = vpop.permute.xlu0 %811
    %v813 = vsel %vm377, %v307, 0
    %v815 = vsel %vm377, %v309, 0
    %v817 = vsel %vm377, %v810, 0
    %v819 = vsel %vm377, %v812, 0
    %821 = vmatprep.subr.mxu0 0.0
    %822 = vmatpush1.xpose.msra.mxu0 %v817
    %823 = vmatprep.subr.mxu0 0.0
    %824 = vmatpush1.xpose.msra.mxu0 %v819
    %825 = vmatprep.subr.mxu0 0.0
    %826 = vmatpush1.xpose.msra.mxu0 0.0
    %827 = vmatprep.subr.mxu0 0.0
    %828 = vmatpush1.xpose.msra.mxu0 0.0
    %829 = vmatprep.subr.mxu0 0.0
    %830 = vmatpush1.xpose.msra.mxu0 0.0
    %831 = vmatprep.subr.mxu0 0.0
    %832 = vmatpush1.xpose.msra.mxu0 0.0
    %833 = vmatprep.subr.mxu0 0.0
    %834 = vmatpush1.xpose.msra.mxu0 0.0
    %835 = vmatprep.subr.mxu0 0.0
    %836 = vmatpush1.xpose.msra.mxu0 0.0
    %837 = vmatprep.subr.mxu0 0.0
    %838 = vmatpush1.xpose.msra.mxu0 0.0
    %839 = vmatprep.subr.mxu0 0.0
    %840 = vmatpush1.xpose.msra.mxu0 0.0
    %841 = vmatprep.subr.mxu0 0.0
    %842 = vmatpush1.xpose.msra.mxu0 0.0
    %843 = vmatprep.subr.mxu0 0.0
    %844 = vmatpush1.xpose.msra.mxu0 0.0
    %845 = vmatprep.subr.mxu0 0.0
    %846 = vmatpush1.xpose.msra.mxu0 0.0
    %847 = vmatprep.subr.mxu0 0.0
    %848 = vmatpush1.xpose.msra.mxu0 0.0
    %849 = vmatprep.subr.mxu0 0.0
    %850 = vmatpush1.xpose.msra.mxu0 0.0
    %851 = vmatprep.subr.mxu0 0.0
    %852 = vmatpush1.xpose.msra.mxu0 0.0
    %853 = vmatprep.subr.mxu0 0.0
    %854 = vmatpush1.xpose.msra.mxu0 0.0
    %855 = vmatprep.subr.mxu0 0.0
    %856 = vmatpush1.xpose.msra.mxu0 0.0
    %857 = vmatprep.subr.mxu0 0.0
    %858 = vmatpush1.xpose.msra.mxu0 0.0
    %859 = vmatprep.subr.mxu0 0.0
    %860 = vmatpush1.xpose.msra.mxu0 0.0
    %861 = vmatprep.subr.mxu0 0.0
    %862 = vmatpush1.xpose.msra.mxu0 0.0
    %863 = vmatprep.subr.mxu0 0.0
    %864 = vmatpush1.xpose.msra.mxu0 0.0
    %865 = vmatprep.subr.mxu0 0.0
    %866 = vmatpush1.xpose.msra.mxu0 0.0
    %867 = vmatprep.subr.mxu0 0.0
    %868 = vmatpush1.xpose.msra.mxu0 0.0
    %869 = vmatprep.subr.mxu0 0.0
    %870 = vmatpush1.xpose.msra.mxu0 0.0
    %871 = vmatprep.subr.mxu0 0.0
    %872 = vmatpush1.xpose.msra.mxu0 0.0
    %873 = vmatprep.subr.mxu0 0.0
    %874 = vmatpush1.xpose.msra.mxu0 0.0
    %875 = vmatprep.subr.mxu0 0.0
    %876 = vmatpush1.xpose.msra.mxu0 0.0
    %877 = vmatprep.subr.mxu0 0.0
    %878 = vmatpush1.xpose.msra.mxu0 0.0
    %879 = vmatprep.subr.mxu0 0.0
    %880 = vmatpush1.xpose.msra.mxu0 0.0
    %881 = vmatprep.subr.mxu0 0.0
    %882 = vmatpush1.xpose.msra.mxu0 0.0
    %883 = vmatprep.subr.mxu0 0.0
    %884 = vmatpush1.xpose.msra.mxu0 0.0
    %885 = vmatprep.mubr.f32.mxu0 0.0
    %886 = vmatmul.mubr.f32.gmra.mrb[0].mxu0 %v813
    %v887 = vpop.f32.mrb[0].mxu0
    %v888 = vadd.f32 %v362, %v887
    %v889 = vpop.f32.mrb[0].mxu0
    %890 = vmatprep.mubr.f32.mxu0 0.0
    %891 = vmatmul.mubr.f32.gmra.mrb[0].mxu0 %v815
    %v892 = vpop.f32.mrb[0].mxu0
    %v893 = vadd.f32 %v363, %v892
    %v894 = vpop.f32.mrb[0].mxu0
    %895 = vdwg.mxu0
    %896 = vrot.lane.b32.xlu0 %v311, 64
    %v897 = vpop.permute.xlu0 %896
    %898 = vrot.lane.b32.xlu0 %v313, 64
    %v899 = vpop.permute.xlu0 %898
    %v900 = vsel %vm377, %v311, 0
    %v902 = vsel %vm377, %v313, 0
    %v904 = vsel %vm377, %v897, 0
    %v906 = vsel %vm377, %v899, 0
    %908 = vmatprep.subr.mxu0 0.0
    %909 = vmatpush1.xpose.msra.mxu0 %v904
    %910 = vmatprep.subr.mxu0 0.0
    %911 = vmatpush1.xpose.msra.mxu0 %v906
    %912 = vmatprep.subr.mxu0 0.0
    %913 = vmatpush1.xpose.msra.mxu0 0.0
    %914 = vmatprep.subr.mxu0 0.0
    %915 = vmatpush1.xpose.msra.mxu0 0.0
    %916 = vmatprep.subr.mxu0 0.0
    %917 = vmatpush1.xpose.msra.mxu0 0.0
    %918 = vmatprep.subr.mxu0 0.0
    %919 = vmatpush1.xpose.msra.mxu0 0.0
    %920 = vmatprep.subr.mxu0 0.0
    %921 = vmatpush1.xpose.msra.mxu0 0.0
    %922 = vmatprep.subr.mxu0 0.0
    %923 = vmatpush1.xpose.msra.mxu0 0.0
    %924 = vmatprep.subr.mxu0 0.0
    %925 = vmatpush1.xpose.msra.mxu0 0.0
    %926 = vmatprep.subr.mxu0 0.0
    %927 = vmatpush1.xpose.msra.mxu0 0.0
    %928 = vmatprep.subr.mxu0 0.0
    %929 = vmatpush1.xpose.msra.mxu0 0.0
    %930 = vmatprep.subr.mxu0 0.0
    %931 = vmatpush1.xpose.msra.mxu0 0.0
    %932 = vmatprep.subr.mxu0 0.0
    %933 = vmatpush1.xpose.msra.mxu0 0.0
    %934 = vmatprep.subr.mxu0 0.0
    %935 = vmatpush1.xpose.msra.mxu0 0.0
    %936 = vmatprep.subr.mxu0 0.0
    %937 = vmatpush1.xpose.msra.mxu0 0.0
    %938 = vmatprep.subr.mxu0 0.0
    %939 = vmatpush1.xpose.msra.mxu0 0.0
    %940 = vmatprep.subr.mxu0 0.0
    %941 = vmatpush1.xpose.msra.mxu0 0.0
    %942 = vmatprep.subr.mxu0 0.0
    %943 = vmatpush1.xpose.msra.mxu0 0.0
    %944 = vmatprep.subr.mxu0 0.0
    %945 = vmatpush1.xpose.msra.mxu0 0.0
    %946 = vmatprep.subr.mxu0 0.0
    %947 = vmatpush1.xpose.msra.mxu0 0.0
    %948 = vmatprep.subr.mxu0 0.0
    %949 = vmatpush1.xpose.msra.mxu0 0.0
    %950 = vmatprep.subr.mxu0 0.0
    %951 = vmatpush1.xpose.msra.mxu0 0.0
    %952 = vmatprep.subr.mxu0 0.0
    %953 = vmatpush1.xpose.msra.mxu0 0.0
    %954 = vmatprep.subr.mxu0 0.0
    %955 = vmatpush1.xpose.msra.mxu0 0.0
    %956 = vmatprep.subr.mxu0 0.0
    %957 = vmatpush1.xpose.msra.mxu0 0.0
    %958 = vmatprep.subr.mxu0 0.0
    %959 = vmatpush1.xpose.msra.mxu0 0.0
    %960 = vmatprep.subr.mxu0 0.0
    %961 = vmatpush1.xpose.msra.mxu0 0.0
    %962 = vmatprep.subr.mxu0 0.0
    %963 = vmatpush1.xpose.msra.mxu0 0.0
    %964 = vmatprep.subr.mxu0 0.0
    %965 = vmatpush1.xpose.msra.mxu0 0.0
    %966 = vmatprep.subr.mxu0 0.0
    %967 = vmatpush1.xpose.msra.mxu0 0.0
    %968 = vmatprep.subr.mxu0 0.0
    %969 = vmatpush1.xpose.msra.mxu0 0.0
    %970 = vmatprep.subr.mxu0 0.0
    %971 = vmatpush1.xpose.msra.mxu0 0.0
    %972 = vmatprep.mubr.f32.mxu0 0.0
    %973 = vmatmul.mubr.f32.gmra.mrb[0].mxu0 %v900
    %v974 = vpop.f32.mrb[0].mxu0
    %v975 = vadd.f32 %v362, %v974
    %v976 = vpop.f32.mrb[0].mxu0
    %977 = vmatprep.mubr.f32.mxu0 0.0
    %978 = vmatmul.mubr.f32.gmra.mrb[0].mxu0 %v902
    %v979 = vpop.f32.mrb[0].mxu0
    %v980 = vadd.f32 %v363, %v979
    %v981 = vpop.f32.mrb[0].mxu0
    %982 = vdwg.mxu0
    %983 = vrot.lane.b32.xlu0 %v315, 64
    %v984 = vpop.permute.xlu0 %983
    %985 = vrot.lane.b32.xlu0 %v317, 64
    %v986 = vpop.permute.xlu0 %985
    %v987 = vsel %vm377, %v315, 0
    %v989 = vsel %vm377, %v317, 0
    %v991 = vsel %vm377, %v984, 0
    %v993 = vsel %vm377, %v986, 0
    %995 = vmatprep.subr.mxu0 0.0
    %996 = vmatpush1.xpose.msra.mxu0 %v991
    %997 = vmatprep.subr.mxu0 0.0
    %998 = vmatpush1.xpose.msra.mxu0 %v993
    %999 = vmatprep.subr.mxu0 0.0
    %1000 = vmatpush1.xpose.msra.mxu0 0.0
    %1001 = vmatprep.subr.mxu0 0.0
    %1002 = vmatpush1.xpose.msra.mxu0 0.0
    %1003 = vmatprep.subr.mxu0 0.0
    %1004 = vmatpush1.xpose.msra.mxu0 0.0
    %1005 = vmatprep.subr.mxu0 0.0
    %1006 = vmatpush1.xpose.msra.mxu0 0.0
    %1007 = vmatprep.subr.mxu0 0.0
    %1008 = vmatpush1.xpose.msra.mxu0 0.0
    %1009 = vmatprep.subr.mxu0 0.0
    %1010 = vmatpush1.xpose.msra.mxu0 0.0
    %1011 = vmatprep.subr.mxu0 0.0
    %1012 = vmatpush1.xpose.msra.mxu0 0.0
    %1013 = vmatprep.subr.mxu0 0.0
    %1014 = vmatpush1.xpose.msra.mxu0 0.0
    %1015 = vmatprep.subr.mxu0 0.0
    %1016 = vmatpush1.xpose.msra.mxu0 0.0
    %1017 = vmatprep.subr.mxu0 0.0
    %1018 = vmatpush1.xpose.msra.mxu0 0.0
    %1019 = vmatprep.subr.mxu0 0.0
    %1020 = vmatpush1.xpose.msra.mxu0 0.0
    %1021 = vmatprep.subr.mxu0 0.0
    %1022 = vmatpush1.xpose.msra.mxu0 0.0
    %1023 = vmatprep.subr.mxu0 0.0
    %1024 = vmatpush1.xpose.msra.mxu0 0.0
    %1025 = vmatprep.subr.mxu0 0.0
    %1026 = vmatpush1.xpose.msra.mxu0 0.0
    %1027 = vmatprep.subr.mxu0 0.0
    %1028 = vmatpush1.xpose.msra.mxu0 0.0
    %1029 = vmatprep.subr.mxu0 0.0
    %1030 = vmatpush1.xpose.msra.mxu0 0.0
    %1031 = vmatprep.subr.mxu0 0.0
    %1032 = vmatpush1.xpose.msra.mxu0 0.0
    %1033 = vmatprep.subr.mxu0 0.0
    %1034 = vmatpush1.xpose.msra.mxu0 0.0
    %1035 = vmatprep.subr.mxu0 0.0
    %1036 = vmatpush1.xpose.msra.mxu0 0.0
    %1037 = vmatprep.subr.mxu0 0.0
    %1038 = vmatpush1.xpose.msra.mxu0 0.0
    %1039 = vmatprep.subr.mxu0 0.0
    %1040 = vmatpush1.xpose.msra.mxu0 0.0
    %1041 = vmatprep.subr.mxu0 0.0
    %1042 = vmatpush1.xpose.msra.mxu0 0.0
    %1043 = vmatprep.subr.mxu0 0.0
    %1044 = vmatpush1.xpose.msra.mxu0 0.0
    %1045 = vmatprep.subr.mxu0 0.0
    %1046 = vmatpush1.xpose.msra.mxu0 0.0
    %1047 = vmatprep.subr.mxu0 0.0
    %1048 = vmatpush1.xpose.msra.mxu0 0.0
    %1049 = vmatprep.subr.mxu0 0.0
    %1050 = vmatpush1.xpose.msra.mxu0 0.0
    %1051 = vmatprep.subr.mxu0 0.0
    %1052 = vmatpush1.xpose.msra.mxu0 0.0
    %1053 = vmatprep.subr.mxu0 0.0
    %1054 = vmatpush1.xpose.msra.mxu0 0.0
    %1055 = vmatprep.subr.mxu0 0.0
    %1056 = vmatpush1.xpose.msra.mxu0 0.0
    %1057 = vmatprep.subr.mxu0 0.0
    %1058 = vmatpush1.xpose.msra.mxu0 0.0
    %1059 = vmatprep.mubr.f32.mxu0 0.0
    %1060 = vmatmul.mubr.f32.gmra.mrb[0].mxu0 %v987
    %v1061 = vpop.f32.mrb[0].mxu0
    %v1062 = vadd.f32 %v362, %v1061
    %v1063 = vpop.f32.mrb[0].mxu0
    %1064 = vmatprep.mubr.f32.mxu0 0.0
    %1065 = vmatmul.mubr.f32.gmra.mrb[0].mxu0 %v989
    %v1066 = vpop.f32.mrb[0].mxu0
    %v1067 = vadd.f32 %v363, %v1066
    %v1068 = vpop.f32.mrb[0].mxu0
    %1069 = vdwg.mxu0
    %vm1070 = vcmask 130048
    %v1071 = vsel %vm1070, %v453, -inf
    %1072 = vmax.xlane.f32.xlu0 %v1071
    %v1073 = vpop.xlane.xlu0 %1072
    %v1074 = vsel %vm1070, %v458, -inf
    %1075 = vmax.xlane.f32.xlu0 %v1074
    %v1076 = vpop.xlane.xlu0 %1075
    %v1077 = vsel %vm1070, %v540, -inf
    %1078 = vmax.xlane.f32.xlu0 %v1077
    %v1079 = vpop.xlane.xlu0 %1078
    %v1080 = vsel %vm1070, %v545, -inf
    %1081 = vmax.xlane.f32.xlu0 %v1080
    %v1082 = vpop.xlane.xlu0 %1081
    %v1083 = vsel %vm1070, %v627, -inf
    %1084 = vmax.xlane.f32.xlu0 %v1083
    %v1085 = vpop.xlane.xlu0 %1084
    %v1086 = vsel %vm1070, %v632, -inf
    %1087 = vmax.xlane.f32.xlu0 %v1086
    %v1088 = vpop.xlane.xlu0 %1087
    %v1089 = vsel %vm1070, %v714, -inf
    %1090 = vmax.xlane.f32.xlu0 %v1089
    %v1091 = vpop.xlane.xlu0 %1090
    %v1092 = vsel %vm1070, %v719, -inf
    %1093 = vmax.xlane.f32.xlu0 %v1092
    %v1094 = vpop.xlane.xlu0 %1093
    %v1095 = vsel %vm1070, %v801, -inf
    %1096 = vmax.xlane.f32.xlu0 %v1095
    %v1097 = vpop.xlane.xlu0 %1096
    %v1098 = vsel %vm1070, %v806, -inf
    %1099 = vmax.xlane.f32.xlu0 %v1098
    %v1100 = vpop.xlane.xlu0 %1099
    %v1101 = vsel %vm1070, %v888, -inf
    %1102 = vmax.xlane.f32.xlu0 %v1101
    %v1103 = vpop.xlane.xlu0 %1102
    %v1104 = vsel %vm1070, %v893, -inf
    %1105 = vmax.xlane.f32.xlu0 %v1104
    %v1106 = vpop.xlane.xlu0 %1105
    %v1107 = vsel %vm1070, %v975, -inf
    %1108 = vmax.xlane.f32.xlu0 %v1107
    %v1109 = vpop.xlane.xlu0 %1108
    %v1110 = vsel %vm1070, %v980, -inf
    %1111 = vmax.xlane.f32.xlu0 %v1110
    %v1112 = vpop.xlane.xlu0 %1111
    %v1113 = vsel %vm1070, %v1062, -inf
    %1114 = vmax.xlane.f32.xlu0 %v1113
    %v1115 = vpop.xlane.xlu0 %1114
    %v1116 = vsel %vm1070, %v1067, -inf
    %1117 = vmax.xlane.f32.xlu0 %v1116
    %v1118 = vpop.xlane.xlu0 %1117
    %v1119 = vsub.f32 %v453, %v1073
    %v1120 = vsub.f32 %v458, %v1076
    %v1121 = vsub.f32 %v540, %v1079
    %v1122 = vsub.f32 %v545, %v1082
    %v1123 = vsub.f32 %v627, %v1085
    %v1124 = vsub.f32 %v632, %v1088
    %v1125 = vsub.f32 %v714, %v1091
    %v1126 = vsub.f32 %v719, %v1094
    %v1127 = vsub.f32 %v801, %v1097
    %v1128 = vsub.f32 %v806, %v1100
    %v1129 = vsub.f32 %v888, %v1103
    %v1130 = vsub.f32 %v893, %v1106
    %v1131 = vsub.f32 %v975, %v1109
    %v1132 = vsub.f32 %v980, %v1112
    %v1133 = vsub.f32 %v1062, %v1115
    %v1134 = vsub.f32 %v1067, %v1118
    %v1135 = vmul.f32 %v1119, 1.442695
    %v1136 = vpow.pop %v1135
    %v1137 = vmul.f32 %v1120, 1.442695
    %v1138 = vpow.pop %v1137
    %v1139 = vmul.f32 %v1121, 1.442695
    %v1140 = vpow.pop %v1139
    %v1141 = vmul.f32 %v1122, 1.442695
    %v1142 = vpow.pop %v1141
    %v1143 = vmul.f32 %v1123, 1.442695
    %v1144 = vpow.pop %v1143
    %v1145 = vmul.f32 %v1124, 1.442695
    %v1146 = vpow.pop %v1145
    %v1147 = vmul.f32 %v1125, 1.442695
    %v1148 = vpow.pop %v1147
    %v1149 = vmul.f32 %v1126, 1.442695
    %v1150 = vpow.pop %v1149
    %v1151 = vmul.f32 %v1127, 1.442695
    %v1152 = vpow.pop %v1151
    %v1153 = vmul.f32 %v1128, 1.442695
    %v1154 = vpow.pop %v1153
    %v1155 = vmul.f32 %v1129, 1.442695
    %v1156 = vpow.pop %v1155
    %v1157 = vmul.f32 %v1130, 1.442695
    %v1158 = vpow.pop %v1157
    %v1159 = vmul.f32 %v1131, 1.442695
    %v1160 = vpow.pop %v1159
    %v1161 = vmul.f32 %v1132, 1.442695
    %v1162 = vpow.pop %v1161
    %v1163 = vmul.f32 %v1133, 1.442695
    %v1164 = vpow.pop %v1163
    %v1165 = vmul.f32 %v1134, 1.442695
    %v1166 = vpow.pop %v1165
    %v1167 = vsel %vm1070, %v1136, 0.0
    %1168 = vadd.xlane.f32.xlu0 %v1167
    %v1169 = vpop.xlane.xlu0 %1168
    %v1170 = vsel %vm1070, %v1138, 0.0
    %1171 = vadd.xlane.f32.xlu0 %v1170
    %v1172 = vpop.xlane.xlu0 %1171
    %v1173 = vsel %vm1070, %v1140, 0.0
    %1174 = vadd.xlane.f32.xlu0 %v1173
    %v1175 = vpop.xlane.xlu0 %1174
    %v1176 = vsel %vm1070, %v1142, 0.0
    %1177 = vadd.xlane.f32.xlu0 %v1176
    %v1178 = vpop.xlane.xlu0 %1177
    %v1179 = vsel %vm1070, %v1144, 0.0
    %1180 = vadd.xlane.f32.xlu0 %v1179
    %v1181 = vpop.xlane.xlu0 %1180
    %v1182 = vsel %vm1070, %v1146, 0.0
    %1183 = vadd.xlane.f32.xlu0 %v1182
    %v1184 = vpop.xlane.xlu0 %1183
    %v1185 = vsel %vm1070, %v1148, 0.0
    %1186 = vadd.xlane.f32.xlu0 %v1185
    %v1187 = vpop.xlane.xlu0 %1186
    %v1188 = vsel %vm1070, %v1150, 0.0
    %1189 = vadd.xlane.f32.xlu0 %v1188
    %v1190 = vpop.xlane.xlu0 %1189
    %v1191 = vsel %vm1070, %v1152, 0.0
    %1192 = vadd.xlane.f32.xlu0 %v1191
    %v1193 = vpop.xlane.xlu0 %1192
    %v1194 = vsel %vm1070, %v1154, 0.0
    %1195 = vadd.xlane.f32.xlu0 %v1194
    %v1196 = vpop.xlane.xlu0 %1195
    %v1197 = vsel %vm1070, %v1156, 0.0
    %1198 = vadd.xlane.f32.xlu0 %v1197
    %v1199 = vpop.xlane.xlu0 %1198
    %v1200 = vsel %vm1070, %v1158, 0.0
    %1201 = vadd.xlane.f32.xlu0 %v1200
    %v1202 = vpop.xlane.xlu0 %1201
    %v1203 = vsel %vm1070, %v1160, 0.0
    %1204 = vadd.xlane.f32.xlu0 %v1203
    %v1205 = vpop.xlane.xlu0 %1204
    %v1206 = vsel %vm1070, %v1162, 0.0
    %1207 = vadd.xlane.f32.xlu0 %v1206
    %v1208 = vpop.xlane.xlu0 %1207
    %v1209 = vsel %vm1070, %v1164, 0.0
    %1210 = vadd.xlane.f32.xlu0 %v1209
    %v1211 = vpop.xlane.xlu0 %1210
    %v1212 = vsel %vm1070, %v1166, 0.0
    %1213 = vadd.xlane.f32.xlu0 %v1212
    %v1214 = vpop.xlane.xlu0 %1213
    %v1215 = vrcp.pop %v1169
    %v1216 = vrcp.pop %v1172
    %v1217 = vrcp.pop %v1175
    %v1218 = vrcp.pop %v1178
    %v1219 = vrcp.pop %v1181
    %v1220 = vrcp.pop %v1184
    %v1221 = vrcp.pop %v1187
    %v1222 = vrcp.pop %v1190
    %v1223 = vrcp.pop %v1193
    %v1224 = vrcp.pop %v1196
    %v1225 = vrcp.pop %v1199
    %v1226 = vrcp.pop %v1202
    %v1227 = vrcp.pop %v1205
    %v1228 = vrcp.pop %v1208
    %v1229 = vrcp.pop %v1211
    %v1230 = vrcp.pop %v1214
    %v1231 = vmul.f32 %v1136, %v1215
    %v1232 = vmul.f32 %v1138, %v1216
    %v1233 = vmul.f32 %v1140, %v1217
    %v1234 = vmul.f32 %v1142, %v1218
    %v1235 = vmul.f32 %v1144, %v1219
    %v1236 = vmul.f32 %v1146, %v1220
    %v1237 = vmul.f32 %v1148, %v1221
    %v1238 = vmul.f32 %v1150, %v1222
    %v1239 = vmul.f32 %v1152, %v1223
    %v1240 = vmul.f32 %v1154, %v1224
    %v1241 = vmul.f32 %v1156, %v1225
    %v1242 = vmul.f32 %v1158, %v1226
    %v1243 = vmul.f32 %v1160, %v1227
    %v1244 = vmul.f32 %v1162, %v1228
    %v1245 = vmul.f32 %v1164, %v1229
    %v1246 = vmul.f32 %v1166, %v1230
    %v1248 = vsel %vm1070, %v1231, 0
    %v1251 = vsel %vm1070, %v1232, 0
    %1253 = vmatprep.subr.mxu0 0.0
    %1254 = vmatpush1.msra.mxu0 %v280
    %1255 = vmatprep.subr.mxu0 0.0
    %1256 = vmatpush1.msra.mxu0 %v286
    %1257 = vmatprep.subr.mxu0 0.0
    %1258 = vmatpush1.msra.mxu0 0.0
    %1259 = vmatprep.subr.mxu0 0.0
    %1260 = vmatpush1.msra.mxu0 0.0
    %1261 = vmatprep.subr.mxu0 0.0
    %1262 = vmatpush1.msra.mxu0 0.0
    %1263 = vmatprep.subr.mxu0 0.0
    %1264 = vmatpush1.msra.mxu0 0.0
    %1265 = vmatprep.subr.mxu0 0.0
    %1266 = vmatpush1.msra.mxu0 0.0
    %1267 = vmatprep.subr.mxu0 0.0
    %1268 = vmatpush1.msra.mxu0 0.0
    %1269 = vmatprep.subr.mxu0 0.0
    %1270 = vmatpush1.msra.mxu0 0.0
    %1271 = vmatprep.subr.mxu0 0.0
    %1272 = vmatpush1.msra.mxu0 0.0
    %1273 = vmatprep.subr.mxu0 0.0
    %1274 = vmatpush1.msra.mxu0 0.0
    %1275 = vmatprep.subr.mxu0 0.0
    %1276 = vmatpush1.msra.mxu0 0.0
    %1277 = vmatprep.subr.mxu0 0.0
    %1278 = vmatpush1.msra.mxu0 0.0
    %1279 = vmatprep.subr.mxu0 0.0
    %1280 = vmatpush1.msra.mxu0 0.0
    %1281 = vmatprep.subr.mxu0 0.0
    %1282 = vmatpush1.msra.mxu0 0.0
    %1283 = vmatprep.subr.mxu0 0.0
    %1284 = vmatpush1.msra.mxu0 0.0
    %1285 = vmatprep.subr.mxu0 0.0
    %1286 = vmatpush1.msra.mxu0 0.0
    %1287 = vmatprep.subr.mxu0 0.0
    %1288 = vmatpush1.msra.mxu0 0.0
    %1289 = vmatprep.subr.mxu0 0.0
    %1290 = vmatpush1.msra.mxu0 0.0
    %1291 = vmatprep.subr.mxu0 0.0
    %1292 = vmatpush1.msra.mxu0 0.0
    %1293 = vmatprep.subr.mxu0 0.0
    %1294 = vmatpush1.msra.mxu0 0.0
    %1295 = vmatprep.subr.mxu0 0.0
    %1296 = vmatpush1.msra.mxu0 0.0
    %1297 = vmatprep.subr.mxu0 0.0
    %1298 = vmatpush1.msra.mxu0 0.0
    %1299 = vmatprep.subr.mxu0 0.0
    %1300 = vmatpush1.msra.mxu0 0.0
    %1301 = vmatprep.subr.mxu0 0.0
    %1302 = vmatpush1.msra.mxu0 0.0
    %1303 = vmatprep.subr.mxu0 0.0
    %1304 = vmatpush1.msra.mxu0 0.0
    %1305 = vmatprep.subr.mxu0 0.0
    %1306 = vmatpush1.msra.mxu0 0.0
    %1307 = vmatprep.subr.mxu0 0.0
    %1308 = vmatpush1.msra.mxu0 0.0
    %1309 = vmatprep.subr.mxu0 0.0
    %1310 = vmatpush1.msra.mxu0 0.0
    %1311 = vmatprep.subr.mxu0 0.0
    %1312 = vmatpush1.msra.mxu0 0.0
    %1313 = vmatprep.subr.mxu0 0.0
    %1314 = vmatpush1.msra.mxu0 0.0
    %1315 = vmatprep.subr.mxu0 0.0
    %1316 = vmatpush1.msra.mxu0 0.0
    %1317 = vmatprep.mubr.f32.mxu0 0.0
    %1318 = vmatmul.mubr.f32.gmra.mrb[0].mxu0 %v1248
    %v1319 = vpop.f32.mrb[0].mxu0
    %v1320 = vadd.f32 0.0, %v1319
    %v1321 = vpop.f32.mrb[0].mxu0
    %1322 = vmatprep.mubr.f32.mxu0 0.0
    %1323 = vmatmul.mubr.f32.gmra.mrb[0].mxu0 %v1251
    %v1324 = vpop.f32.mrb[0].mxu0
    %v1325 = vadd.f32 0.0, %v1324
    %v1326 = vpop.f32.mrb[0].mxu0
    %1327 = vdwg.mxu0
    %v1329 = vsel %vm1070, %v1233, 0
    %v1332 = vsel %vm1070, %v1234, 0
    %1334 = vmatprep.subr.mxu0 0.0
    %1335 = vmatpush1.msra.mxu0 %v321
    %1336 = vmatprep.subr.mxu0 0.0
    %1337 = vmatpush1.msra.mxu0 %v323
    %1338 = vmatprep.subr.mxu0 0.0
    %1339 = vmatpush1.msra.mxu0 0.0
    %1340 = vmatprep.subr.mxu0 0.0
    %1341 = vmatpush1.msra.mxu0 0.0
    %1342 = vmatprep.subr.mxu0 0.0
    %1343 = vmatpush1.msra.mxu0 0.0
    %1344 = vmatprep.subr.mxu0 0.0
    %1345 = vmatpush1.msra.mxu0 0.0
    %1346 = vmatprep.subr.mxu0 0.0
    %1347 = vmatpush1.msra.mxu0 0.0
    %1348 = vmatprep.subr.mxu0 0.0
    %1349 = vmatpush1.msra.mxu0 0.0
    %1350 = vmatprep.subr.mxu0 0.0
    %1351 = vmatpush1.msra.mxu0 0.0
    %1352 = vmatprep.subr.mxu0 0.0
    %1353 = vmatpush1.msra.mxu0 0.0
    %1354 = vmatprep.subr.mxu0 0.0
    %1355 = vmatpush1.msra.mxu0 0.0
    %1356 = vmatprep.subr.mxu0 0.0
    %1357 = vmatpush1.msra.mxu0 0.0
    %1358 = vmatprep.subr.mxu0 0.0
    %1359 = vmatpush1.msra.mxu0 0.0
    %1360 = vmatprep.subr.mxu0 0.0
    %1361 = vmatpush1.msra.mxu0 0.0
    %1362 = vmatprep.subr.mxu0 0.0
    %1363 = vmatpush1.msra.mxu0 0.0
    %1364 = vmatprep.subr.mxu0 0.0
    %1365 = vmatpush1.msra.mxu0 0.0
    %1366 = vmatprep.subr.mxu0 0.0
    %1367 = vmatpush1.msra.mxu0 0.0
    %1368 = vmatprep.subr.mxu0 0.0
    %1369 = vmatpush1.msra.mxu0 0.0
    %1370 = vmatprep.subr.mxu0 0.0
    %1371 = vmatpush1.msra.mxu0 0.0
    %1372 = vmatprep.subr.mxu0 0.0
    %1373 = vmatpush1.msra.mxu0 0.0
    %1374 = vmatprep.subr.mxu0 0.0
    %1375 = vmatpush1.msra.mxu0 0.0
    %1376 = vmatprep.subr.mxu0 0.0
    %1377 = vmatpush1.msra.mxu0 0.0
    %1378 = vmatprep.subr.mxu0 0.0
    %1379 = vmatpush1.msra.mxu0 0.0
    %1380 = vmatprep.subr.mxu0 0.0
    %1381 = vmatpush1.msra.mxu0 0.0
    %1382 = vmatprep.subr.mxu0 0.0
    %1383 = vmatpush1.msra.mxu0 0.0
    %1384 = vmatprep.subr.mxu0 0.0
    %1385 = vmatpush1.msra.mxu0 0.0
    %1386 = vmatprep.subr.mxu0 0.0
    %1387 = vmatpush1.msra.mxu0 0.0
    %1388 = vmatprep.subr.mxu0 0.0
    %1389 = vmatpush1.msra.mxu0 0.0
    %1390 = vmatprep.subr.mxu0 0.0
    %1391 = vmatpush1.msra.mxu0 0.0
    %1392 = vmatprep.subr.mxu0 0.0
    %1393 = vmatpush1.msra.mxu0 0.0
    %1394 = vmatprep.subr.mxu0 0.0
    %1395 = vmatpush1.msra.mxu0 0.0
    %1396 = vmatprep.subr.mxu0 0.0
    %1397 = vmatpush1.msra.mxu0 0.0
    %1398 = vmatprep.mubr.f32.mxu0 0.0
    %1399 = vmatmul.mubr.f32.gmra.mrb[0].mxu0 %v1329
    %v1400 = vpop.f32.mrb[0].mxu0
    %v1401 = vadd.f32 0.0, %v1400
    %v1402 = vpop.f32.mrb[0].mxu0
    %1403 = vmatprep.mubr.f32.mxu0 0.0
    %1404 = vmatmul.mubr.f32.gmra.mrb[0].mxu0 %v1332
    %v1405 = vpop.f32.mrb[0].mxu0
    %v1406 = vadd.f32 0.0, %v1405
    %v1407 = vpop.f32.mrb[0].mxu0
    %1408 = vdwg.mxu0
    %v1410 = vsel %vm1070, %v1235, 0
    %v1413 = vsel %vm1070, %v1236, 0
    %1415 = vmatprep.subr.mxu0 0.0
    %1416 = vmatpush1.msra.mxu0 %v327
    %1417 = vmatprep.subr.mxu0 0.0
    %1418 = vmatpush1.msra.mxu0 %v329
    %1419 = vmatprep.subr.mxu0 0.0
    %1420 = vmatpush1.msra.mxu0 0.0
    %1421 = vmatprep.subr.mxu0 0.0
    %1422 = vmatpush1.msra.mxu0 0.0
    %1423 = vmatprep.subr.mxu0 0.0
    %1424 = vmatpush1.msra.mxu0 0.0
    %1425 = vmatprep.subr.mxu0 0.0
    %1426 = vmatpush1.msra.mxu0 0.0
    %1427 = vmatprep.subr.mxu0 0.0
    %1428 = vmatpush1.msra.mxu0 0.0
    %1429 = vmatprep.subr.mxu0 0.0
    %1430 = vmatpush1.msra.mxu0 0.0
    %1431 = vmatprep.subr.mxu0 0.0
    %1432 = vmatpush1.msra.mxu0 0.0
    %1433 = vmatprep.subr.mxu0 0.0
    %1434 = vmatpush1.msra.mxu0 0.0
    %1435 = vmatprep.subr.mxu0 0.0
    %1436 = vmatpush1.msra.mxu0 0.0
    %1437 = vmatprep.subr.mxu0 0.0
    %1438 = vmatpush1.msra.mxu0 0.0
    %1439 = vmatprep.subr.mxu0 0.0
    %1440 = vmatpush1.msra.mxu0 0.0
    %1441 = vmatprep.subr.mxu0 0.0
    %1442 = vmatpush1.msra.mxu0 0.0
    %1443 = vmatprep.subr.mxu0 0.0
    %1444 = vmatpush1.msra.mxu0 0.0
    %1445 = vmatprep.subr.mxu0 0.0
    %1446 = vmatpush1.msra.mxu0 0.0
    %1447 = vmatprep.subr.mxu0 0.0
    %1448 = vmatpush1.msra.mxu0 0.0
    %1449 = vmatprep.subr.mxu0 0.0
    %1450 = vmatpush1.msra.mxu0 0.0
    %1451 = vmatprep.subr.mxu0 0.0
    %1452 = vmatpush1.msra.mxu0 0.0
    %1453 = vmatprep.subr.mxu0 0.0
    %1454 = vmatpush1.msra.mxu0 0.0
    %1455 = vmatprep.subr.mxu0 0.0
    %1456 = vmatpush1.msra.mxu0 0.0
    %1457 = vmatprep.subr.mxu0 0.0
    %1458 = vmatpush1.msra.mxu0 0.0
    %1459 = vmatprep.subr.mxu0 0.0
    %1460 = vmatpush1.msra.mxu0 0.0
    %1461 = vmatprep.subr.mxu0 0.0
    %1462 = vmatpush1.msra.mxu0 0.0
    %1463 = vmatprep.subr.mxu0 0.0
    %1464 = vmatpush1.msra.mxu0 0.0
    %1465 = vmatprep.subr.mxu0 0.0
    %1466 = vmatpush1.msra.mxu0 0.0
    %1467 = vmatprep.subr.mxu0 0.0
    %1468 = vmatpush1.msra.mxu0 0.0
    %1469 = vmatprep.subr.mxu0 0.0
    %1470 = vmatpush1.msra.mxu0 0.0
    %1471 = vmatprep.subr.mxu0 0.0
    %1472 = vmatpush1.msra.mxu0 0.0
    %1473 = vmatprep.subr.mxu0 0.0
    %1474 = vmatpush1.msra.mxu0 0.0
    %1475 = vmatprep.subr.mxu0 0.0
    %1476 = vmatpush1.msra.mxu0 0.0
    %1477 = vmatprep.subr.mxu0 0.0
    %1478 = vmatpush1.msra.mxu0 0.0
    %1479 = vmatprep.mubr.f32.mxu0 0.0
    %1480 = vmatmul.mubr.f32.gmra.mrb[0].mxu0 %v1410
    %v1481 = vpop.f32.mrb[0].mxu0
    %v1482 = vadd.f32 0.0, %v1481
    %v1483 = vpop.f32.mrb[0].mxu0
    %1484 = vmatprep.mubr.f32.mxu0 0.0
    %1485 = vmatmul.mubr.f32.gmra.mrb[0].mxu0 %v1413
    %v1486 = vpop.f32.mrb[0].mxu0
    %v1487 = vadd.f32 0.0, %v1486
    %v1488 = vpop.f32.mrb[0].mxu0
    %1489 = vdwg.mxu0
    %v1491 = vsel %vm1070, %v1237, 0
    %v1494 = vsel %vm1070, %v1238, 0
    %1496 = vmatprep.subr.mxu0 0.0
    %1497 = vmatpush1.msra.mxu0 %v333
    %1498 = vmatprep.subr.mxu0 0.0
    %1499 = vmatpush1.msra.mxu0 %v335
    %1500 = vmatprep.subr.mxu0 0.0
    %1501 = vmatpush1.msra.mxu0 0.0
    %1502 = vmatprep.subr.mxu0 0.0
    %1503 = vmatpush1.msra.mxu0 0.0
    %1504 = vmatprep.subr.mxu0 0.0
    %1505 = vmatpush1.msra.mxu0 0.0
    %1506 = vmatprep.subr.mxu0 0.0
    %1507 = vmatpush1.msra.mxu0 0.0
    %1508 = vmatprep.subr.mxu0 0.0
    %1509 = vmatpush1.msra.mxu0 0.0
    %1510 = vmatprep.subr.mxu0 0.0
    %1511 = vmatpush1.msra.mxu0 0.0
    %1512 = vmatprep.subr.mxu0 0.0
    %1513 = vmatpush1.msra.mxu0 0.0
    %1514 = vmatprep.subr.mxu0 0.0
    %1515 = vmatpush1.msra.mxu0 0.0
    %1516 = vmatprep.subr.mxu0 0.0
    %1517 = vmatpush1.msra.mxu0 0.0
    %1518 = vmatprep.subr.mxu0 0.0
    %1519 = vmatpush1.msra.mxu0 0.0
    %1520 = vmatprep.subr.mxu0 0.0
    %1521 = vmatpush1.msra.mxu0 0.0
    %1522 = vmatprep.subr.mxu0 0.0
    %1523 = vmatpush1.msra.mxu0 0.0
    %1524 = vmatprep.subr.mxu0 0.0
    %1525 = vmatpush1.msra.mxu0 0.0
    %1526 = vmatprep.subr.mxu0 0.0
    %1527 = vmatpush1.msra.mxu0 0.0
    %1528 = vmatprep.subr.mxu0 0.0
    %1529 = vmatpush1.msra.mxu0 0.0
    %1530 = vmatprep.subr.mxu0 0.0
    %1531 = vmatpush1.msra.mxu0 0.0
    %1532 = vmatprep.subr.mxu0 0.0
    %1533 = vmatpush1.msra.mxu0 0.0
    %1534 = vmatprep.subr.mxu0 0.0
    %1535 = vmatpush1.msra.mxu0 0.0
    %1536 = vmatprep.subr.mxu0 0.0
    %1537 = vmatpush1.msra.mxu0 0.0
    %1538 = vmatprep.subr.mxu0 0.0
    %1539 = vmatpush1.msra.mxu0 0.0
    %1540 = vmatprep.subr.mxu0 0.0
    %1541 = vmatpush1.msra.mxu0 0.0
    %1542 = vmatprep.subr.mxu0 0.0
    %1543 = vmatpush1.msra.mxu0 0.0
    %1544 = vmatprep.subr.mxu0 0.0
    %1545 = vmatpush1.msra.mxu0 0.0
    %1546 = vmatprep.subr.mxu0 0.0
    %1547 = vmatpush1.msra.mxu0 0.0
    %1548 = vmatprep.subr.mxu0 0.0
    %1549 = vmatpush1.msra.mxu0 0.0
    %1550 = vmatprep.subr.mxu0 0.0
    %1551 = vmatpush1.msra.mxu0 0.0
    %1552 = vmatprep.subr.mxu0 0.0
    %1553 = vmatpush1.msra.mxu0 0.0
    %1554 = vmatprep.subr.mxu0 0.0
    %1555 = vmatpush1.msra.mxu0 0.0
    %1556 = vmatprep.subr.mxu0 0.0
    %1557 = vmatpush1.msra.mxu0 0.0
    %1558 = vmatprep.subr.mxu0 0.0
    %1559 = vmatpush1.msra.mxu0 0.0
    %1560 = vmatprep.mubr.f32.mxu0 0.0
    %1561 = vmatmul.mubr.f32.gmra.mrb[0].mxu0 %v1491
    %v1562 = vpop.f32.mrb[0].mxu0
    %v1563 = vadd.f32 0.0, %v1562
    %v1564 = vpop.f32.mrb[0].mxu0
    %1565 = vmatprep.mubr.f32.mxu0 0.0
    %1566 = vmatmul.mubr.f32.gmra.mrb[0].mxu0 %v1494
    %v1567 = vpop.f32.mrb[0].mxu0
    %v1568 = vadd.f32 0.0, %v1567
    %v1569 = vpop.f32.mrb[0].mxu0
    %1570 = vdwg.mxu0
    %v1572 = vsel %vm1070, %v1239, 0
    %v1575 = vsel %vm1070, %v1240, 0
    %1577 = vmatprep.subr.mxu0 0.0
    %1578 = vmatpush1.msra.mxu0 %v339
    %1579 = vmatprep.subr.mxu0 0.0
    %1580 = vmatpush1.msra.mxu0 %v341
    %1581 = vmatprep.subr.mxu0 0.0
    %1582 = vmatpush1.msra.mxu0 0.0
    %1583 = vmatprep.subr.mxu0 0.0
    %1584 = vmatpush1.msra.mxu0 0.0
    %1585 = vmatprep.subr.mxu0 0.0
    %1586 = vmatpush1.msra.mxu0 0.0
    %1587 = vmatprep.subr.mxu0 0.0
    %1588 = vmatpush1.msra.mxu0 0.0
    %1589 = vmatprep.subr.mxu0 0.0
    %1590 = vmatpush1.msra.mxu0 0.0
    %1591 = vmatprep.subr.mxu0 0.0
    %1592 = vmatpush1.msra.mxu0 0.0
    %1593 = vmatprep.subr.mxu0 0.0
    %1594 = vmatpush1.msra.mxu0 0.0
    %1595 = vmatprep.subr.mxu0 0.0
    %1596 = vmatpush1.msra.mxu0 0.0
    %1597 = vmatprep.subr.mxu0 0.0
    %1598 = vmatpush1.msra.mxu0 0.0
    %1599 = vmatprep.subr.mxu0 0.0
    %1600 = vmatpush1.msra.mxu0 0.0
    %1601 = vmatprep.subr.mxu0 0.0
    %1602 = vmatpush1.msra.mxu0 0.0
    %1603 = vmatprep.subr.mxu0 0.0
    %1604 = vmatpush1.msra.mxu0 0.0
    %1605 = vmatprep.subr.mxu0 0.0
    %1606 = vmatpush1.msra.mxu0 0.0
    %1607 = vmatprep.subr.mxu0 0.0
    %1608 = vmatpush1.msra.mxu0 0.0
    %1609 = vmatprep.subr.mxu0 0.0
    %1610 = vmatpush1.msra.mxu0 0.0
    %1611 = vmatprep.subr.mxu0 0.0
    %1612 = vmatpush1.msra.mxu0 0.0
    %1613 = vmatprep.subr.mxu0 0.0
    %1614 = vmatpush1.msra.mxu0 0.0
    %1615 = vmatprep.subr.mxu0 0.0
    %1616 = vmatpush1.msra.mxu0 0.0
    %1617 = vmatprep.subr.mxu0 0.0
    %1618 = vmatpush1.msra.mxu0 0.0
    %1619 = vmatprep.subr.mxu0 0.0
    %1620 = vmatpush1.msra.mxu0 0.0
    %1621 = vmatprep.subr.mxu0 0.0
    %1622 = vmatpush1.msra.mxu0 0.0
    %1623 = vmatprep.subr.mxu0 0.0
    %1624 = vmatpush1.msra.mxu0 0.0
    %1625 = vmatprep.subr.mxu0 0.0
    %1626 = vmatpush1.msra.mxu0 0.0
    %1627 = vmatprep.subr.mxu0 0.0
    %1628 = vmatpush1.msra.mxu0 0.0
    %1629 = vmatprep.subr.mxu0 0.0
    %1630 = vmatpush1.msra.mxu0 0.0
    %1631 = vmatprep.subr.mxu0 0.0
    %1632 = vmatpush1.msra.mxu0 0.0
    %1633 = vmatprep.subr.mxu0 0.0
    %1634 = vmatpush1.msra.mxu0 0.0
    %1635 = vmatprep.subr.mxu0 0.0
    %1636 = vmatpush1.msra.mxu0 0.0
    %1637 = vmatprep.subr.mxu0 0.0
    %1638 = vmatpush1.msra.mxu0 0.0
    %1639 = vmatprep.subr.mxu0 0.0
    %1640 = vmatpush1.msra.mxu0 0.0
    %1641 = vmatprep.mubr.f32.mxu0 0.0
    %1642 = vmatmul.mubr.f32.gmra.mrb[0].mxu0 %v1572
    %v1643 = vpop.f32.mrb[0].mxu0
    %v1644 = vadd.f32 0.0, %v1643
    %v1645 = vpop.f32.mrb[0].mxu0
    %1646 = vmatprep.mubr.f32.mxu0 0.0
    %1647 = vmatmul.mubr.f32.gmra.mrb[0].mxu0 %v1575
    %v1648 = vpop.f32.mrb[0].mxu0
    %v1649 = vadd.f32 0.0, %v1648
    %v1650 = vpop.f32.mrb[0].mxu0
    %1651 = vdwg.mxu0
    %v1653 = vsel %vm1070, %v1241, 0
    %v1656 = vsel %vm1070, %v1242, 0
    %1658 = vmatprep.subr.mxu0 0.0
    %1659 = vmatpush1.msra.mxu0 %v345
    %1660 = vmatprep.subr.mxu0 0.0
    %1661 = vmatpush1.msra.mxu0 %v347
    %1662 = vmatprep.subr.mxu0 0.0
    %1663 = vmatpush1.msra.mxu0 0.0
    %1664 = vmatprep.subr.mxu0 0.0
    %1665 = vmatpush1.msra.mxu0 0.0
    %1666 = vmatprep.subr.mxu0 0.0
    %1667 = vmatpush1.msra.mxu0 0.0
    %1668 = vmatprep.subr.mxu0 0.0
    %1669 = vmatpush1.msra.mxu0 0.0
    %1670 = vmatprep.subr.mxu0 0.0
    %1671 = vmatpush1.msra.mxu0 0.0
    %1672 = vmatprep.subr.mxu0 0.0
    %1673 = vmatpush1.msra.mxu0 0.0
    %1674 = vmatprep.subr.mxu0 0.0
    %1675 = vmatpush1.msra.mxu0 0.0
    %1676 = vmatprep.subr.mxu0 0.0
    %1677 = vmatpush1.msra.mxu0 0.0
    %1678 = vmatprep.subr.mxu0 0.0
    %1679 = vmatpush1.msra.mxu0 0.0
    %1680 = vmatprep.subr.mxu0 0.0
    %1681 = vmatpush1.msra.mxu0 0.0
    %1682 = vmatprep.subr.mxu0 0.0
    %1683 = vmatpush1.msra.mxu0 0.0
    %1684 = vmatprep.subr.mxu0 0.0
    %1685 = vmatpush1.msra.mxu0 0.0
    %1686 = vmatprep.subr.mxu0 0.0
    %1687 = vmatpush1.msra.mxu0 0.0
    %1688 = vmatprep.subr.mxu0 0.0
    %1689 = vmatpush1.msra.mxu0 0.0
    %1690 = vmatprep.subr.mxu0 0.0
    %1691 = vmatpush1.msra.mxu0 0.0
    %1692 = vmatprep.subr.mxu0 0.0
    %1693 = vmatpush1.msra.mxu0 0.0
    %1694 = vmatprep.subr.mxu0 0.0
    %1695 = vmatpush1.msra.mxu0 0.0
    %1696 = vmatprep.subr.mxu0 0.0
    %1697 = vmatpush1.msra.mxu0 0.0
    %1698 = vmatprep.subr.mxu0 0.0
    %1699 = vmatpush1.msra.mxu0 0.0
    %1700 = vmatprep.subr.mxu0 0.0
    %1701 = vmatpush1.msra.mxu0 0.0
    %1702 = vmatprep.subr.mxu0 0.0
    %1703 = vmatpush1.msra.mxu0 0.0
    %1704 = vmatprep.subr.mxu0 0.0
    %1705 = vmatpush1.msra.mxu0 0.0
    %1706 = vmatprep.subr.mxu0 0.0
    %1707 = vmatpush1.msra.mxu0 0.0
    %1708 = vmatprep.subr.mxu0 0.0
    %1709 = vmatpush1.msra.mxu0 0.0
    %1710 = vmatprep.subr.mxu0 0.0
    %1711 = vmatpush1.msra.mxu0 0.0
    %1712 = vmatprep.subr.mxu0 0.0
    %1713 = vmatpush1.msra.mxu0 0.0
    %1714 = vmatprep.subr.mxu0 0.0
    %1715 = vmatpush1.msra.mxu0 0.0
    %1716 = vmatprep.subr.mxu0 0.0
    %1717 = vmatpush1.msra.mxu0 0.0
    %1718 = vmatprep.subr.mxu0 0.0
    %1719 = vmatpush1.msra.mxu0 0.0
    %1720 = vmatprep.subr.mxu0 0.0
    %1721 = vmatpush1.msra.mxu0 0.0
    %1722 = vmatprep.mubr.f32.mxu0 0.0
    %1723 = vmatmul.mubr.f32.gmra.mrb[0].mxu0 %v1653
    %v1724 = vpop.f32.mrb[0].mxu0
    %v1725 = vadd.f32 0.0, %v1724
    %v1726 = vpop.f32.mrb[0].mxu0
    %1727 = vmatprep.mubr.f32.mxu0 0.0
    %1728 = vmatmul.mubr.f32.gmra.mrb[0].mxu0 %v1656
    %v1729 = vpop.f32.mrb[0].mxu0
    %v1730 = vadd.f32 0.0, %v1729
    %v1731 = vpop.f32.mrb[0].mxu0
    %1732 = vdwg.mxu0
    %v1734 = vsel %vm1070, %v1243, 0
    %v1737 = vsel %vm1070, %v1244, 0
    %1739 = vmatprep.subr.mxu0 0.0
    %1740 = vmatpush1.msra.mxu0 %v351
    %1741 = vmatprep.subr.mxu0 0.0
    %1742 = vmatpush1.msra.mxu0 %v353
    %1743 = vmatprep.subr.mxu0 0.0
    %1744 = vmatpush1.msra.mxu0 0.0
    %1745 = vmatprep.subr.mxu0 0.0
    %1746 = vmatpush1.msra.mxu0 0.0
    %1747 = vmatprep.subr.mxu0 0.0
    %1748 = vmatpush1.msra.mxu0 0.0
    %1749 = vmatprep.subr.mxu0 0.0
    %1750 = vmatpush1.msra.mxu0 0.0
    %1751 = vmatprep.subr.mxu0 0.0
    %1752 = vmatpush1.msra.mxu0 0.0
    %1753 = vmatprep.subr.mxu0 0.0
    %1754 = vmatpush1.msra.mxu0 0.0
    %1755 = vmatprep.subr.mxu0 0.0
    %1756 = vmatpush1.msra.mxu0 0.0
    %1757 = vmatprep.subr.mxu0 0.0
    %1758 = vmatpush1.msra.mxu0 0.0
    %1759 = vmatprep.subr.mxu0 0.0
    %1760 = vmatpush1.msra.mxu0 0.0
    %1761 = vmatprep.subr.mxu0 0.0
    %1762 = vmatpush1.msra.mxu0 0.0
    %1763 = vmatprep.subr.mxu0 0.0
    %1764 = vmatpush1.msra.mxu0 0.0
    %1765 = vmatprep.subr.mxu0 0.0
    %1766 = vmatpush1.msra.mxu0 0.0
    %1767 = vmatprep.subr.mxu0 0.0
    %1768 = vmatpush1.msra.mxu0 0.0
    %1769 = vmatprep.subr.mxu0 0.0
    %1770 = vmatpush1.msra.mxu0 0.0
    %1771 = vmatprep.subr.mxu0 0.0
    %1772 = vmatpush1.msra.mxu0 0.0
    %1773 = vmatprep.subr.mxu0 0.0
    %1774 = vmatpush1.msra.mxu0 0.0
    %1775 = vmatprep.subr.mxu0 0.0
    %1776 = vmatpush1.msra.mxu0 0.0
    %1777 = vmatprep.subr.mxu0 0.0
    %1778 = vmatpush1.msra.mxu0 0.0
    %1779 = vmatprep.subr.mxu0 0.0
    %1780 = vmatpush1.msra.mxu0 0.0
    %1781 = vmatprep.subr.mxu0 0.0
    %1782 = vmatpush1.msra.mxu0 0.0
    %1783 = vmatprep.subr.mxu0 0.0
    %1784 = vmatpush1.msra.mxu0 0.0
    %1785 = vmatprep.subr.mxu0 0.0
    %1786 = vmatpush1.msra.mxu0 0.0
    %1787 = vmatprep.subr.mxu0 0.0
    %1788 = vmatpush1.msra.mxu0 0.0
    %1789 = vmatprep.subr.mxu0 0.0
    %1790 = vmatpush1.msra.mxu0 0.0
    %1791 = vmatprep.subr.mxu0 0.0
    %1792 = vmatpush1.msra.mxu0 0.0
    %1793 = vmatprep.subr.mxu0 0.0
    %1794 = vmatpush1.msra.mxu0 0.0
    %1795 = vmatprep.subr.mxu0 0.0
    %1796 = vmatpush1.msra.mxu0 0.0
    %1797 = vmatprep.subr.mxu0 0.0
    %1798 = vmatpush1.msra.mxu0 0.0
    %1799 = vmatprep.subr.mxu0 0.0
    %1800 = vmatpush1.msra.mxu0 0.0
    %1801 = vmatprep.subr.mxu0 0.0
    %1802 = vmatpush1.msra.mxu0 0.0
    %1803 = vmatprep.mubr.f32.mxu0 0.0
    %1804 = vmatmul.mubr.f32.gmra.mrb[0].mxu0 %v1734
    %v1805 = vpop.f32.mrb[0].mxu0
    %v1806 = vadd.f32 0.0, %v1805
    %v1807 = vpop.f32.mrb[0].mxu0
    %1808 = vmatprep.mubr.f32.mxu0 0.0
    %1809 = vmatmul.mubr.f32.gmra.mrb[0].mxu0 %v1737
    %v1810 = vpop.f32.mrb[0].mxu0
    %v1811 = vadd.f32 0.0, %v1810
    %v1812 = vpop.f32.mrb[0].mxu0
    %1813 = vdwg.mxu0
    %v1815 = vsel %vm1070, %v1245, 0
    %v1818 = vsel %vm1070, %v1246, 0
    %1820 = vmatprep.subr.mxu0 0.0
    %1821 = vmatpush1.msra.mxu0 %v357
    %1822 = vmatprep.subr.mxu0 0.0
    %1823 = vmatpush1.msra.mxu0 %v359
    %1824 = vmatprep.subr.mxu0 0.0
    %1825 = vmatpush1.msra.mxu0 0.0
    %1826 = vmatprep.subr.mxu0 0.0
    %1827 = vmatpush1.msra.mxu0 0.0
    %1828 = vmatprep.subr.mxu0 0.0
    %1829 = vmatpush1.msra.mxu0 0.0
    %1830 = vmatprep.subr.mxu0 0.0
    %1831 = vmatpush1.msra.mxu0 0.0
    %1832 = vmatprep.subr.mxu0 0.0
    %1833 = vmatpush1.msra.mxu0 0.0
    %1834 = vmatprep.subr.mxu0 0.0
    %1835 = vmatpush1.msra.mxu0 0.0
    %1836 = vmatprep.subr.mxu0 0.0
    %1837 = vmatpush1.msra.mxu0 0.0
    %1838 = vmatprep.subr.mxu0 0.0
    %1839 = vmatpush1.msra.mxu0 0.0
    %1840 = vmatprep.subr.mxu0 0.0
    %1841 = vmatpush1.msra.mxu0 0.0
    %1842 = vmatprep.subr.mxu0 0.0
    %1843 = vmatpush1.msra.mxu0 0.0
    %1844 = vmatprep.subr.mxu0 0.0
    %1845 = vmatpush1.msra.mxu0 0.0
    %1846 = vmatprep.subr.mxu0 0.0
    %1847 = vmatpush1.msra.mxu0 0.0
    %1848 = vmatprep.subr.mxu0 0.0
    %1849 = vmatpush1.msra.mxu0 0.0
    %1850 = vmatprep.subr.mxu0 0.0
    %1851 = vmatpush1.msra.mxu0 0.0
    %1852 = vmatprep.subr.mxu0 0.0
    %1853 = vmatpush1.msra.mxu0 0.0
    %1854 = vmatprep.subr.mxu0 0.0
    %1855 = vmatpush1.msra.mxu0 0.0
    %1856 = vmatprep.subr.mxu0 0.0
    %1857 = vmatpush1.msra.mxu0 0.0
    %1858 = vmatprep.subr.mxu0 0.0
    %1859 = vmatpush1.msra.mxu0 0.0
    %1860 = vmatprep.subr.mxu0 0.0
    %1861 = vmatpush1.msra.mxu0 0.0
    %1862 = vmatprep.subr.mxu0 0.0
    %1863 = vmatpush1.msra.mxu0 0.0
    %1864 = vmatprep.subr.mxu0 0.0
    %1865 = vmatpush1.msra.mxu0 0.0
    %1866 = vmatprep.subr.mxu0 0.0
    %1867 = vmatpush1.msra.mxu0 0.0
    %1868 = vmatprep.subr.mxu0 0.0
    %1869 = vmatpush1.msra.mxu0 0.0
    %1870 = vmatprep.subr.mxu0 0.0
    %1871 = vmatpush1.msra.mxu0 0.0
    %1872 = vmatprep.subr.mxu0 0.0
    %1873 = vmatpush1.msra.mxu0 0.0
    %1874 = vmatprep.subr.mxu0 0.0
    %1875 = vmatpush1.msra.mxu0 0.0
    %1876 = vmatprep.subr.mxu0 0.0
    %1877 = vmatpush1.msra.mxu0 0.0
    %1878 = vmatprep.subr.mxu0 0.0
    %1879 = vmatpush1.msra.mxu0 0.0
    %1880 = vmatprep.subr.mxu0 0.0
    %1881 = vmatpush1.msra.mxu0 0.0
    %1882 = vmatprep.subr.mxu0 0.0
    %1883 = vmatpush1.msra.mxu0 0.0
    %1884 = vmatprep.mubr.f32.mxu0 0.0
    %1885 = vmatmul.mubr.f32.gmra.mrb[0].mxu0 %v1815
    %v1886 = vpop.f32.mrb[0].mxu0
    %v1887 = vadd.f32 0.0, %v1886
    %v1888 = vpop.f32.mrb[0].mxu0
    %1889 = vmatprep.mubr.f32.mxu0 0.0
    %1890 = vmatmul.mubr.f32.gmra.mrb[0].mxu0 %v1818
    %v1891 = vpop.f32.mrb[0].mxu0
    %v1892 = vadd.f32 0.0, %v1891
    %v1893 = vpop.f32.mrb[0].mxu0
    %1894 = vdwg.mxu0
    %v1896 = vsel %vm377, %v1320, 0
    %v1899 = vsel %vm377, %v1325, 0
    %1901 = vmatprep.subr.mxu0 0.0
    %1902 = vmatpush1.msra.mxu0 %v364
    %1903 = vmatprep.subr.mxu0 0.0
    %1904 = vmatpush1.msra.mxu0 0.0
    %1905 = vmatprep.subr.mxu0 0.0
    %1906 = vmatpush1.msra.mxu0 0.0
    %1907 = vmatprep.subr.mxu0 0.0
    %1908 = vmatpush1.msra.mxu0 0.0
    %1909 = vmatprep.subr.mxu0 0.0
    %1910 = vmatpush1.msra.mxu0 0.0
    %1911 = vmatprep.subr.mxu0 0.0
    %1912 = vmatpush1.msra.mxu0 0.0
    %1913 = vmatprep.subr.mxu0 0.0
    %1914 = vmatpush1.msra.mxu0 0.0
    %1915 = vmatprep.subr.mxu0 0.0
    %1916 = vmatpush1.msra.mxu0 0.0
    %1917 = vmatprep.subr.mxu0 0.0
    %1918 = vmatpush1.msra.mxu0 0.0
    %1919 = vmatprep.subr.mxu0 0.0
    %1920 = vmatpush1.msra.mxu0 0.0
    %1921 = vmatprep.subr.mxu0 0.0
    %1922 = vmatpush1.msra.mxu0 0.0
    %1923 = vmatprep.subr.mxu0 0.0
    %1924 = vmatpush1.msra.mxu0 0.0
    %1925 = vmatprep.subr.mxu0 0.0
    %1926 = vmatpush1.msra.mxu0 0.0
    %1927 = vmatprep.subr.mxu0 0.0
    %1928 = vmatpush1.msra.mxu0 0.0
    %1929 = vmatprep.subr.mxu0 0.0
    %1930 = vmatpush1.msra.mxu0 0.0
    %1931 = vmatprep.subr.mxu0 0.0
    %1932 = vmatpush1.msra.mxu0 0.0
    %1933 = vmatprep.subr.mxu0 0.0
    %1934 = vmatpush1.msra.mxu0 0.0
    %1935 = vmatprep.subr.mxu0 0.0
    %1936 = vmatpush1.msra.mxu0 0.0
    %1937 = vmatprep.subr.mxu0 0.0
    %1938 = vmatpush1.msra.mxu0 0.0
    %1939 = vmatprep.subr.mxu0 0.0
    %1940 = vmatpush1.msra.mxu0 0.0
    %1941 = vmatprep.subr.mxu0 0.0
    %1942 = vmatpush1.msra.mxu0 0.0
    %1943 = vmatprep.subr.mxu0 0.0
    %1944 = vmatpush1.msra.mxu0 0.0
    %1945 = vmatprep.subr.mxu0 0.0
    %1946 = vmatpush1.msra.mxu0 0.0
    %1947 = vmatprep.subr.mxu0 0.0
    %1948 = vmatpush1.msra.mxu0 0.0
    %1949 = vmatprep.subr.mxu0 0.0
    %1950 = vmatpush1.msra.mxu0 0.0
    %1951 = vmatprep.subr.mxu0 0.0
    %1952 = vmatpush1.msra.mxu0 0.0
    %1953 = vmatprep.subr.mxu0 0.0
    %1954 = vmatpush1.msra.mxu0 0.0
    %1955 = vmatprep.subr.mxu0 0.0
    %1956 = vmatpush1.msra.mxu0 0.0
    %1957 = vmatprep.subr.mxu0 0.0
    %1958 = vmatpush1.msra.mxu0 0.0
    %1959 = vmatprep.subr.mxu0 0.0
    %1960 = vmatpush1.msra.mxu0 0.0
    %1961 = vmatprep.subr.mxu0 0.0
    %1962 = vmatpush1.msra.mxu0 0.0
    %1963 = vmatprep.subr.mxu0 0.0
    %1964 = vmatpush1.msra.mxu0 0.0
    %1965 = vmatprep.mubr.f32.mxu0 0.0
    %1966 = vmatmul.mubr.f32.gmra.mrb[0].mxu0 %v1896
    %v1967 = vpop.f32.mrb[0].mxu0
    %v1968 = vadd.f32 0.0, %v1967
    %v1969 = vpop.f32.mrb[0].mxu0
    %1970 = vmatprep.mubr.f32.mxu0 0.0
    %1971 = vmatmul.mubr.f32.gmra.mrb[0].mxu0 %v1899
    %v1972 = vpop.f32.mrb[0].mxu0
    %v1973 = vadd.f32 0.0, %v1972
    %v1974 = vpop.f32.mrb[0].mxu0
    %1975 = vdwg.mxu0
    %v1977 = vsel %vm377, %v1401, 0
    %v1980 = vsel %vm377, %v1406, 0
    %1982 = vmatprep.subr.mxu0 0.0
    %1983 = vmatpush1.msra.mxu0 %v365
    %1984 = vmatprep.subr.mxu0 0.0
    %1985 = vmatpush1.msra.mxu0 0.0
    %1986 = vmatprep.subr.mxu0 0.0
    %1987 = vmatpush1.msra.mxu0 0.0
    %1988 = vmatprep.subr.mxu0 0.0
    %1989 = vmatpush1.msra.mxu0 0.0
    %1990 = vmatprep.subr.mxu0 0.0
    %1991 = vmatpush1.msra.mxu0 0.0
    %1992 = vmatprep.subr.mxu0 0.0
    %1993 = vmatpush1.msra.mxu0 0.0
    %1994 = vmatprep.subr.mxu0 0.0
    %1995 = vmatpush1.msra.mxu0 0.0
    %1996 = vmatprep.subr.mxu0 0.0
    %1997 = vmatpush1.msra.mxu0 0.0
    %1998 = vmatprep.subr.mxu0 0.0
    %1999 = vmatpush1.msra.mxu0 0.0
    %2000 = vmatprep.subr.mxu0 0.0
    %2001 = vmatpush1.msra.mxu0 0.0
    %2002 = vmatprep.subr.mxu0 0.0
    %2003 = vmatpush1.msra.mxu0 0.0
    %2004 = vmatprep.subr.mxu0 0.0
    %2005 = vmatpush1.msra.mxu0 0.0
    %2006 = vmatprep.subr.mxu0 0.0
    %2007 = vmatpush1.msra.mxu0 0.0
    %2008 = vmatprep.subr.mxu0 0.0
    %2009 = vmatpush1.msra.mxu0 0.0
    %2010 = vmatprep.subr.mxu0 0.0
    %2011 = vmatpush1.msra.mxu0 0.0
    %2012 = vmatprep.subr.mxu0 0.0
    %2013 = vmatpush1.msra.mxu0 0.0
    %2014 = vmatprep.subr.mxu0 0.0
    %2015 = vmatpush1.msra.mxu0 0.0
    %2016 = vmatprep.subr.mxu0 0.0
    %2017 = vmatpush1.msra.mxu0 0.0
    %2018 = vmatprep.subr.mxu0 0.0
    %2019 = vmatpush1.msra.mxu0 0.0
    %2020 = vmatprep.subr.mxu0 0.0
    %2021 = vmatpush1.msra.mxu0 0.0
    %2022 = vmatprep.subr.mxu0 0.0
    %2023 = vmatpush1.msra.mxu0 0.0
    %2024 = vmatprep.subr.mxu0 0.0
    %2025 = vmatpush1.msra.mxu0 0.0
    %2026 = vmatprep.subr.mxu0 0.0
    %2027 = vmatpush1.msra.mxu0 0.0
    %2028 = vmatprep.subr.mxu0 0.0
    %2029 = vmatpush1.msra.mxu0 0.0
    %2030 = vmatprep.subr.mxu0 0.0
    %2031 = vmatpush1.msra.mxu0 0.0
    %2032 = vmatprep.subr.mxu0 0.0
    %2033 = vmatpush1.msra.mxu0 0.0
    %2034 = vmatprep.subr.mxu0 0.0
    %2035 = vmatpush1.msra.mxu0 0.0
    %2036 = vmatprep.subr.mxu0 0.0
    %2037 = vmatpush1.msra.mxu0 0.0
    %2038 = vmatprep.subr.mxu0 0.0
    %2039 = vmatpush1.msra.mxu0 0.0
    %2040 = vmatprep.subr.mxu0 0.0
    %2041 = vmatpush1.msra.mxu0 0.0
    %2042 = vmatprep.subr.mxu0 0.0
    %2043 = vmatpush1.msra.mxu0 0.0
    %2044 = vmatprep.subr.mxu0 0.0
    %2045 = vmatpush1.msra.mxu0 0.0
    %2046 = vmatprep.mubr.f32.mxu0 0.0
    %2047 = vmatmul.mubr.f32.gmra.mrb[0].mxu0 %v1977
    %v2048 = vpop.f32.mrb[0].mxu0
    %v2049 = vadd.f32 0.0, %v2048
    %v2050 = vpop.f32.mrb[0].mxu0
    %2051 = vmatprep.mubr.f32.mxu0 0.0
    %2052 = vmatmul.mubr.f32.gmra.mrb[0].mxu0 %v1980
    %v2053 = vpop.f32.mrb[0].mxu0
    %v2054 = vadd.f32 0.0, %v2053
    %v2055 = vpop.f32.mrb[0].mxu0
    %2056 = vdwg.mxu0
    %v2058 = vsel %vm377, %v1482, 0
    %v2061 = vsel %vm377, %v1487, 0
    %2063 = vmatprep.subr.mxu0 0.0
    %2064 = vmatpush1.msra.mxu0 %v366
    %2065 = vmatprep.subr.mxu0 0.0
    %2066 = vmatpush1.msra.mxu0 0.0
    %2067 = vmatprep.subr.mxu0 0.0
    %2068 = vmatpush1.msra.mxu0 0.0
    %2069 = vmatprep.subr.mxu0 0.0
    %2070 = vmatpush1.msra.mxu0 0.0
    %2071 = vmatprep.subr.mxu0 0.0
    %2072 = vmatpush1.msra.mxu0 0.0
    %2073 = vmatprep.subr.mxu0 0.0
    %2074 = vmatpush1.msra.mxu0 0.0
    %2075 = vmatprep.subr.mxu0 0.0
    %2076 = vmatpush1.msra.mxu0 0.0
    %2077 = vmatprep.subr.mxu0 0.0
    %2078 = vmatpush1.msra.mxu0 0.0
    %2079 = vmatprep.subr.mxu0 0.0
    %2080 = vmatpush1.msra.mxu0 0.0
    %2081 = vmatprep.subr.mxu0 0.0
    %2082 = vmatpush1.msra.mxu0 0.0
    %2083 = vmatprep.subr.mxu0 0.0
    %2084 = vmatpush1.msra.mxu0 0.0
    %2085 = vmatprep.subr.mxu0 0.0
    %2086 = vmatpush1.msra.mxu0 0.0
    %2087 = vmatprep.subr.mxu0 0.0
    %2088 = vmatpush1.msra.mxu0 0.0
    %2089 = vmatprep.subr.mxu0 0.0
    %2090 = vmatpush1.msra.mxu0 0.0
    %2091 = vmatprep.subr.mxu0 0.0
    %2092 = vmatpush1.msra.mxu0 0.0
    %2093 = vmatprep.subr.mxu0 0.0
    %2094 = vmatpush1.msra.mxu0 0.0
    %2095 = vmatprep.subr.mxu0 0.0
    %2096 = vmatpush1.msra.mxu0 0.0
    %2097 = vmatprep.subr.mxu0 0.0
    %2098 = vmatpush1.msra.mxu0 0.0
    %2099 = vmatprep.subr.mxu0 0.0
    %2100 = vmatpush1.msra.mxu0 0.0
    %2101 = vmatprep.subr.mxu0 0.0
    %2102 = vmatpush1.msra.mxu0 0.0
    %2103 = vmatprep.subr.mxu0 0.0
    %2104 = vmatpush1.msra.mxu0 0.0
    %2105 = vmatprep.subr.mxu0 0.0
    %2106 = vmatpush1.msra.mxu0 0.0
    %2107 = vmatprep.subr.mxu0 0.0
    %2108 = vmatpush1.msra.mxu0 0.0
    %2109 = vmatprep.subr.mxu0 0.0
    %2110 = vmatpush1.msra.mxu0 0.0
    %2111 = vmatprep.subr.mxu0 0.0
    %2112 = vmatpush1.msra.mxu0 0.0
    %2113 = vmatprep.subr.mxu0 0.0
    %2114 = vmatpush1.msra.mxu0 0.0
    %2115 = vmatprep.subr.mxu0 0.0
    %2116 = vmatpush1.msra.mxu0 0.0
    %2117 = vmatprep.subr.mxu0 0.0
    %2118 = vmatpush1.msra.mxu0 0.0
    %2119 = vmatprep.subr.mxu0 0.0
    %2120 = vmatpush1.msra.mxu0 0.0
    %2121 = vmatprep.subr.mxu0 0.0
    %2122 = vmatpush1.msra.mxu0 0.0
    %2123 = vmatprep.subr.mxu0 0.0
    %2124 = vmatpush1.msra.mxu0 0.0
    %2125 = vmatprep.subr.mxu0 0.0
    %2126 = vmatpush1.msra.mxu0 0.0
    %2127 = vmatprep.mubr.f32.mxu0 0.0
    %2128 = vmatmul.mubr.f32.gmra.mrb[0].mxu0 %v2058
    %v2129 = vpop.f32.mrb[0].mxu0
    %v2130 = vadd.f32 0.0, %v2129
    %v2131 = vpop.f32.mrb[0].mxu0
    %2132 = vmatprep.mubr.f32.mxu0 0.0
    %2133 = vmatmul.mubr.f32.gmra.mrb[0].mxu0 %v2061
    %v2134 = vpop.f32.mrb[0].mxu0
    %v2135 = vadd.f32 0.0, %v2134
    %v2136 = vpop.f32.mrb[0].mxu0
    %2137 = vdwg.mxu0
    %v2139 = vsel %vm377, %v1563, 0
    %v2142 = vsel %vm377, %v1568, 0
    %2144 = vmatprep.subr.mxu0 0.0
    %2145 = vmatpush1.msra.mxu0 %v367
    %2146 = vmatprep.subr.mxu0 0.0
    %2147 = vmatpush1.msra.mxu0 0.0
    %2148 = vmatprep.subr.mxu0 0.0
    %2149 = vmatpush1.msra.mxu0 0.0
    %2150 = vmatprep.subr.mxu0 0.0
    %2151 = vmatpush1.msra.mxu0 0.0
    %2152 = vmatprep.subr.mxu0 0.0
    %2153 = vmatpush1.msra.mxu0 0.0
    %2154 = vmatprep.subr.mxu0 0.0
    %2155 = vmatpush1.msra.mxu0 0.0
    %2156 = vmatprep.subr.mxu0 0.0
    %2157 = vmatpush1.msra.mxu0 0.0
    %2158 = vmatprep.subr.mxu0 0.0
    %2159 = vmatpush1.msra.mxu0 0.0
    %2160 = vmatprep.subr.mxu0 0.0
    %2161 = vmatpush1.msra.mxu0 0.0
    %2162 = vmatprep.subr.mxu0 0.0
    %2163 = vmatpush1.msra.mxu0 0.0
    %2164 = vmatprep.subr.mxu0 0.0
    %2165 = vmatpush1.msra.mxu0 0.0
    %2166 = vmatprep.subr.mxu0 0.0
    %2167 = vmatpush1.msra.mxu0 0.0
    %2168 = vmatprep.subr.mxu0 0.0
    %2169 = vmatpush1.msra.mxu0 0.0
    %2170 = vmatprep.subr.mxu0 0.0
    %2171 = vmatpush1.msra.mxu0 0.0
    %2172 = vmatprep.subr.mxu0 0.0
    %2173 = vmatpush1.msra.mxu0 0.0
    %2174 = vmatprep.subr.mxu0 0.0
    %2175 = vmatpush1.msra.mxu0 0.0
    %2176 = vmatprep.subr.mxu0 0.0
    %2177 = vmatpush1.msra.mxu0 0.0
    %2178 = vmatprep.subr.mxu0 0.0
    %2179 = vmatpush1.msra.mxu0 0.0
    %2180 = vmatprep.subr.mxu0 0.0
    %2181 = vmatpush1.msra.mxu0 0.0
    %2182 = vmatprep.subr.mxu0 0.0
    %2183 = vmatpush1.msra.mxu0 0.0
    %2184 = vmatprep.subr.mxu0 0.0
    %2185 = vmatpush1.msra.mxu0 0.0
    %2186 = vmatprep.subr.mxu0 0.0
    %2187 = vmatpush1.msra.mxu0 0.0
    %2188 = vmatprep.subr.mxu0 0.0
    %2189 = vmatpush1.msra.mxu0 0.0
    %2190 = vmatprep.subr.mxu0 0.0
    %2191 = vmatpush1.msra.mxu0 0.0
    %2192 = vmatprep.subr.mxu0 0.0
    %2193 = vmatpush1.msra.mxu0 0.0
    %2194 = vmatprep.subr.mxu0 0.0
    %2195 = vmatpush1.msra.mxu0 0.0
    %2196 = vmatprep.subr.mxu0 0.0
    %2197 = vmatpush1.msra.mxu0 0.0
    %2198 = vmatprep.subr.mxu0 0.0
    %2199 = vmatpush1.msra.mxu0 0.0
    %2200 = vmatprep.subr.mxu0 0.0
    %2201 = vmatpush1.msra.mxu0 0.0
    %2202 = vmatprep.subr.mxu0 0.0
    %2203 = vmatpush1.msra.mxu0 0.0
    %2204 = vmatprep.subr.mxu0 0.0
    %2205 = vmatpush1.msra.mxu0 0.0
    %2206 = vmatprep.subr.mxu0 0.0
    %2207 = vmatpush1.msra.mxu0 0.0
    %2208 = vmatprep.mubr.f32.mxu0 0.0
    %2209 = vmatmul.mubr.f32.gmra.mrb[0].mxu0 %v2139
    %v2210 = vpop.f32.mrb[0].mxu0
    %v2211 = vadd.f32 0.0, %v2210
    %v2212 = vpop.f32.mrb[0].mxu0
    %2213 = vmatprep.mubr.f32.mxu0 0.0
    %2214 = vmatmul.mubr.f32.gmra.mrb[0].mxu0 %v2142
    %v2215 = vpop.f32.mrb[0].mxu0
    %v2216 = vadd.f32 0.0, %v2215
    %v2217 = vpop.f32.mrb[0].mxu0
    %2218 = vdwg.mxu0
    %v2220 = vsel %vm377, %v1644, 0
    %v2223 = vsel %vm377, %v1649, 0
    %2225 = vmatprep.subr.mxu0 0.0
    %2226 = vmatpush1.msra.mxu0 %v368
    %2227 = vmatprep.subr.mxu0 0.0
    %2228 = vmatpush1.msra.mxu0 0.0
    %2229 = vmatprep.subr.mxu0 0.0
    %2230 = vmatpush1.msra.mxu0 0.0
    %2231 = vmatprep.subr.mxu0 0.0
    %2232 = vmatpush1.msra.mxu0 0.0
    %2233 = vmatprep.subr.mxu0 0.0
    %2234 = vmatpush1.msra.mxu0 0.0
    %2235 = vmatprep.subr.mxu0 0.0
    %2236 = vmatpush1.msra.mxu0 0.0
    %2237 = vmatprep.subr.mxu0 0.0
    %2238 = vmatpush1.msra.mxu0 0.0
    %2239 = vmatprep.subr.mxu0 0.0
    %2240 = vmatpush1.msra.mxu0 0.0
    %2241 = vmatprep.subr.mxu0 0.0
    %2242 = vmatpush1.msra.mxu0 0.0
    %2243 = vmatprep.subr.mxu0 0.0
    %2244 = vmatpush1.msra.mxu0 0.0
    %2245 = vmatprep.subr.mxu0 0.0
    %2246 = vmatpush1.msra.mxu0 0.0
    %2247 = vmatprep.subr.mxu0 0.0
    %2248 = vmatpush1.msra.mxu0 0.0
    %2249 = vmatprep.subr.mxu0 0.0
    %2250 = vmatpush1.msra.mxu0 0.0
    %2251 = vmatprep.subr.mxu0 0.0
    %2252 = vmatpush1.msra.mxu0 0.0
    %2253 = vmatprep.subr.mxu0 0.0
    %2254 = vmatpush1.msra.mxu0 0.0
    %2255 = vmatprep.subr.mxu0 0.0
    %2256 = vmatpush1.msra.mxu0 0.0
    %2257 = vmatprep.subr.mxu0 0.0
    %2258 = vmatpush1.msra.mxu0 0.0
    %2259 = vmatprep.subr.mxu0 0.0
    %2260 = vmatpush1.msra.mxu0 0.0
    %2261 = vmatprep.subr.mxu0 0.0
    %2262 = vmatpush1.msra.mxu0 0.0
    %2263 = vmatprep.subr.mxu0 0.0
    %2264 = vmatpush1.msra.mxu0 0.0
    %2265 = vmatprep.subr.mxu0 0.0
    %2266 = vmatpush1.msra.mxu0 0.0
    %2267 = vmatprep.subr.mxu0 0.0
    %2268 = vmatpush1.msra.mxu0 0.0
    %2269 = vmatprep.subr.mxu0 0.0
    %2270 = vmatpush1.msra.mxu0 0.0
    %2271 = vmatprep.subr.mxu0 0.0
    %2272 = vmatpush1.msra.mxu0 0.0
    %2273 = vmatprep.subr.mxu0 0.0
    %2274 = vmatpush1.msra.mxu0 0.0
    %2275 = vmatprep.subr.mxu0 0.0
    %2276 = vmatpush1.msra.mxu0 0.0
    %2277 = vmatprep.subr.mxu0 0.0
    %2278 = vmatpush1.msra.mxu0 0.0
    %2279 = vmatprep.subr.mxu0 0.0
    %2280 = vmatpush1.msra.mxu0 0.0
    %2281 = vmatprep.subr.mxu0 0.0
    %2282 = vmatpush1.msra.mxu0 0.0
    %2283 = vmatprep.subr.mxu0 0.0
    %2284 = vmatpush1.msra.mxu0 0.0
    %2285 = vmatprep.subr.mxu0 0.0
    %2286 = vmatpush1.msra.mxu0 0.0
    %2287 = vmatprep.subr.mxu0 0.0
    %2288 = vmatpush1.msra.mxu0 0.0
    %2289 = vmatprep.mubr.f32.mxu0 0.0
    %2290 = vmatmul.mubr.f32.gmra.mrb[0].mxu0 %v2220
    %v2291 = vpop.f32.mrb[0].mxu0
    %v2292 = vadd.f32 0.0, %v2291
    %v2293 = vpop.f32.mrb[0].mxu0
    %2294 = vmatprep.mubr.f32.mxu0 0.0
    %2295 = vmatmul.mubr.f32.gmra.mrb[0].mxu0 %v2223
    %v2296 = vpop.f32.mrb[0].mxu0
    %v2297 = vadd.f32 0.0, %v2296
    %v2298 = vpop.f32.mrb[0].mxu0
    %2299 = vdwg.mxu0
    %v2301 = vsel %vm377, %v1725, 0
    %v2304 = vsel %vm377, %v1730, 0
    %2306 = vmatprep.subr.mxu0 0.0
    %2307 = vmatpush1.msra.mxu0 %v369
    %2308 = vmatprep.subr.mxu0 0.0
    %2309 = vmatpush1.msra.mxu0 0.0
    %2310 = vmatprep.subr.mxu0 0.0
    %2311 = vmatpush1.msra.mxu0 0.0
    %2312 = vmatprep.subr.mxu0 0.0
    %2313 = vmatpush1.msra.mxu0 0.0
    %2314 = vmatprep.subr.mxu0 0.0
    %2315 = vmatpush1.msra.mxu0 0.0
    %2316 = vmatprep.subr.mxu0 0.0
    %2317 = vmatpush1.msra.mxu0 0.0
    %2318 = vmatprep.subr.mxu0 0.0
    %2319 = vmatpush1.msra.mxu0 0.0
    %2320 = vmatprep.subr.mxu0 0.0
    %2321 = vmatpush1.msra.mxu0 0.0
    %2322 = vmatprep.subr.mxu0 0.0
    %2323 = vmatpush1.msra.mxu0 0.0
    %2324 = vmatprep.subr.mxu0 0.0
    %2325 = vmatpush1.msra.mxu0 0.0
    %2326 = vmatprep.subr.mxu0 0.0
    %2327 = vmatpush1.msra.mxu0 0.0
    %2328 = vmatprep.subr.mxu0 0.0
    %2329 = vmatpush1.msra.mxu0 0.0
    %2330 = vmatprep.subr.mxu0 0.0
    %2331 = vmatpush1.msra.mxu0 0.0
    %2332 = vmatprep.subr.mxu0 0.0
    %2333 = vmatpush1.msra.mxu0 0.0
    %2334 = vmatprep.subr.mxu0 0.0
    %2335 = vmatpush1.msra.mxu0 0.0
    %2336 = vmatprep.subr.mxu0 0.0
    %2337 = vmatpush1.msra.mxu0 0.0
    %2338 = vmatprep.subr.mxu0 0.0
    %2339 = vmatpush1.msra.mxu0 0.0
    %2340 = vmatprep.subr.mxu0 0.0
    %2341 = vmatpush1.msra.mxu0 0.0
    %2342 = vmatprep.subr.mxu0 0.0
    %2343 = vmatpush1.msra.mxu0 0.0
    %2344 = vmatprep.subr.mxu0 0.0
    %2345 = vmatpush1.msra.mxu0 0.0
    %2346 = vmatprep.subr.mxu0 0.0
    %2347 = vmatpush1.msra.mxu0 0.0
    %2348 = vmatprep.subr.mxu0 0.0
    %2349 = vmatpush1.msra.mxu0 0.0
    %2350 = vmatprep.subr.mxu0 0.0
    %2351 = vmatpush1.msra.mxu0 0.0
    %2352 = vmatprep.subr.mxu0 0.0
    %2353 = vmatpush1.msra.mxu0 0.0
    %2354 = vmatprep.subr.mxu0 0.0
    %2355 = vmatpush1.msra.mxu0 0.0
    %2356 = vmatprep.subr.mxu0 0.0
    %2357 = vmatpush1.msra.mxu0 0.0
    %2358 = vmatprep.subr.mxu0 0.0
    %2359 = vmatpush1.msra.mxu0 0.0
    %2360 = vmatprep.subr.mxu0 0.0
    %2361 = vmatpush1.msra.mxu0 0.0
    %2362 = vmatprep.subr.mxu0 0.0
    %2363 = vmatpush1.msra.mxu0 0.0
    %2364 = vmatprep.subr.mxu0 0.0
    %2365 = vmatpush1.msra.mxu0 0.0
    %2366 = vmatprep.subr.mxu0 0.0
    %2367 = vmatpush1.msra.mxu0 0.0
    %2368 = vmatprep.subr.mxu0 0.0
    %2369 = vmatpush1.msra.mxu0 0.0
    %2370 = vmatprep.mubr.f32.mxu0 0.0
    %2371 = vmatmul.mubr.f32.gmra.mrb[0].mxu0 %v2301
    %v2372 = vpop.f32.mrb[0].mxu0
    %v2373 = vadd.f32 0.0, %v2372
    %v2374 = vpop.f32.mrb[0].mxu0
    %2375 = vmatprep.mubr.f32.mxu0 0.0
    %2376 = vmatmul.mubr.f32.gmra.mrb[0].mxu0 %v2304
    %v2377 = vpop.f32.mrb[0].mxu0
    %v2378 = vadd.f32 0.0, %v2377
    %v2379 = vpop.f32.mrb[0].mxu0
    %2380 = vdwg.mxu0
    %v2382 = vsel %vm377, %v1806, 0
    %v2385 = vsel %vm377, %v1811, 0
    %2387 = vmatprep.subr.mxu0 0.0
    %2388 = vmatpush1.msra.mxu0 %v370
    %2389 = vmatprep.subr.mxu0 0.0
    %2390 = vmatpush1.msra.mxu0 0.0
    %2391 = vmatprep.subr.mxu0 0.0
    %2392 = vmatpush1.msra.mxu0 0.0
    %2393 = vmatprep.subr.mxu0 0.0
    %2394 = vmatpush1.msra.mxu0 0.0
    %2395 = vmatprep.subr.mxu0 0.0
    %2396 = vmatpush1.msra.mxu0 0.0
    %2397 = vmatprep.subr.mxu0 0.0
    %2398 = vmatpush1.msra.mxu0 0.0
    %2399 = vmatprep.subr.mxu0 0.0
    %2400 = vmatpush1.msra.mxu0 0.0
    %2401 = vmatprep.subr.mxu0 0.0
    %2402 = vmatpush1.msra.mxu0 0.0
    %2403 = vmatprep.subr.mxu0 0.0
    %2404 = vmatpush1.msra.mxu0 0.0
    %2405 = vmatprep.subr.mxu0 0.0
    %2406 = vmatpush1.msra.mxu0 0.0
    %2407 = vmatprep.subr.mxu0 0.0
    %2408 = vmatpush1.msra.mxu0 0.0
    %2409 = vmatprep.subr.mxu0 0.0
    %2410 = vmatpush1.msra.mxu0 0.0
    %2411 = vmatprep.subr.mxu0 0.0
    %2412 = vmatpush1.msra.mxu0 0.0
    %2413 = vmatprep.subr.mxu0 0.0
    %2414 = vmatpush1.msra.mxu0 0.0
    %2415 = vmatprep.subr.mxu0 0.0
    %2416 = vmatpush1.msra.mxu0 0.0
    %2417 = vmatprep.subr.mxu0 0.0
    %2418 = vmatpush1.msra.mxu0 0.0
    %2419 = vmatprep.subr.mxu0 0.0
    %2420 = vmatpush1.msra.mxu0 0.0
    %2421 = vmatprep.subr.mxu0 0.0
    %2422 = vmatpush1.msra.mxu0 0.0
    %2423 = vmatprep.subr.mxu0 0.0
    %2424 = vmatpush1.msra.mxu0 0.0
    %2425 = vmatprep.subr.mxu0 0.0
    %2426 = vmatpush1.msra.mxu0 0.0
    %2427 = vmatprep.subr.mxu0 0.0
    %2428 = vmatpush1.msra.mxu0 0.0
    %2429 = vmatprep.subr.mxu0 0.0
    %2430 = vmatpush1.msra.mxu0 0.0
    %2431 = vmatprep.subr.mxu0 0.0
    %2432 = vmatpush1.msra.mxu0 0.0
    %2433 = vmatprep.subr.mxu0 0.0
    %2434 = vmatpush1.msra.mxu0 0.0
    %2435 = vmatprep.subr.mxu0 0.0
    %2436 = vmatpush1.msra.mxu0 0.0
    %2437 = vmatprep.subr.mxu0 0.0
    %2438 = vmatpush1.msra.mxu0 0.0
    %2439 = vmatprep.subr.mxu0 0.0
    %2440 = vmatpush1.msra.mxu0 0.0
    %2441 = vmatprep.subr.mxu0 0.0
    %2442 = vmatpush1.msra.mxu0 0.0
    %2443 = vmatprep.subr.mxu0 0.0
    %2444 = vmatpush1.msra.mxu0 0.0
    %2445 = vmatprep.subr.mxu0 0.0
    %2446 = vmatpush1.msra.mxu0 0.0
    %2447 = vmatprep.subr.mxu0 0.0
    %2448 = vmatpush1.msra.mxu0 0.0
    %2449 = vmatprep.subr.mxu0 0.0
    %2450 = vmatpush1.msra.mxu0 0.0
    %2451 = vmatprep.mubr.f32.mxu0 0.0
    %2452 = vmatmul.mubr.f32.gmra.mrb[0].mxu0 %v2382
    %v2453 = vpop.f32.mrb[0].mxu0
    %v2454 = vadd.f32 0.0, %v2453
    %v2455 = vpop.f32.mrb[0].mxu0
    %2456 = vmatprep.mubr.f32.mxu0 0.0
    %2457 = vmatmul.mubr.f32.gmra.mrb[0].mxu0 %v2385
    %v2458 = vpop.f32.mrb[0].mxu0
    %v2459 = vadd.f32 0.0, %v2458
    %v2460 = vpop.f32.mrb[0].mxu0
    %2461 = vdwg.mxu0
    %v2463 = vsel %vm377, %v1887, 0
    %v2466 = vsel %vm377, %v1892, 0
    %2468 = vmatprep.subr.mxu0 0.0
    %2469 = vmatpush1.msra.mxu0 %v371
    %2470 = vmatprep.subr.mxu0 0.0
    %2471 = vmatpush1.msra.mxu0 0.0
    %2472 = vmatprep.subr.mxu0 0.0
    %2473 = vmatpush1.msra.mxu0 0.0
    %2474 = vmatprep.subr.mxu0 0.0
    %2475 = vmatpush1.msra.mxu0 0.0
    %2476 = vmatprep.subr.mxu0 0.0
    %2477 = vmatpush1.msra.mxu0 0.0
    %2478 = vmatprep.subr.mxu0 0.0
    %2479 = vmatpush1.msra.mxu0 0.0
    %2480 = vmatprep.subr.mxu0 0.0
    %2481 = vmatpush1.msra.mxu0 0.0
    %2482 = vmatprep.subr.mxu0 0.0
    %2483 = vmatpush1.msra.mxu0 0.0
    %2484 = vmatprep.subr.mxu0 0.0
    %2485 = vmatpush1.msra.mxu0 0.0
    %2486 = vmatprep.subr.mxu0 0.0
    %2487 = vmatpush1.msra.mxu0 0.0
    %2488 = vmatprep.subr.mxu0 0.0
    %2489 = vmatpush1.msra.mxu0 0.0
    %2490 = vmatprep.subr.mxu0 0.0
    %2491 = vmatpush1.msra.mxu0 0.0
    %2492 = vmatprep.subr.mxu0 0.0
    %2493 = vmatpush1.msra.mxu0 0.0
    %2494 = vmatprep.subr.mxu0 0.0
    %2495 = vmatpush1.msra.mxu0 0.0
    %2496 = vmatprep.subr.mxu0 0.0
    %2497 = vmatpush1.msra.mxu0 0.0
    %2498 = vmatprep.subr.mxu0 0.0
    %2499 = vmatpush1.msra.mxu0 0.0
    %2500 = vmatprep.subr.mxu0 0.0
    %2501 = vmatpush1.msra.mxu0 0.0
    %2502 = vmatprep.subr.mxu0 0.0
    %2503 = vmatpush1.msra.mxu0 0.0
    %2504 = vmatprep.subr.mxu0 0.0
    %2505 = vmatpush1.msra.mxu0 0.0
    %2506 = vmatprep.subr.mxu0 0.0
    %2507 = vmatpush1.msra.mxu0 0.0
    %2508 = vmatprep.subr.mxu0 0.0
    %2509 = vmatpush1.msra.mxu0 0.0
    %2510 = vmatprep.subr.mxu0 0.0
    %2511 = vmatpush1.msra.mxu0 0.0
    %2512 = vmatprep.subr.mxu0 0.0
    %2513 = vmatpush1.msra.mxu0 0.0
    %2514 = vmatprep.subr.mxu0 0.0
    %2515 = vmatpush1.msra.mxu0 0.0
    %2516 = vmatprep.subr.mxu0 0.0
    %2517 = vmatpush1.msra.mxu0 0.0
    %2518 = vmatprep.subr.mxu0 0.0
    %2519 = vmatpush1.msra.mxu0 0.0
    %2520 = vmatprep.subr.mxu0 0.0
    %2521 = vmatpush1.msra.mxu0 0.0
    %2522 = vmatprep.subr.mxu0 0.0
    %2523 = vmatpush1.msra.mxu0 0.0
    %2524 = vmatprep.subr.mxu0 0.0
    %2525 = vmatpush1.msra.mxu0 0.0
    %2526 = vmatprep.subr.mxu0 0.0
    %2527 = vmatpush1.msra.mxu0 0.0
    %2528 = vmatprep.subr.mxu0 0.0
    %2529 = vmatpush1.msra.mxu0 0.0
    %2530 = vmatprep.subr.mxu0 0.0
    %2531 = vmatpush1.msra.mxu0 0.0
    %2532 = vmatprep.mubr.f32.mxu0 0.0
    %2533 = vmatmul.mubr.f32.gmra.mrb[0].mxu0 %v2463
    %v2534 = vpop.f32.mrb[0].mxu0
    %v2535 = vadd.f32 0.0, %v2534
    %v2536 = vpop.f32.mrb[0].mxu0
    %2537 = vmatprep.mubr.f32.mxu0 0.0
    %2538 = vmatmul.mubr.f32.gmra.mrb[0].mxu0 %v2466
    %v2539 = vpop.f32.mrb[0].mxu0
    %v2540 = vadd.f32 0.0, %v2539
    %v2541 = vpop.f32.mrb[0].mxu0
    %2542 = vdwg.mxu0
    %v2543 = vsel %vm204, %v1968, 0.0
    %v2544 = vsel %vm204, %v2049, 0.0
    %v2545 = vadd.f32 %v2543, %v2544
    %v2546 = vsel %vm204, %v2130, 0.0
    %v2547 = vadd.f32 %v2545, %v2546
    %v2548 = vsel %vm204, %v2211, 0.0
    %v2549 = vadd.f32 %v2547, %v2548
    %v2550 = vsel %vm204, %v2292, 0.0
    %v2551 = vadd.f32 %v2549, %v2550
    %v2552 = vsel %vm204, %v2373, 0.0
    %v2553 = vadd.f32 %v2551, %v2552
    %v2554 = vsel %vm204, %v2454, 0.0
    %v2555 = vadd.f32 %v2553, %v2554
    %v2556 = vsel %vm204, %v2535, 0.0
    %v2557 = vadd.f32 %v2555, %v2556
    %v2558 = vsel %vm204, %v1973, 0.0
    %v2559 = vsel %vm204, %v2054, 0.0
    %v2560 = vadd.f32 %v2558, %v2559
    %v2561 = vsel %vm204, %v2135, 0.0
    %v2562 = vadd.f32 %v2560, %v2561
    %v2563 = vsel %vm204, %v2216, 0.0
    %v2564 = vadd.f32 %v2562, %v2563
    %v2565 = vsel %vm204, %v2297, 0.0
    %v2566 = vadd.f32 %v2564, %v2565
    %v2567 = vsel %vm204, %v2378, 0.0
    %v2568 = vadd.f32 %v2566, %v2567
    %v2569 = vsel %vm204, %v2459, 0.0
    %v2570 = vadd.f32 %v2568, %v2569
    %v2571 = vsel %vm204, %v2540, 0.0
    %v2572 = vadd.f32 %v2570, %v2571
    %v2574 = vlaneseq
    %v2575 = vshrl.u32 %v2574, 7
    %v2576 = vsub.s32 0, %v2575
    %v2577 = vrot.slane %v372, %v2576
    %v2579 = vadd.f32 %v2557, %v2577
    %v2580 = vadd.f32 %v2572, %v2577
    %v2581 = vadd.f32 %v172, %v2579
    %v2582 = vadd.f32 %v173, %v2580
    %v2583 = vld [vmem:[%s18] sm:$0x1]
    %v2584 = vld [vmem:[%s18 + $0x1] sm:$0x1]
    %v2585 = vsel %vm204, %v2581, 0.0
    %2586 = vadd.xlane.f32.xlu0 %v2585
    %v2587 = vpop.xlane.xlu0 %2586
    %v2588 = vsel %vm204, %v2582, 0.0
    %2589 = vadd.xlane.f32.xlu0 %v2588
    %v2590 = vpop.xlane.xlu0 %2589
    %v2591 = vrcp.pop 64.0
    %v2592 = vmul.f32 %v2587, %v2591
    %v2593 = vmul.f32 %v2590, %v2591
    %v2594 = vsub.f32 %v2581, %v2592
    %v2595 = vsub.f32 %v2582, %v2593
    %v2596 = vmul.f32 %v2594, %v2594
    %v2597 = vmul.f32 %v2595, %v2595
    %v2598 = vsel %vm204, %v2596, 0.0
    %2599 = vadd.xlane.f32.xlu0 %v2598
    %v2600 = vpop.xlane.xlu0 %2599
    %v2601 = vsel %vm204, %v2597, 0.0
    %2602 = vadd.xlane.f32.xlu0 %v2601
    %v2603 = vpop.xlane.xlu0 %2602
    %v2604 = vmul.f32 %v2600, %v2591
    %v2605 = vmul.f32 %v2603, %v2591
    %v2606 = vadd.f32 %v2604, 1e-05
    %v2607 = vadd.f32 %v2605, 1e-05
    %v2608 = vrsqrt.pop %v2606
    %v2609 = vrsqrt.pop %v2607
    %v2610 = vmul.f32 %v2594, %v2608
    %v2611 = vmul.f32 %v2595, %v2609
    %v2612 = vlaneseq
    %v2613 = vshrl.u32 %v2612, 7
    %v2614 = vsub.s32 0, %v2613
    %v2615 = vrot.slane %v2583, %v2614
    %v2616 = vmul.f32 %v2610, %v2615
    %v2617 = vmul.f32 %v2611, %v2615
    %v2618 = vlaneseq
    %v2619 = vshrl.u32 %v2618, 7
    %v2620 = vsub.s32 0, %v2619
    %v2621 = vrot.slane %v2584, %v2620
    %v2622 = vadd.f32 %v2616, %v2621
    %v2623 = vadd.f32 %v2617, %v2621
    %v2624 = vld [vmem:[#allocation10] sm:$0xff]
    %v2625 = vld [vmem:[#allocation10 + $0x8] sm:$0xff]
    %v2626 = vld [vmem:[#allocation10 + $0x10] sm:$0xff]
    %v2627 = vld [vmem:[#allocation10 + $0x18] sm:$0xff]
    %v2628 = vld [vmem:[#allocation10 + $0x20] sm:$0xff]
    %v2629 = vld [vmem:[#allocation10 + $0x28] sm:$0xff]
    %v2630 = vld [vmem:[#allocation10 + $0x30] sm:$0xff]
    %v2631 = vld [vmem:[#allocation10 + $0x38] sm:$0xff]
    %v2632 = vld [vmem:[%s9] sm:$0x1]
    %v2634 = vlaneseq
    %v2635 = vshrl.u32 %v2634, 7
    %v2636 = vsub.s32 0, %v2635
    %v2637 = vrot.slane %v2632, %v2636
    %v2640 = vsel %vm204, %v2622, 0
    %v2643 = vsel %vm204, %v2623, 0
    %2645 = vmatprep.subr.mxu0 0.0
    %2646 = vmatpush1.msra.mxu0 %v2624
    %2647 = vmatprep.subr.mxu0 0.0
    %2648 = vmatpush1.msra.mxu0 %v2625
    %2649 = vmatprep.subr.mxu0 0.0
    %2650 = vmatpush1.msra.mxu0 %v2626
    %2651 = vmatprep.subr.mxu0 0.0
    %2652 = vmatpush1.msra.mxu0 %v2627
    %2653 = vmatprep.subr.mxu0 0.0
    %2654 = vmatpush1.msra.mxu0 %v2628
    %2655 = vmatprep.subr.mxu0 0.0
    %2656 = vmatpush1.msra.mxu0 %v2629
    %2657 = vmatprep.subr.mxu0 0.0
    %2658 = vmatpush1.msra.mxu0 %v2630
    %2659 = vmatprep.subr.mxu0 0.0
    %2660 = vmatpush1.msra.mxu0 %v2631
    %2661 = vmatprep.subr.mxu0 0.0
    %2662 = vmatpush1.msra.mxu0 0.0
    %2663 = vmatprep.subr.mxu0 0.0
    %2664 = vmatpush1.msra.mxu0 0.0
    %2665 = vmatprep.subr.mxu0 0.0
    %2666 = vmatpush1.msra.mxu0 0.0
    %2667 = vmatprep.subr.mxu0 0.0
    %2668 = vmatpush1.msra.mxu0 0.0
    %2669 = vmatprep.subr.mxu0 0.0
    %2670 = vmatpush1.msra.mxu0 0.0
    %2671 = vmatprep.subr.mxu0 0.0
    %2672 = vmatpush1.msra.mxu0 0.0
    %2673 = vmatprep.subr.mxu0 0.0
    %2674 = vmatpush1.msra.mxu0 0.0
    %2675 = vmatprep.subr.mxu0 0.0
    %2676 = vmatpush1.msra.mxu0 0.0
    %2677 = vmatprep.subr.mxu0 0.0
    %2678 = vmatpush1.msra.mxu0 0.0
    %2679 = vmatprep.subr.mxu0 0.0
    %2680 = vmatpush1.msra.mxu0 0.0
    %2681 = vmatprep.subr.mxu0 0.0
    %2682 = vmatpush1.msra.mxu0 0.0
    %2683 = vmatprep.subr.mxu0 0.0
    %2684 = vmatpush1.msra.mxu0 0.0
    %2685 = vmatprep.subr.mxu0 0.0
    %2686 = vmatpush1.msra.mxu0 0.0
    %2687 = vmatprep.subr.mxu0 0.0
    %2688 = vmatpush1.msra.mxu0 0.0
    %2689 = vmatprep.subr.mxu0 0.0
    %2690 = vmatpush1.msra.mxu0 0.0
    %2691 = vmatprep.subr.mxu0 0.0
    %2692 = vmatpush1.msra.mxu0 0.0
    %2693 = vmatprep.subr.mxu0 0.0
    %2694 = vmatpush1.msra.mxu0 0.0
    %2695 = vmatprep.subr.mxu0 0.0
    %2696 = vmatpush1.msra.mxu0 0.0
    %2697 = vmatprep.subr.mxu0 0.0
    %2698 = vmatpush1.msra.mxu0 0.0
    %2699 = vmatprep.subr.mxu0 0.0
    %2700 = vmatpush1.msra.mxu0 0.0
    %2701 = vmatprep.subr.mxu0 0.0
    %2702 = vmatpush1.msra.mxu0 0.0
    %2703 = vmatprep.subr.mxu0 0.0
    %2704 = vmatpush1.msra.mxu0 0.0
    %2705 = vmatprep.subr.mxu0 0.0
    %2706 = vmatpush1.msra.mxu0 0.0
    %2707 = vmatprep.subr.mxu0 0.0
    %2708 = vmatpush1.msra.mxu0 0.0
    %2709 = vmatprep.mubr.f32.mxu0 0.0
    %2710 = vmatmul.mubr.f32.gmra.mrb[0].mxu0 %v2640
    %v2711 = vpop.f32.mrb[0].mxu0
    %v2712 = vadd.f32 %v2637, %v2711
    %v2713 = vpop.f32.mrb[0].mxu0
    %2714 = vmatprep.mubr.f32.mxu0 0.0
    %2715 = vmatmul.mubr.f32.gmra.mrb[0].mxu0 %v2643
    %v2716 = vpop.f32.mrb[0].mxu0
    %v2717 = vadd.f32 %v2637, %v2716
    %v2718 = vpop.f32.mrb[0].mxu0
    %2719 = vdwg.mxu0
    %v2720 = vld [vmem:[#allocation11] sm:$0xff]
    %v2721 = vld [vmem:[#allocation11 + $0x8] sm:$0xff]
    %v2722 = vld [vmem:[#allocation11 + $0x10] sm:$0xff]
    %v2723 = vld [vmem:[#allocation11 + $0x18] sm:$0xff]
    %v2724 = vld [vmem:[#allocation11 + $0x20] sm:$0xff]
    %v2725 = vld [vmem:[#allocation11 + $0x28] sm:$0xff]
    %v2726 = vld [vmem:[#allocation11 + $0x30] sm:$0xff]
    %v2727 = vld [vmem:[#allocation11 + $0x38] sm:$0xff]
    %v2728 = vld [vmem:[%s11] sm:$0x1]
    %v2730 = vlaneseq
    %v2731 = vshrl.u32 %v2730, 7
    %v2732 = vsub.s32 0, %v2731
    %v2733 = vrot.slane %v2728, %v2732
    %v2736 = vsel %vm204, %v174, 0
    %v2739 = vsel %vm204, %v175, 0
    %2741 = vmatprep.subr.mxu0 0.0
    %2742 = vmatpush1.msra.mxu0 %v2720
    %2743 = vmatprep.subr.mxu0 0.0
    %2744 = vmatpush1.msra.mxu0 %v2721
    %2745 = vmatprep.subr.mxu0 0.0
    %2746 = vmatpush1.msra.mxu0 %v2722
    %2747 = vmatprep.subr.mxu0 0.0
    %2748 = vmatpush1.msra.mxu0 %v2723
    %2749 = vmatprep.subr.mxu0 0.0
    %2750 = vmatpush1.msra.mxu0 %v2724
    %2751 = vmatprep.subr.mxu0 0.0
    %2752 = vmatpush1.msra.mxu0 %v2725
    %2753 = vmatprep.subr.mxu0 0.0
    %2754 = vmatpush1.msra.mxu0 %v2726
    %2755 = vmatprep.subr.mxu0 0.0
    %2756 = vmatpush1.msra.mxu0 %v2727
    %2757 = vmatprep.subr.mxu0 0.0
    %2758 = vmatpush1.msra.mxu0 0.0
    %2759 = vmatprep.subr.mxu0 0.0
    %2760 = vmatpush1.msra.mxu0 0.0
    %2761 = vmatprep.subr.mxu0 0.0
    %2762 = vmatpush1.msra.mxu0 0.0
    %2763 = vmatprep.subr.mxu0 0.0
    %2764 = vmatpush1.msra.mxu0 0.0
    %2765 = vmatprep.subr.mxu0 0.0
    %2766 = vmatpush1.msra.mxu0 0.0
    %2767 = vmatprep.subr.mxu0 0.0
    %2768 = vmatpush1.msra.mxu0 0.0
    %2769 = vmatprep.subr.mxu0 0.0
    %2770 = vmatpush1.msra.mxu0 0.0
    %2771 = vmatprep.subr.mxu0 0.0
    %2772 = vmatpush1.msra.mxu0 0.0
    %2773 = vmatprep.subr.mxu0 0.0
    %2774 = vmatpush1.msra.mxu0 0.0
    %2775 = vmatprep.subr.mxu0 0.0
    %2776 = vmatpush1.msra.mxu0 0.0
    %2777 = vmatprep.subr.mxu0 0.0
    %2778 = vmatpush1.msra.mxu0 0.0
    %2779 = vmatprep.subr.mxu0 0.0
    %2780 = vmatpush1.msra.mxu0 0.0
    %2781 = vmatprep.subr.mxu0 0.0
    %2782 = vmatpush1.msra.mxu0 0.0
    %2783 = vmatprep.subr.mxu0 0.0
    %2784 = vmatpush1.msra.mxu0 0.0
    %2785 = vmatprep.subr.mxu0 0.0
    %2786 = vmatpush1.msra.mxu0 0.0
    %2787 = vmatprep.subr.mxu0 0.0
    %2788 = vmatpush1.msra.mxu0 0.0
    %2789 = vmatprep.subr.mxu0 0.0
    %2790 = vmatpush1.msra.mxu0 0.0
    %2791 = vmatprep.subr.mxu0 0.0
    %2792 = vmatpush1.msra.mxu0 0.0
    %2793 = vmatprep.subr.mxu0 0.0
    %2794 = vmatpush1.msra.mxu0 0.0
    %2795 = vmatprep.subr.mxu0 0.0
    %2796 = vmatpush1.msra.mxu0 0.0
    %2797 = vmatprep.subr.mxu0 0.0
    %2798 = vmatpush1.msra.mxu0 0.0
    %2799 = vmatprep.subr.mxu0 0.0
    %2800 = vmatpush1.msra.mxu0 0.0
    %2801 = vmatprep.subr.mxu0 0.0
    %2802 = vmatpush1.msra.mxu0 0.0
    %2803 = vmatprep.subr.mxu0 0.0
    %2804 = vmatpush1.msra.mxu0 0.0
    %2805 = vmatprep.mubr.f32.mxu0 0.0
    %2806 = vmatmul.mubr.f32.gmra.mrb[0].mxu0 %v2736
    %v2807 = vpop.f32.mrb[0].mxu0
    %v2808 = vadd.f32 %v2733, %v2807
    %v2809 = vpop.f32.mrb[0].mxu0
    %2810 = vmatprep.mubr.f32.mxu0 0.0
    %2811 = vmatmul.mubr.f32.gmra.mrb[0].mxu0 %v2739
    %v2812 = vpop.f32.mrb[0].mxu0
    %v2813 = vadd.f32 %v2733, %v2812
    %v2814 = vpop.f32.mrb[0].mxu0
    %2815 = vdwg.mxu0
    %2818 = vrot.lane.b32.xlu0 %v2712, 120
    %v2819 = vpop.permute.xlu0 %2818
    %2820 = vrot.lane.b32.xlu0 %v2717, 120
    %v2821 = vpop.permute.xlu0 %2820
    %2822 = vrot.lane.b32.xlu0 %v2712, 112
    %v2823 = vpop.permute.xlu0 %2822
    %2824 = vrot.lane.b32.xlu0 %v2717, 112
    %v2825 = vpop.permute.xlu0 %2824
    %2826 = vrot.lane.b32.xlu0 %v2712, 104
    %v2827 = vpop.permute.xlu0 %2826
    %2828 = vrot.lane.b32.xlu0 %v2717, 104
    %v2829 = vpop.permute.xlu0 %2828
    %2830 = vrot.lane.b32.xlu0 %v2712, 96
    %v2831 = vpop.permute.xlu0 %2830
    %2832 = vrot.lane.b32.xlu0 %v2717, 96
    %v2833 = vpop.permute.xlu0 %2832
    %2834 = vrot.lane.b32.xlu0 %v2712, 88
    %v2835 = vpop.permute.xlu0 %2834
    %2836 = vrot.lane.b32.xlu0 %v2717, 88
    %v2837 = vpop.permute.xlu0 %2836
    %2838 = vrot.lane.b32.xlu0 %v2712, 80
    %v2839 = vpop.permute.xlu0 %2838
    %2840 = vrot.lane.b32.xlu0 %v2717, 80
    %v2841 = vpop.permute.xlu0 %2840
    %2842 = vrot.lane.b32.xlu0 %v2712, 72
    %v2843 = vpop.permute.xlu0 %2842
    %2844 = vrot.lane.b32.xlu0 %v2717, 72
    %v2845 = vpop.permute.xlu0 %2844
    %2848 = vrot.lane.b32.xlu0 %v2808, 120
    %v2849 = vpop.permute.xlu0 %2848
    %2850 = vrot.lane.b32.xlu0 %v2813, 120
    %v2851 = vpop.permute.xlu0 %2850
    %2852 = vrot.lane.b32.xlu0 %v2808, 112
    %v2853 = vpop.permute.xlu0 %2852
    %2854 = vrot.lane.b32.xlu0 %v2813, 112
    %v2855 = vpop.permute.xlu0 %2854
    %2856 = vrot.lane.b32.xlu0 %v2808, 104
    %v2857 = vpop.permute.xlu0 %2856
    %2858 = vrot.lane.b32.xlu0 %v2813, 104
    %v2859 = vpop.permute.xlu0 %2858
    %2860 = vrot.lane.b32.xlu0 %v2808, 96
    %v2861 = vpop.permute.xlu0 %2860
    %2862 = vrot.lane.b32.xlu0 %v2813, 96
    %v2863 = vpop.permute.xlu0 %2862
    %2864 = vrot.lane.b32.xlu0 %v2808, 88
    %v2865 = vpop.permute.xlu0 %2864
    %2866 = vrot.lane.b32.xlu0 %v2813, 88
    %v2867 = vpop.permute.xlu0 %2866
    %2868 = vrot.lane.b32.xlu0 %v2808, 80
    %v2869 = vpop.permute.xlu0 %2868
    %2870 = vrot.lane.b32.xlu0 %v2813, 80
    %v2871 = vpop.permute.xlu0 %2870
    %2872 = vrot.lane.b32.xlu0 %v2808, 72
    %v2873 = vpop.permute.xlu0 %2872
    %2874 = vrot.lane.b32.xlu0 %v2813, 72
    %v2875 = vpop.permute.xlu0 %2874
    %v2876 = vld [vmem:[#allocation8] sm:$0xff]
    %v2877 = vld [vmem:[#allocation8 + $0x8] sm:$0xff]
    %v2878 = vld [vmem:[#allocation13] sm:$0xff]
    %v2879 = vld [vmem:[#allocation13 + $0x8] sm:$0xff]
    %v2880 = vld [vmem:[#allocation13 + $0x10] sm:$0xff]
    %v2881 = vld [vmem:[#allocation13 + $0x18] sm:$0xff]
    %v2882 = vld [vmem:[#allocation13 + $0x20] sm:$0xff]
    %v2883 = vld [vmem:[#allocation13 + $0x28] sm:$0xff]
    %v2884 = vld [vmem:[#allocation13 + $0x30] sm:$0xff]
    %v2885 = vld [vmem:[#allocation13 + $0x38] sm:$0xff]
    %v2886 = vld [vmem:[%s13] sm:$0x1]
    %v2887 = vsel %vm377, %v2712, 0
    %v2889 = vsel %vm377, %v2717, 0
    %v2891 = vsel %vm377, %v2808, 0
    %v2893 = vsel %vm377, %v2813, 0
    %2895 = vmatprep.subr.mxu0 0.0
    %2896 = vmatpush1.xpose.msra.mxu0 %v2891
    %2897 = vmatprep.subr.mxu0 0.0
    %2898 = vmatpush1.xpose.msra.mxu0 %v2893
    %2899 = vmatprep.subr.mxu0 0.0
    %2900 = vmatpush1.xpose.msra.mxu0 0.0
    %2901 = vmatprep.subr.mxu0 0.0
    %2902 = vmatpush1.xpose.msra.mxu0 0.0
    %2903 = vmatprep.subr.mxu0 0.0
    %2904 = vmatpush1.xpose.msra.mxu0 0.0
    %2905 = vmatprep.subr.mxu0 0.0
    %2906 = vmatpush1.xpose.msra.mxu0 0.0
    %2907 = vmatprep.subr.mxu0 0.0
    %2908 = vmatpush1.xpose.msra.mxu0 0.0
    %2909 = vmatprep.subr.mxu0 0.0
    %2910 = vmatpush1.xpose.msra.mxu0 0.0
    %2911 = vmatprep.subr.mxu0 0.0
    %2912 = vmatpush1.xpose.msra.mxu0 0.0
    %2913 = vmatprep.subr.mxu0 0.0
    %2914 = vmatpush1.xpose.msra.mxu0 0.0
    %2915 = vmatprep.subr.mxu0 0.0
    %2916 = vmatpush1.xpose.msra.mxu0 0.0
    %2917 = vmatprep.subr.mxu0 0.0
    %2918 = vmatpush1.xpose.msra.mxu0 0.0
    %2919 = vmatprep.subr.mxu0 0.0
    %2920 = vmatpush1.xpose.msra.mxu0 0.0
    %2921 = vmatprep.subr.mxu0 0.0
    %2922 = vmatpush1.xpose.msra.mxu0 0.0
    %2923 = vmatprep.subr.mxu0 0.0
    %2924 = vmatpush1.xpose.msra.mxu0 0.0
    %2925 = vmatprep.subr.mxu0 0.0
    %2926 = vmatpush1.xpose.msra.mxu0 0.0
    %2927 = vmatprep.subr.mxu0 0.0
    %2928 = vmatpush1.xpose.msra.mxu0 0.0
    %2929 = vmatprep.subr.mxu0 0.0
    %2930 = vmatpush1.xpose.msra.mxu0 0.0
    %2931 = vmatprep.subr.mxu0 0.0
    %2932 = vmatpush1.xpose.msra.mxu0 0.0
    %2933 = vmatprep.subr.mxu0 0.0
    %2934 = vmatpush1.xpose.msra.mxu0 0.0
    %2935 = vmatprep.subr.mxu0 0.0
    %2936 = vmatpush1.xpose.msra.mxu0 0.0
    %2937 = vmatprep.subr.mxu0 0.0
    %2938 = vmatpush1.xpose.msra.mxu0 0.0
    %2939 = vmatprep.subr.mxu0 0.0
    %2940 = vmatpush1.xpose.msra.mxu0 0.0
    %2941 = vmatprep.subr.mxu0 0.0
    %2942 = vmatpush1.xpose.msra.mxu0 0.0
    %2943 = vmatprep.subr.mxu0 0.0
    %2944 = vmatpush1.xpose.msra.mxu0 0.0
    %2945 = vmatprep.subr.mxu0 0.0
    %2946 = vmatpush1.xpose.msra.mxu0 0.0
    %2947 = vmatprep.subr.mxu0 0.0
    %2948 = vmatpush1.xpose.msra.mxu0 0.0
    %2949 = vmatprep.subr.mxu0 0.0
    %2950 = vmatpush1.xpose.msra.mxu0 0.0
    %2951 = vmatprep.subr.mxu0 0.0
    %2952 = vmatpush1.xpose.msra.mxu0 0.0
    %2953 = vmatprep.subr.mxu0 0.0
    %2954 = vmatpush1.xpose.msra.mxu0 0.0
    %2955 = vmatprep.subr.mxu0 0.0
    %2956 = vmatpush1.xpose.msra.mxu0 0.0
    %2957 = vmatprep.subr.mxu0 0.0
    %2958 = vmatpush1.xpose.msra.mxu0 0.0
    %2959 = vmatprep.mubr.f32.mxu0 0.0
    %2960 = vmatmul.mubr.f32.gmra.mrb[0].mxu0 %v2887
    %v2961 = vpop.f32.mrb[0].mxu0
    %v2962 = vadd.f32 %v2876, %v2961
    %v2963 = vpop.f32.mrb[0].mxu0
    %2964 = vmatprep.mubr.f32.mxu0 0.0
    %2965 = vmatmul.mubr.f32.gmra.mrb[0].mxu0 %v2889
    %v2966 = vpop.f32.mrb[0].mxu0
    %v2967 = vadd.f32 %v2877, %v2966
    %v2968 = vpop.f32.mrb[0].mxu0
    %2969 = vdwg.mxu0
    %v2970 = vsel %vm377, %v2819, 0
    %v2972 = vsel %vm377, %v2821, 0
    %v2974 = vsel %vm377, %v2849, 0
    %v2976 = vsel %vm377, %v2851, 0
    %2978 = vmatprep.subr.mxu0 0.0
    %2979 = vmatpush1.xpose.msra.mxu0 %v2974
    %2980 = vmatprep.subr.mxu0 0.0
    %2981 = vmatpush1.xpose.msra.mxu0 %v2976
    %2982 = vmatprep.subr.mxu0 0.0
    %2983 = vmatpush1.xpose.msra.mxu0 0.0
    %2984 = vmatprep.subr.mxu0 0.0
    %2985 = vmatpush1.xpose.msra.mxu0 0.0
    %2986 = vmatprep.subr.mxu0 0.0
    %2987 = vmatpush1.xpose.msra.mxu0 0.0
    %2988 = vmatprep.subr.mxu0 0.0
    %2989 = vmatpush1.xpose.msra.mxu0 0.0
    %2990 = vmatprep.subr.mxu0 0.0
    %2991 = vmatpush1.xpose.msra.mxu0 0.0
    %2992 = vmatprep.subr.mxu0 0.0
    %2993 = vmatpush1.xpose.msra.mxu0 0.0
    %2994 = vmatprep.subr.mxu0 0.0
    %2995 = vmatpush1.xpose.msra.mxu0 0.0
    %2996 = vmatprep.subr.mxu0 0.0
    %2997 = vmatpush1.xpose.msra.mxu0 0.0
    %2998 = vmatprep.subr.mxu0 0.0
    %2999 = vmatpush1.xpose.msra.mxu0 0.0
    %3000 = vmatprep.subr.mxu0 0.0
    %3001 = vmatpush1.xpose.msra.mxu0 0.0
    %3002 = vmatprep.subr.mxu0 0.0
    %3003 = vmatpush1.xpose.msra.mxu0 0.0
    %3004 = vmatprep.subr.mxu0 0.0
    %3005 = vmatpush1.xpose.msra.mxu0 0.0
    %3006 = vmatprep.subr.mxu0 0.0
    %3007 = vmatpush1.xpose.msra.mxu0 0.0
    %3008 = vmatprep.subr.mxu0 0.0
    %3009 = vmatpush1.xpose.msra.mxu0 0.0
    %3010 = vmatprep.subr.mxu0 0.0
    %3011 = vmatpush1.xpose.msra.mxu0 0.0
    %3012 = vmatprep.subr.mxu0 0.0
    %3013 = vmatpush1.xpose.msra.mxu0 0.0
    %3014 = vmatprep.subr.mxu0 0.0
    %3015 = vmatpush1.xpose.msra.mxu0 0.0
    %3016 = vmatprep.subr.mxu0 0.0
    %3017 = vmatpush1.xpose.msra.mxu0 0.0
    %3018 = vmatprep.subr.mxu0 0.0
    %3019 = vmatpush1.xpose.msra.mxu0 0.0
    %3020 = vmatprep.subr.mxu0 0.0
    %3021 = vmatpush1.xpose.msra.mxu0 0.0
    %3022 = vmatprep.subr.mxu0 0.0
    %3023 = vmatpush1.xpose.msra.mxu0 0.0
    %3024 = vmatprep.subr.mxu0 0.0
    %3025 = vmatpush1.xpose.msra.mxu0 0.0
    %3026 = vmatprep.subr.mxu0 0.0
    %3027 = vmatpush1.xpose.msra.mxu0 0.0
    %3028 = vmatprep.subr.mxu0 0.0
    %3029 = vmatpush1.xpose.msra.mxu0 0.0
    %3030 = vmatprep.subr.mxu0 0.0
    %3031 = vmatpush1.xpose.msra.mxu0 0.0
    %3032 = vmatprep.subr.mxu0 0.0
    %3033 = vmatpush1.xpose.msra.mxu0 0.0
    %3034 = vmatprep.subr.mxu0 0.0
    %3035 = vmatpush1.xpose.msra.mxu0 0.0
    %3036 = vmatprep.subr.mxu0 0.0
    %3037 = vmatpush1.xpose.msra.mxu0 0.0
    %3038 = vmatprep.subr.mxu0 0.0
    %3039 = vmatpush1.xpose.msra.mxu0 0.0
    %3040 = vmatprep.subr.mxu0 0.0
    %3041 = vmatpush1.xpose.msra.mxu0 0.0
    %3042 = vmatprep.mubr.f32.mxu0 0.0
    %3043 = vmatmul.mubr.f32.gmra.mrb[0].mxu0 %v2970
    %v3044 = vpop.f32.mrb[0].mxu0
    %v3045 = vadd.f32 %v2876, %v3044
    %v3046 = vpop.f32.mrb[0].mxu0
    %3047 = vmatprep.mubr.f32.mxu0 0.0
    %3048 = vmatmul.mubr.f32.gmra.mrb[0].mxu0 %v2972
    %v3049 = vpop.f32.mrb[0].mxu0
    %v3050 = vadd.f32 %v2877, %v3049
    %v3051 = vpop.f32.mrb[0].mxu0
    %3052 = vdwg.mxu0
    %v3053 = vsel %vm377, %v2823, 0
    %v3055 = vsel %vm377, %v2825, 0
    %v3057 = vsel %vm377, %v2853, 0
    %v3059 = vsel %vm377, %v2855, 0
    %3061 = vmatprep.subr.mxu0 0.0
    %3062 = vmatpush1.xpose.msra.mxu0 %v3057
    %3063 = vmatprep.subr.mxu0 0.0
    %3064 = vmatpush1.xpose.msra.mxu0 %v3059
    %3065 = vmatprep.subr.mxu0 0.0
    %3066 = vmatpush1.xpose.msra.mxu0 0.0
    %3067 = vmatprep.subr.mxu0 0.0
    %3068 = vmatpush1.xpose.msra.mxu0 0.0
    %3069 = vmatprep.subr.mxu0 0.0
    %3070 = vmatpush1.xpose.msra.mxu0 0.0
    %3071 = vmatprep.subr.mxu0 0.0
    %3072 = vmatpush1.xpose.msra.mxu0 0.0
    %3073 = vmatprep.subr.mxu0 0.0
    %3074 = vmatpush1.xpose.msra.mxu0 0.0
    %3075 = vmatprep.subr.mxu0 0.0
    %3076 = vmatpush1.xpose.msra.mxu0 0.0
    %3077 = vmatprep.subr.mxu0 0.0
    %3078 = vmatpush1.xpose.msra.mxu0 0.0
    %3079 = vmatprep.subr.mxu0 0.0
    %3080 = vmatpush1.xpose.msra.mxu0 0.0
    %3081 = vmatprep.subr.mxu0 0.0
    %3082 = vmatpush1.xpose.msra.mxu0 0.0
    %3083 = vmatprep.subr.mxu0 0.0
    %3084 = vmatpush1.xpose.msra.mxu0 0.0
    %3085 = vmatprep.subr.mxu0 0.0
    %3086 = vmatpush1.xpose.msra.mxu0 0.0
    %3087 = vmatprep.subr.mxu0 0.0
    %3088 = vmatpush1.xpose.msra.mxu0 0.0
    %3089 = vmatprep.subr.mxu0 0.0
    %3090 = vmatpush1.xpose.msra.mxu0 0.0
    %3091 = vmatprep.subr.mxu0 0.0
    %3092 = vmatpush1.xpose.msra.mxu0 0.0
    %3093 = vmatprep.subr.mxu0 0.0
    %3094 = vmatpush1.xpose.msra.mxu0 0.0
    %3095 = vmatprep.subr.mxu0 0.0
    %3096 = vmatpush1.xpose.msra.mxu0 0.0
    %3097 = vmatprep.subr.mxu0 0.0
    %3098 = vmatpush1.xpose.msra.mxu0 0.0
    %3099 = vmatprep.subr.mxu0 0.0
    %3100 = vmatpush1.xpose.msra.mxu0 0.0
    %3101 = vmatprep.subr.mxu0 0.0
    %3102 = vmatpush1.xpose.msra.mxu0 0.0
    %3103 = vmatprep.subr.mxu0 0.0
    %3104 = vmatpush1.xpose.msra.mxu0 0.0
    %3105 = vmatprep.subr.mxu0 0.0
    %3106 = vmatpush1.xpose.msra.mxu0 0.0
    %3107 = vmatprep.subr.mxu0 0.0
    %3108 = vmatpush1.xpose.msra.mxu0 0.0
    %3109 = vmatprep.subr.mxu0 0.0
    %3110 = vmatpush1.xpose.msra.mxu0 0.0
    %3111 = vmatprep.subr.mxu0 0.0
    %3112 = vmatpush1.xpose.msra.mxu0 0.0
    %3113 = vmatprep.subr.mxu0 0.0
    %3114 = vmatpush1.xpose.msra.mxu0 0.0
    %3115 = vmatprep.subr.mxu0 0.0
    %3116 = vmatpush1.xpose.msra.mxu0 0.0
    %3117 = vmatprep.subr.mxu0 0.0
    %3118 = vmatpush1.xpose.msra.mxu0 0.0
    %3119 = vmatprep.subr.mxu0 0.0
    %3120 = vmatpush1.xpose.msra.mxu0 0.0
    %3121 = vmatprep.subr.mxu0 0.0
    %3122 = vmatpush1.xpose.msra.mxu0 0.0
    %3123 = vmatprep.subr.mxu0 0.0
    %3124 = vmatpush1.xpose.msra.mxu0 0.0
    %3125 = vmatprep.mubr.f32.mxu0 0.0
    %3126 = vmatmul.mubr.f32.gmra.mrb[0].mxu0 %v3053
    %v3127 = vpop.f32.mrb[0].mxu0
    %v3128 = vadd.f32 %v2876, %v3127
    %v3129 = vpop.f32.mrb[0].mxu0
    %3130 = vmatprep.mubr.f32.mxu0 0.0
    %3131 = vmatmul.mubr.f32.gmra.mrb[0].mxu0 %v3055
    %v3132 = vpop.f32.mrb[0].mxu0
    %v3133 = vadd.f32 %v2877, %v3132
    %v3134 = vpop.f32.mrb[0].mxu0
    %3135 = vdwg.mxu0
    %v3136 = vsel %vm377, %v2827, 0
    %v3138 = vsel %vm377, %v2829, 0
    %v3140 = vsel %vm377, %v2857, 0
    %v3142 = vsel %vm377, %v2859, 0
    %3144 = vmatprep.subr.mxu0 0.0
    %3145 = vmatpush1.xpose.msra.mxu0 %v3140
    %3146 = vmatprep.subr.mxu0 0.0
    %3147 = vmatpush1.xpose.msra.mxu0 %v3142
    %3148 = vmatprep.subr.mxu0 0.0
    %3149 = vmatpush1.xpose.msra.mxu0 0.0
    %3150 = vmatprep.subr.mxu0 0.0
    %3151 = vmatpush1.xpose.msra.mxu0 0.0
    %3152 = vmatprep.subr.mxu0 0.0
    %3153 = vmatpush1.xpose.msra.mxu0 0.0
    %3154 = vmatprep.subr.mxu0 0.0
    %3155 = vmatpush1.xpose.msra.mxu0 0.0
    %3156 = vmatprep.subr.mxu0 0.0
    %3157 = vmatpush1.xpose.msra.mxu0 0.0
    %3158 = vmatprep.subr.mxu0 0.0
    %3159 = vmatpush1.xpose.msra.mxu0 0.0
    %3160 = vmatprep.subr.mxu0 0.0
    %3161 = vmatpush1.xpose.msra.mxu0 0.0
    %3162 = vmatprep.subr.mxu0 0.0
    %3163 = vmatpush1.xpose.msra.mxu0 0.0
    %3164 = vmatprep.subr.mxu0 0.0
    %3165 = vmatpush1.xpose.msra.mxu0 0.0
    %3166 = vmatprep.subr.mxu0 0.0
    %3167 = vmatpush1.xpose.msra.mxu0 0.0
    %3168 = vmatprep.subr.mxu0 0.0
    %3169 = vmatpush1.xpose.msra.mxu0 0.0
    %3170 = vmatprep.subr.mxu0 0.0
    %3171 = vmatpush1.xpose.msra.mxu0 0.0
    %3172 = vmatprep.subr.mxu0 0.0
    %3173 = vmatpush1.xpose.msra.mxu0 0.0
    %3174 = vmatprep.subr.mxu0 0.0
    %3175 = vmatpush1.xpose.msra.mxu0 0.0
    %3176 = vmatprep.subr.mxu0 0.0
    %3177 = vmatpush1.xpose.msra.mxu0 0.0
    %3178 = vmatprep.subr.mxu0 0.0
    %3179 = vmatpush1.xpose.msra.mxu0 0.0
    %3180 = vmatprep.subr.mxu0 0.0
    %3181 = vmatpush1.xpose.msra.mxu0 0.0
    %3182 = vmatprep.subr.mxu0 0.0
    %3183 = vmatpush1.xpose.msra.mxu0 0.0
    %3184 = vmatprep.subr.mxu0 0.0
    %3185 = vmatpush1.xpose.msra.mxu0 0.0
    %3186 = vmatprep.subr.mxu0 0.0
    %3187 = vmatpush1.xpose.msra.mxu0 0.0
    %3188 = vmatprep.subr.mxu0 0.0
    %3189 = vmatpush1.xpose.msra.mxu0 0.0
    %3190 = vmatprep.subr.mxu0 0.0
    %3191 = vmatpush1.xpose.msra.mxu0 0.0
    %3192 = vmatprep.subr.mxu0 0.0
    %3193 = vmatpush1.xpose.msra.mxu0 0.0
    %3194 = vmatprep.subr.mxu0 0.0
    %3195 = vmatpush1.xpose.msra.mxu0 0.0
    %3196 = vmatprep.subr.mxu0 0.0
    %3197 = vmatpush1.xpose.msra.mxu0 0.0
    %3198 = vmatprep.subr.mxu0 0.0
    %3199 = vmatpush1.xpose.msra.mxu0 0.0
    %3200 = vmatprep.subr.mxu0 0.0
    %3201 = vmatpush1.xpose.msra.mxu0 0.0
    %3202 = vmatprep.subr.mxu0 0.0
    %3203 = vmatpush1.xpose.msra.mxu0 0.0
    %3204 = vmatprep.subr.mxu0 0.0
    %3205 = vmatpush1.xpose.msra.mxu0 0.0
    %3206 = vmatprep.subr.mxu0 0.0
    %3207 = vmatpush1.xpose.msra.mxu0 0.0
    %3208 = vmatprep.mubr.f32.mxu0 0.0
    %3209 = vmatmul.mubr.f32.gmra.mrb[0].mxu0 %v3136
    %v3210 = vpop.f32.mrb[0].mxu0
    %v3211 = vadd.f32 %v2876, %v3210
    %v3212 = vpop.f32.mrb[0].mxu0
    %3213 = vmatprep.mubr.f32.mxu0 0.0
    %3214 = vmatmul.mubr.f32.gmra.mrb[0].mxu0 %v3138
    %v3215 = vpop.f32.mrb[0].mxu0
    %v3216 = vadd.f32 %v2877, %v3215
    %v3217 = vpop.f32.mrb[0].mxu0
    %3218 = vdwg.mxu0
    %v3219 = vsel %vm377, %v2831, 0
    %v3221 = vsel %vm377, %v2833, 0
    %v3223 = vsel %vm377, %v2861, 0
    %v3225 = vsel %vm377, %v2863, 0
    %3227 = vmatprep.subr.mxu0 0.0
    %3228 = vmatpush1.xpose.msra.mxu0 %v3223
    %3229 = vmatprep.subr.mxu0 0.0
    %3230 = vmatpush1.xpose.msra.mxu0 %v3225
    %3231 = vmatprep.subr.mxu0 0.0
    %3232 = vmatpush1.xpose.msra.mxu0 0.0
    %3233 = vmatprep.subr.mxu0 0.0
    %3234 = vmatpush1.xpose.msra.mxu0 0.0
    %3235 = vmatprep.subr.mxu0 0.0
    %3236 = vmatpush1.xpose.msra.mxu0 0.0
    %3237 = vmatprep.subr.mxu0 0.0
    %3238 = vmatpush1.xpose.msra.mxu0 0.0
    %3239 = vmatprep.subr.mxu0 0.0
    %3240 = vmatpush1.xpose.msra.mxu0 0.0
    %3241 = vmatprep.subr.mxu0 0.0
    %3242 = vmatpush1.xpose.msra.mxu0 0.0
    %3243 = vmatprep.subr.mxu0 0.0
    %3244 = vmatpush1.xpose.msra.mxu0 0.0
    %3245 = vmatprep.subr.mxu0 0.0
    %3246 = vmatpush1.xpose.msra.mxu0 0.0
    %3247 = vmatprep.subr.mxu0 0.0
    %3248 = vmatpush1.xpose.msra.mxu0 0.0
    %3249 = vmatprep.subr.mxu0 0.0
    %3250 = vmatpush1.xpose.msra.mxu0 0.0
    %3251 = vmatprep.subr.mxu0 0.0
    %3252 = vmatpush1.xpose.msra.mxu0 0.0
    %3253 = vmatprep.subr.mxu0 0.0
    %3254 = vmatpush1.xpose.msra.mxu0 0.0
    %3255 = vmatprep.subr.mxu0 0.0
    %3256 = vmatpush1.xpose.msra.mxu0 0.0
    %3257 = vmatprep.subr.mxu0 0.0
    %3258 = vmatpush1.xpose.msra.mxu0 0.0
    %3259 = vmatprep.subr.mxu0 0.0
    %3260 = vmatpush1.xpose.msra.mxu0 0.0
    %3261 = vmatprep.subr.mxu0 0.0
    %3262 = vmatpush1.xpose.msra.mxu0 0.0
    %3263 = vmatprep.subr.mxu0 0.0
    %3264 = vmatpush1.xpose.msra.mxu0 0.0
    %3265 = vmatprep.subr.mxu0 0.0
    %3266 = vmatpush1.xpose.msra.mxu0 0.0
    %3267 = vmatprep.subr.mxu0 0.0
    %3268 = vmatpush1.xpose.msra.mxu0 0.0
    %3269 = vmatprep.subr.mxu0 0.0
    %3270 = vmatpush1.xpose.msra.mxu0 0.0
    %3271 = vmatprep.subr.mxu0 0.0
    %3272 = vmatpush1.xpose.msra.mxu0 0.0
    %3273 = vmatprep.subr.mxu0 0.0
    %3274 = vmatpush1.xpose.msra.mxu0 0.0
    %3275 = vmatprep.subr.mxu0 0.0
    %3276 = vmatpush1.xpose.msra.mxu0 0.0
    %3277 = vmatprep.subr.mxu0 0.0
    %3278 = vmatpush1.xpose.msra.mxu0 0.0
    %3279 = vmatprep.subr.mxu0 0.0
    %3280 = vmatpush1.xpose.msra.mxu0 0.0
    %3281 = vmatprep.subr.mxu0 0.0
    %3282 = vmatpush1.xpose.msra.mxu0 0.0
    %3283 = vmatprep.subr.mxu0 0.0
    %3284 = vmatpush1.xpose.msra.mxu0 0.0
    %3285 = vmatprep.subr.mxu0 0.0
    %3286 = vmatpush1.xpose.msra.mxu0 0.0
    %3287 = vmatprep.subr.mxu0 0.0
    %3288 = vmatpush1.xpose.msra.mxu0 0.0
    %3289 = vmatprep.subr.mxu0 0.0
    %3290 = vmatpush1.xpose.msra.mxu0 0.0
    %3291 = vmatprep.mubr.f32.mxu0 0.0
    %3292 = vmatmul.mubr.f32.gmra.mrb[0].mxu0 %v3219
    %v3293 = vpop.f32.mrb[0].mxu0
    %v3294 = vadd.f32 %v2876, %v3293
    %v3295 = vpop.f32.mrb[0].mxu0
    %3296 = vmatprep.mubr.f32.mxu0 0.0
    %3297 = vmatmul.mubr.f32.gmra.mrb[0].mxu0 %v3221
    %v3298 = vpop.f32.mrb[0].mxu0
    %v3299 = vadd.f32 %v2877, %v3298
    %v3300 = vpop.f32.mrb[0].mxu0
    %3301 = vdwg.mxu0
    %v3302 = vsel %vm377, %v2835, 0
    %v3304 = vsel %vm377, %v2837, 0
    %v3306 = vsel %vm377, %v2865, 0
    %v3308 = vsel %vm377, %v2867, 0
    %3310 = vmatprep.subr.mxu0 0.0
    %3311 = vmatpush1.xpose.msra.mxu0 %v3306
    %3312 = vmatprep.subr.mxu0 0.0
    %3313 = vmatpush1.xpose.msra.mxu0 %v3308
    %3314 = vmatprep.subr.mxu0 0.0
    %3315 = vmatpush1.xpose.msra.mxu0 0.0
    %3316 = vmatprep.subr.mxu0 0.0
    %3317 = vmatpush1.xpose.msra.mxu0 0.0
    %3318 = vmatprep.subr.mxu0 0.0
    %3319 = vmatpush1.xpose.msra.mxu0 0.0
    %3320 = vmatprep.subr.mxu0 0.0
    %3321 = vmatpush1.xpose.msra.mxu0 0.0
    %3322 = vmatprep.subr.mxu0 0.0
    %3323 = vmatpush1.xpose.msra.mxu0 0.0
    %3324 = vmatprep.subr.mxu0 0.0
    %3325 = vmatpush1.xpose.msra.mxu0 0.0
    %3326 = vmatprep.subr.mxu0 0.0
    %3327 = vmatpush1.xpose.msra.mxu0 0.0
    %3328 = vmatprep.subr.mxu0 0.0
    %3329 = vmatpush1.xpose.msra.mxu0 0.0
    %3330 = vmatprep.subr.mxu0 0.0
    %3331 = vmatpush1.xpose.msra.mxu0 0.0
    %3332 = vmatprep.subr.mxu0 0.0
    %3333 = vmatpush1.xpose.msra.mxu0 0.0
    %3334 = vmatprep.subr.mxu0 0.0
    %3335 = vmatpush1.xpose.msra.mxu0 0.0
    %3336 = vmatprep.subr.mxu0 0.0
    %3337 = vmatpush1.xpose.msra.mxu0 0.0
    %3338 = vmatprep.subr.mxu0 0.0
    %3339 = vmatpush1.xpose.msra.mxu0 0.0
    %3340 = vmatprep.subr.mxu0 0.0
    %3341 = vmatpush1.xpose.msra.mxu0 0.0
    %3342 = vmatprep.subr.mxu0 0.0
    %3343 = vmatpush1.xpose.msra.mxu0 0.0
    %3344 = vmatprep.subr.mxu0 0.0
    %3345 = vmatpush1.xpose.msra.mxu0 0.0
    %3346 = vmatprep.subr.mxu0 0.0
    %3347 = vmatpush1.xpose.msra.mxu0 0.0
    %3348 = vmatprep.subr.mxu0 0.0
    %3349 = vmatpush1.xpose.msra.mxu0 0.0
    %3350 = vmatprep.subr.mxu0 0.0
    %3351 = vmatpush1.xpose.msra.mxu0 0.0
    %3352 = vmatprep.subr.mxu0 0.0
    %3353 = vmatpush1.xpose.msra.mxu0 0.0
    %3354 = vmatprep.subr.mxu0 0.0
    %3355 = vmatpush1.xpose.msra.mxu0 0.0
    %3356 = vmatprep.subr.mxu0 0.0
    %3357 = vmatpush1.xpose.msra.mxu0 0.0
    %3358 = vmatprep.subr.mxu0 0.0
    %3359 = vmatpush1.xpose.msra.mxu0 0.0
    %3360 = vmatprep.subr.mxu0 0.0
    %3361 = vmatpush1.xpose.msra.mxu0 0.0
    %3362 = vmatprep.subr.mxu0 0.0
    %3363 = vmatpush1.xpose.msra.mxu0 0.0
    %3364 = vmatprep.subr.mxu0 0.0
    %3365 = vmatpush1.xpose.msra.mxu0 0.0
    %3366 = vmatprep.subr.mxu0 0.0
    %3367 = vmatpush1.xpose.msra.mxu0 0.0
    %3368 = vmatprep.subr.mxu0 0.0
    %3369 = vmatpush1.xpose.msra.mxu0 0.0
    %3370 = vmatprep.subr.mxu0 0.0
    %3371 = vmatpush1.xpose.msra.mxu0 0.0
    %3372 = vmatprep.subr.mxu0 0.0
    %3373 = vmatpush1.xpose.msra.mxu0 0.0
    %3374 = vmatprep.mubr.f32.mxu0 0.0
    %3375 = vmatmul.mubr.f32.gmra.mrb[0].mxu0 %v3302
    %v3376 = vpop.f32.mrb[0].mxu0
    %v3377 = vadd.f32 %v2876, %v3376
    %v3378 = vpop.f32.mrb[0].mxu0
    %3379 = vmatprep.mubr.f32.mxu0 0.0
    %3380 = vmatmul.mubr.f32.gmra.mrb[0].mxu0 %v3304
    %v3381 = vpop.f32.mrb[0].mxu0
    %v3382 = vadd.f32 %v2877, %v3381
    %v3383 = vpop.f32.mrb[0].mxu0
    %3384 = vdwg.mxu0
    %v3385 = vsel %vm377, %v2839, 0
    %v3387 = vsel %vm377, %v2841, 0
    %v3389 = vsel %vm377, %v2869, 0
    %v3391 = vsel %vm377, %v2871, 0
    %3393 = vmatprep.subr.mxu0 0.0
    %3394 = vmatpush1.xpose.msra.mxu0 %v3389
    %3395 = vmatprep.subr.mxu0 0.0
    %3396 = vmatpush1.xpose.msra.mxu0 %v3391
    %3397 = vmatprep.subr.mxu0 0.0
    %3398 = vmatpush1.xpose.msra.mxu0 0.0
    %3399 = vmatprep.subr.mxu0 0.0
    %3400 = vmatpush1.xpose.msra.mxu0 0.0
    %3401 = vmatprep.subr.mxu0 0.0
    %3402 = vmatpush1.xpose.msra.mxu0 0.0
    %3403 = vmatprep.subr.mxu0 0.0
    %3404 = vmatpush1.xpose.msra.mxu0 0.0
    %3405 = vmatprep.subr.mxu0 0.0
    %3406 = vmatpush1.xpose.msra.mxu0 0.0
    %3407 = vmatprep.subr.mxu0 0.0
    %3408 = vmatpush1.xpose.msra.mxu0 0.0
    %3409 = vmatprep.subr.mxu0 0.0
    %3410 = vmatpush1.xpose.msra.mxu0 0.0
    %3411 = vmatprep.subr.mxu0 0.0
    %3412 = vmatpush1.xpose.msra.mxu0 0.0
    %3413 = vmatprep.subr.mxu0 0.0
    %3414 = vmatpush1.xpose.msra.mxu0 0.0
    %3415 = vmatprep.subr.mxu0 0.0
    %3416 = vmatpush1.xpose.msra.mxu0 0.0
    %3417 = vmatprep.subr.mxu0 0.0
    %3418 = vmatpush1.xpose.msra.mxu0 0.0
    %3419 = vmatprep.subr.mxu0 0.0
    %3420 = vmatpush1.xpose.msra.mxu0 0.0
    %3421 = vmatprep.subr.mxu0 0.0
    %3422 = vmatpush1.xpose.msra.mxu0 0.0
    %3423 = vmatprep.subr.mxu0 0.0
    %3424 = vmatpush1.xpose.msra.mxu0 0.0
    %3425 = vmatprep.subr.mxu0 0.0
    %3426 = vmatpush1.xpose.msra.mxu0 0.0
    %3427 = vmatprep.subr.mxu0 0.0
    %3428 = vmatpush1.xpose.msra.mxu0 0.0
    %3429 = vmatprep.subr.mxu0 0.0
    %3430 = vmatpush1.xpose.msra.mxu0 0.0
    %3431 = vmatprep.subr.mxu0 0.0
    %3432 = vmatpush1.xpose.msra.mxu0 0.0
    %3433 = vmatprep.subr.mxu0 0.0
    %3434 = vmatpush1.xpose.msra.mxu0 0.0
    %3435 = vmatprep.subr.mxu0 0.0
    %3436 = vmatpush1.xpose.msra.mxu0 0.0
    %3437 = vmatprep.subr.mxu0 0.0
    %3438 = vmatpush1.xpose.msra.mxu0 0.0
    %3439 = vmatprep.subr.mxu0 0.0
    %3440 = vmatpush1.xpose.msra.mxu0 0.0
    %3441 = vmatprep.subr.mxu0 0.0
    %3442 = vmatpush1.xpose.msra.mxu0 0.0
    %3443 = vmatprep.subr.mxu0 0.0
    %3444 = vmatpush1.xpose.msra.mxu0 0.0
    %3445 = vmatprep.subr.mxu0 0.0
    %3446 = vmatpush1.xpose.msra.mxu0 0.0
    %3447 = vmatprep.subr.mxu0 0.0
    %3448 = vmatpush1.xpose.msra.mxu0 0.0
    %3449 = vmatprep.subr.mxu0 0.0
    %3450 = vmatpush1.xpose.msra.mxu0 0.0
    %3451 = vmatprep.subr.mxu0 0.0
    %3452 = vmatpush1.xpose.msra.mxu0 0.0
    %3453 = vmatprep.subr.mxu0 0.0
    %3454 = vmatpush1.xpose.msra.mxu0 0.0
    %3455 = vmatprep.subr.mxu0 0.0
    %3456 = vmatpush1.xpose.msra.mxu0 0.0
    %3457 = vmatprep.mubr.f32.mxu0 0.0
    %3458 = vmatmul.mubr.f32.gmra.mrb[0].mxu0 %v3385
    %v3459 = vpop.f32.mrb[0].mxu0
    %v3460 = vadd.f32 %v2876, %v3459
    %v3461 = vpop.f32.mrb[0].mxu0
    %3462 = vmatprep.mubr.f32.mxu0 0.0
    %3463 = vmatmul.mubr.f32.gmra.mrb[0].mxu0 %v3387
    %v3464 = vpop.f32.mrb[0].mxu0
    %v3465 = vadd.f32 %v2877, %v3464
    %v3466 = vpop.f32.mrb[0].mxu0
    %3467 = vdwg.mxu0
    %v3468 = vsel %vm377, %v2843, 0
    %v3470 = vsel %vm377, %v2845, 0
    %v3472 = vsel %vm377, %v2873, 0
    %v3474 = vsel %vm377, %v2875, 0
    %3476 = vmatprep.subr.mxu0 0.0
    %3477 = vmatpush1.xpose.msra.mxu0 %v3472
    %3478 = vmatprep.subr.mxu0 0.0
    %3479 = vmatpush1.xpose.msra.mxu0 %v3474
    %3480 = vmatprep.subr.mxu0 0.0
    %3481 = vmatpush1.xpose.msra.mxu0 0.0
    %3482 = vmatprep.subr.mxu0 0.0
    %3483 = vmatpush1.xpose.msra.mxu0 0.0
    %3484 = vmatprep.subr.mxu0 0.0
    %3485 = vmatpush1.xpose.msra.mxu0 0.0
    %3486 = vmatprep.subr.mxu0 0.0
    %3487 = vmatpush1.xpose.msra.mxu0 0.0
    %3488 = vmatprep.subr.mxu0 0.0
    %3489 = vmatpush1.xpose.msra.mxu0 0.0
    %3490 = vmatprep.subr.mxu0 0.0
    %3491 = vmatpush1.xpose.msra.mxu0 0.0
    %3492 = vmatprep.subr.mxu0 0.0
    %3493 = vmatpush1.xpose.msra.mxu0 0.0
    %3494 = vmatprep.subr.mxu0 0.0
    %3495 = vmatpush1.xpose.msra.mxu0 0.0
    %3496 = vmatprep.subr.mxu0 0.0
    %3497 = vmatpush1.xpose.msra.mxu0 0.0
    %3498 = vmatprep.subr.mxu0 0.0
    %3499 = vmatpush1.xpose.msra.mxu0 0.0
    %3500 = vmatprep.subr.mxu0 0.0
    %3501 = vmatpush1.xpose.msra.mxu0 0.0
    %3502 = vmatprep.subr.mxu0 0.0
    %3503 = vmatpush1.xpose.msra.mxu0 0.0
    %3504 = vmatprep.subr.mxu0 0.0
    %3505 = vmatpush1.xpose.msra.mxu0 0.0
    %3506 = vmatprep.subr.mxu0 0.0
    %3507 = vmatpush1.xpose.msra.mxu0 0.0
    %3508 = vmatprep.subr.mxu0 0.0
    %3509 = vmatpush1.xpose.msra.mxu0 0.0
    %3510 = vmatprep.subr.mxu0 0.0
    %3511 = vmatpush1.xpose.msra.mxu0 0.0
    %3512 = vmatprep.subr.mxu0 0.0
    %3513 = vmatpush1.xpose.msra.mxu0 0.0
    %3514 = vmatprep.subr.mxu0 0.0
    %3515 = vmatpush1.xpose.msra.mxu0 0.0
    %3516 = vmatprep.subr.mxu0 0.0
    %3517 = vmatpush1.xpose.msra.mxu0 0.0
    %3518 = vmatprep.subr.mxu0 0.0
    %3519 = vmatpush1.xpose.msra.mxu0 0.0
    %3520 = vmatprep.subr.mxu0 0.0
    %3521 = vmatpush1.xpose.msra.mxu0 0.0
    %3522 = vmatprep.subr.mxu0 0.0
    %3523 = vmatpush1.xpose.msra.mxu0 0.0
    %3524 = vmatprep.subr.mxu0 0.0
    %3525 = vmatpush1.xpose.msra.mxu0 0.0
    %3526 = vmatprep.subr.mxu0 0.0
    %3527 = vmatpush1.xpose.msra.mxu0 0.0
    %3528 = vmatprep.subr.mxu0 0.0
    %3529 = vmatpush1.xpose.msra.mxu0 0.0
    %3530 = vmatprep.subr.mxu0 0.0
    %3531 = vmatpush1.xpose.msra.mxu0 0.0
    %3532 = vmatprep.subr.mxu0 0.0
    %3533 = vmatpush1.xpose.msra.mxu0 0.0
    %3534 = vmatprep.subr.mxu0 0.0
    %3535 = vmatpush1.xpose.msra.mxu0 0.0
    %3536 = vmatprep.subr.mxu0 0.0
    %3537 = vmatpush1.xpose.msra.mxu0 0.0
    %3538 = vmatprep.subr.mxu0 0.0
    %3539 = vmatpush1.xpose.msra.mxu0 0.0
    %3540 = vmatprep.mubr.f32.mxu0 0.0
    %3541 = vmatmul.mubr.f32.gmra.mrb[0].mxu0 %v3468
    %v3542 = vpop.f32.mrb[0].mxu0
    %v3543 = vadd.f32 %v2876, %v3542
    %v3544 = vpop.f32.mrb[0].mxu0
    %3545 = vmatprep.mubr.f32.mxu0 0.0
    %3546 = vmatmul.mubr.f32.gmra.mrb[0].mxu0 %v3470
    %v3547 = vpop.f32.mrb[0].mxu0
    %v3548 = vadd.f32 %v2877, %v3547
    %v3549 = vpop.f32.mrb[0].mxu0
    %3550 = vdwg.mxu0
    %v3551 = vsel %vm1070, %v2962, -inf
    %3552 = vmax.xlane.f32.xlu0 %v3551
    %v3553 = vpop.xlane.xlu0 %3552
    %v3554 = vsel %vm1070, %v2967, -inf
    %3555 = vmax.xlane.f32.xlu0 %v3554
    %v3556 = vpop.xlane.xlu0 %3555
    %v3557 = vsel %vm1070, %v3045, -inf
    %3558 = vmax.xlane.f32.xlu0 %v3557
    %v3559 = vpop.xlane.xlu0 %3558
    %v3560 = vsel %vm1070, %v3050, -inf
    %3561 = vmax.xlane.f32.xlu0 %v3560
    %v3562 = vpop.xlane.xlu0 %3561
    %v3563 = vsel %vm1070, %v3128, -inf
    %3564 = vmax.xlane.f32.xlu0 %v3563
    %v3565 = vpop.xlane.xlu0 %3564
    %v3566 = vsel %vm1070, %v3133, -inf
    %3567 = vmax.xlane.f32.xlu0 %v3566
    %v3568 = vpop.xlane.xlu0 %3567
    %v3569 = vsel %vm1070, %v3211, -inf
    %3570 = vmax.xlane.f32.xlu0 %v3569
    %v3571 = vpop.xlane.xlu0 %3570
    %v3572 = vsel %vm1070, %v3216, -inf
    %3573 = vmax.xlane.f32.xlu0 %v3572
    %v3574 = vpop.xlane.xlu0 %3573
    %v3575 = vsel %vm1070, %v3294, -inf
    %3576 = vmax.xlane.f32.xlu0 %v3575
    %v3577 = vpop.xlane.xlu0 %3576
    %v3578 = vsel %vm1070, %v3299, -inf
    %3579 = vmax.xlane.f32.xlu0 %v3578
    %v3580 = vpop.xlane.xlu0 %3579
    %v3581 = vsel %vm1070, %v3377, -inf
    %3582 = vmax.xlane.f32.xlu0 %v3581
    %v3583 = vpop.xlane.xlu0 %3582
    %v3584 = vsel %vm1070, %v3382, -inf
    %3585 = vmax.xlane.f32.xlu0 %v3584
    %v3586 = vpop.xlane.xlu0 %3585
    %v3587 = vsel %vm1070, %v3460, -inf
    %3588 = vmax.xlane.f32.xlu0 %v3587
    %v3589 = vpop.xlane.xlu0 %3588
    %v3590 = vsel %vm1070, %v3465, -inf
    %3591 = vmax.xlane.f32.xlu0 %v3590
    %v3592 = vpop.xlane.xlu0 %3591
    %v3593 = vsel %vm1070, %v3543, -inf
    %3594 = vmax.xlane.f32.xlu0 %v3593
    %v3595 = vpop.xlane.xlu0 %3594
    %v3596 = vsel %vm1070, %v3548, -inf
    %3597 = vmax.xlane.f32.xlu0 %v3596
    %v3598 = vpop.xlane.xlu0 %3597
    %v3599 = vsub.f32 %v2962, %v3553
    %v3600 = vsub.f32 %v2967, %v3556
    %v3601 = vsub.f32 %v3045, %v3559
    %v3602 = vsub.f32 %v3050, %v3562
    %v3603 = vsub.f32 %v3128, %v3565
    %v3604 = vsub.f32 %v3133, %v3568
    %v3605 = vsub.f32 %v3211, %v3571
    %v3606 = vsub.f32 %v3216, %v3574
    %v3607 = vsub.f32 %v3294, %v3577
    %v3608 = vsub.f32 %v3299, %v3580
    %v3609 = vsub.f32 %v3377, %v3583
    %v3610 = vsub.f32 %v3382, %v3586
    %v3611 = vsub.f32 %v3460, %v3589
    %v3612 = vsub.f32 %v3465, %v3592
    %v3613 = vsub.f32 %v3543, %v3595
    %v3614 = vsub.f32 %v3548, %v3598
    %v3615 = vmul.f32 %v3599, 1.442695
    %v3616 = vpow.pop %v3615
    %v3617 = vmul.f32 %v3600, 1.442695
    %v3618 = vpow.pop %v3617
    %v3619 = vmul.f32 %v3601, 1.442695
    %v3620 = vpow.pop %v3619
    %v3621 = vmul.f32 %v3602, 1.442695
    %v3622 = vpow.pop %v3621
    %v3623 = vmul.f32 %v3603, 1.442695
    %v3624 = vpow.pop %v3623
    %v3625 = vmul.f32 %v3604, 1.442695
    %v3626 = vpow.pop %v3625
    %v3627 = vmul.f32 %v3605, 1.442695
    %v3628 = vpow.pop %v3627
    %v3629 = vmul.f32 %v3606, 1.442695
    %v3630 = vpow.pop %v3629
    %v3631 = vmul.f32 %v3607, 1.442695
    %v3632 = vpow.pop %v3631
    %v3633 = vmul.f32 %v3608, 1.442695
    %v3634 = vpow.pop %v3633
    %v3635 = vmul.f32 %v3609, 1.442695
    %v3636 = vpow.pop %v3635
    %v3637 = vmul.f32 %v3610, 1.442695
    %v3638 = vpow.pop %v3637
    %v3639 = vmul.f32 %v3611, 1.442695
    %v3640 = vpow.pop %v3639
    %v3641 = vmul.f32 %v3612, 1.442695
    %v3642 = vpow.pop %v3641
    %v3643 = vmul.f32 %v3613, 1.442695
    %v3644 = vpow.pop %v3643
    %v3645 = vmul.f32 %v3614, 1.442695
    %v3646 = vpow.pop %v3645
    %v3647 = vsel %vm1070, %v3616, 0.0
    %3648 = vadd.xlane.f32.xlu0 %v3647
    %v3649 = vpop.xlane.xlu0 %3648
    %v3650 = vsel %vm1070, %v3618, 0.0
    %3651 = vadd.xlane.f32.xlu0 %v3650
    %v3652 = vpop.xlane.xlu0 %3651
    %v3653 = vsel %vm1070, %v3620, 0.0
    %3654 = vadd.xlane.f32.xlu0 %v3653
    %v3655 = vpop.xlane.xlu0 %3654
    %v3656 = vsel %vm1070, %v3622, 0.0
    %3657 = vadd.xlane.f32.xlu0 %v3656
    %v3658 = vpop.xlane.xlu0 %3657
    %v3659 = vsel %vm1070, %v3624, 0.0
    %3660 = vadd.xlane.f32.xlu0 %v3659
    %v3661 = vpop.xlane.xlu0 %3660
    %v3662 = vsel %vm1070, %v3626, 0.0
    %3663 = vadd.xlane.f32.xlu0 %v3662
    %v3664 = vpop.xlane.xlu0 %3663
    %v3665 = vsel %vm1070, %v3628, 0.0
    %3666 = vadd.xlane.f32.xlu0 %v3665
    %v3667 = vpop.xlane.xlu0 %3666
    %v3668 = vsel %vm1070, %v3630, 0.0
    %3669 = vadd.xlane.f32.xlu0 %v3668
    %v3670 = vpop.xlane.xlu0 %3669
    %v3671 = vsel %vm1070, %v3632, 0.0
    %3672 = vadd.xlane.f32.xlu0 %v3671
    %v3673 = vpop.xlane.xlu0 %3672
    %v3674 = vsel %vm1070, %v3634, 0.0
    %3675 = vadd.xlane.f32.xlu0 %v3674
    %v3676 = vpop.xlane.xlu0 %3675
    %v3677 = vsel %vm1070, %v3636, 0.0
    %3678 = vadd.xlane.f32.xlu0 %v3677
    %v3679 = vpop.xlane.xlu0 %3678
    %v3680 = vsel %vm1070, %v3638, 0.0
    %3681 = vadd.xlane.f32.xlu0 %v3680
    %v3682 = vpop.xlane.xlu0 %3681
    %v3683 = vsel %vm1070, %v3640, 0.0
    %3684 = vadd.xlane.f32.xlu0 %v3683
    %v3685 = vpop.xlane.xlu0 %3684
    %v3686 = vsel %vm1070, %v3642, 0.0
    %3687 = vadd.xlane.f32.xlu0 %v3686
    %v3688 = vpop.xlane.xlu0 %3687
    %v3689 = vsel %vm1070, %v3644, 0.0
    %3690 = vadd.xlane.f32.xlu0 %v3689
    %v3691 = vpop.xlane.xlu0 %3690
    %v3692 = vsel %vm1070, %v3646, 0.0
    %3693 = vadd.xlane.f32.xlu0 %v3692
    %v3694 = vpop.xlane.xlu0 %3693
    %v3695 = vrcp.pop %v3649
    %v3696 = vrcp.pop %v3652
    %v3697 = vrcp.pop %v3655
    %v3698 = vrcp.pop %v3658
    %v3699 = vrcp.pop %v3661
    %v3700 = vrcp.pop %v3664
    %v3701 = vrcp.pop %v3667
    %v3702 = vrcp.pop %v3670
    %v3703 = vrcp.pop %v3673
    %v3704 = vrcp.pop %v3676
    %v3705 = vrcp.pop %v3679
    %v3706 = vrcp.pop %v3682
    %v3707 = vrcp.pop %v3685
    %v3708 = vrcp.pop %v3688
    %v3709 = vrcp.pop %v3691
    %v3710 = vrcp.pop %v3694
    %v3711 = vmul.f32 %v3616, %v3695
    %v3712 = vmul.f32 %v3618, %v3696
    %v3713 = vmul.f32 %v3620, %v3697
    %v3714 = vmul.f32 %v3622, %v3698
    %v3715 = vmul.f32 %v3624, %v3699
    %v3716 = vmul.f32 %v3626, %v3700
    %v3717 = vmul.f32 %v3628, %v3701
    %v3718 = vmul.f32 %v3630, %v3702
    %v3719 = vmul.f32 %v3632, %v3703
    %v3720 = vmul.f32 %v3634, %v3704
    %v3721 = vmul.f32 %v3636, %v3705
    %v3722 = vmul.f32 %v3638, %v3706
    %v3723 = vmul.f32 %v3640, %v3707
    %v3724 = vmul.f32 %v3642, %v3708
    %v3725 = vmul.f32 %v3644, %v3709
    %v3726 = vmul.f32 %v3646, %v3710
    %3727 = vrot.lane.b32.xlu0 %v2808, 64
    %v3728 = vpop.permute.xlu0 %3727
    %3729 = vrot.lane.b32.xlu0 %v2813, 64
    %v3730 = vpop.permute.xlu0 %3729
    %v3734 = vsel %vm1070, %v3711, 0
    %v3737 = vsel %vm1070, %v3712, 0
    %3739 = vmatprep.subr.mxu0 0.0
    %3740 = vmatpush1.msra.mxu0 %v3728
    %3741 = vmatprep.subr.mxu0 0.0
    %3742 = vmatpush1.msra.mxu0 %v3730
    %3743 = vmatprep.subr.mxu0 0.0
    %3744 = vmatpush1.msra.mxu0 0.0
    %3745 = vmatprep.subr.mxu0 0.0
    %3746 = vmatpush1.msra.mxu0 0.0
    %3747 = vmatprep.subr.mxu0 0.0
    %3748 = vmatpush1.msra.mxu0 0.0
    %3749 = vmatprep.subr.mxu0 0.0
    %3750 = vmatpush1.msra.mxu0 0.0
    %3751 = vmatprep.subr.mxu0 0.0
    %3752 = vmatpush1.msra.mxu0 0.0
    %3753 = vmatprep.subr.mxu0 0.0
    %3754 = vmatpush1.msra.mxu0 0.0
    %3755 = vmatprep.subr.mxu0 0.0
    %3756 = vmatpush1.msra.mxu0 0.0
    %3757 = vmatprep.subr.mxu0 0.0
    %3758 = vmatpush1.msra.mxu0 0.0
    %3759 = vmatprep.subr.mxu0 0.0
    %3760 = vmatpush1.msra.mxu0 0.0
    %3761 = vmatprep.subr.mxu0 0.0
    %3762 = vmatpush1.msra.mxu0 0.0
    %3763 = vmatprep.subr.mxu0 0.0
    %3764 = vmatpush1.msra.mxu0 0.0
    %3765 = vmatprep.subr.mxu0 0.0
    %3766 = vmatpush1.msra.mxu0 0.0
    %3767 = vmatprep.subr.mxu0 0.0
    %3768 = vmatpush1.msra.mxu0 0.0
    %3769 = vmatprep.subr.mxu0 0.0
    %3770 = vmatpush1.msra.mxu0 0.0
    %3771 = vmatprep.subr.mxu0 0.0
    %3772 = vmatpush1.msra.mxu0 0.0
    %3773 = vmatprep.subr.mxu0 0.0
    %3774 = vmatpush1.msra.mxu0 0.0
    %3775 = vmatprep.subr.mxu0 0.0
    %3776 = vmatpush1.msra.mxu0 0.0
    %3777 = vmatprep.subr.mxu0 0.0
    %3778 = vmatpush1.msra.mxu0 0.0
    %3779 = vmatprep.subr.mxu0 0.0
    %3780 = vmatpush1.msra.mxu0 0.0
    %3781 = vmatprep.subr.mxu0 0.0
    %3782 = vmatpush1.msra.mxu0 0.0
    %3783 = vmatprep.subr.mxu0 0.0
    %3784 = vmatpush1.msra.mxu0 0.0
    %3785 = vmatprep.subr.mxu0 0.0
    %3786 = vmatpush1.msra.mxu0 0.0
    %3787 = vmatprep.subr.mxu0 0.0
    %3788 = vmatpush1.msra.mxu0 0.0
    %3789 = vmatprep.subr.mxu0 0.0
    %3790 = vmatpush1.msra.mxu0 0.0
    %3791 = vmatprep.subr.mxu0 0.0
    %3792 = vmatpush1.msra.mxu0 0.0
    %3793 = vmatprep.subr.mxu0 0.0
    %3794 = vmatpush1.msra.mxu0 0.0
    %3795 = vmatprep.subr.mxu0 0.0
    %3796 = vmatpush1.msra.mxu0 0.0
    %3797 = vmatprep.subr.mxu0 0.0
    %3798 = vmatpush1.msra.mxu0 0.0
    %3799 = vmatprep.subr.mxu0 0.0
    %3800 = vmatpush1.msra.mxu0 0.0
    %3801 = vmatprep.subr.mxu0 0.0
    %3802 = vmatpush1.msra.mxu0 0.0
    %3803 = vmatprep.mubr.f32.mxu0 0.0
    %3804 = vmatmul.mubr.f32.gmra.mrb[0].mxu0 %v3734
    %v3805 = vpop.f32.mrb[0].mxu0
    %v3806 = vadd.f32 0.0, %v3805
    %v3807 = vpop.f32.mrb[0].mxu0
    %3808 = vmatprep.mubr.f32.mxu0 0.0
    %3809 = vmatmul.mubr.f32.gmra.mrb[0].mxu0 %v3737
    %v3810 = vpop.f32.mrb[0].mxu0
    %v3811 = vadd.f32 0.0, %v3810
    %v3812 = vpop.f32.mrb[0].mxu0
    %3813 = vdwg.mxu0
    %3814 = vrot.lane.b32.xlu0 %v2849, 64
    %v3815 = vpop.permute.xlu0 %3814
    %3816 = vrot.lane.b32.xlu0 %v2851, 64
    %v3817 = vpop.permute.xlu0 %3816
    %v3821 = vsel %vm1070, %v3713, 0
    %v3824 = vsel %vm1070, %v3714, 0
    %3826 = vmatprep.subr.mxu0 0.0
    %3827 = vmatpush1.msra.mxu0 %v3815
    %3828 = vmatprep.subr.mxu0 0.0
    %3829 = vmatpush1.msra.mxu0 %v3817
    %3830 = vmatprep.subr.mxu0 0.0
    %3831 = vmatpush1.msra.mxu0 0.0
    %3832 = vmatprep.subr.mxu0 0.0
    %3833 = vmatpush1.msra.mxu0 0.0
    %3834 = vmatprep.subr.mxu0 0.0
    %3835 = vmatpush1.msra.mxu0 0.0
    %3836 = vmatprep.subr.mxu0 0.0
    %3837 = vmatpush1.msra.mxu0 0.0
    %3838 = vmatprep.subr.mxu0 0.0
    %3839 = vmatpush1.msra.mxu0 0.0
    %3840 = vmatprep.subr.mxu0 0.0
    %3841 = vmatpush1.msra.mxu0 0.0
    %3842 = vmatprep.subr.mxu0 0.0
    %3843 = vmatpush1.msra.mxu0 0.0
    %3844 = vmatprep.subr.mxu0 0.0
    %3845 = vmatpush1.msra.mxu0 0.0
    %3846 = vmatprep.subr.mxu0 0.0
    %3847 = vmatpush1.msra.mxu0 0.0
    %3848 = vmatprep.subr.mxu0 0.0
    %3849 = vmatpush1.msra.mxu0 0.0
    %3850 = vmatprep.subr.mxu0 0.0
    %3851 = vmatpush1.msra.mxu0 0.0
    %3852 = vmatprep.subr.mxu0 0.0
    %3853 = vmatpush1.msra.mxu0 0.0
    %3854 = vmatprep.subr.mxu0 0.0
    %3855 = vmatpush1.msra.mxu0 0.0
    %3856 = vmatprep.subr.mxu0 0.0
    %3857 = vmatpush1.msra.mxu0 0.0
    %3858 = vmatprep.subr.mxu0 0.0
    %3859 = vmatpush1.msra.mxu0 0.0
    %3860 = vmatprep.subr.mxu0 0.0
    %3861 = vmatpush1.msra.mxu0 0.0
    %3862 = vmatprep.subr.mxu0 0.0
    %3863 = vmatpush1.msra.mxu0 0.0
    %3864 = vmatprep.subr.mxu0 0.0
    %3865 = vmatpush1.msra.mxu0 0.0
    %3866 = vmatprep.subr.mxu0 0.0
    %3867 = vmatpush1.msra.mxu0 0.0
    %3868 = vmatprep.subr.mxu0 0.0
    %3869 = vmatpush1.msra.mxu0 0.0
    %3870 = vmatprep.subr.mxu0 0.0
    %3871 = vmatpush1.msra.mxu0 0.0
    %3872 = vmatprep.subr.mxu0 0.0
    %3873 = vmatpush1.msra.mxu0 0.0
    %3874 = vmatprep.subr.mxu0 0.0
    %3875 = vmatpush1.msra.mxu0 0.0
    %3876 = vmatprep.subr.mxu0 0.0
    %3877 = vmatpush1.msra.mxu0 0.0
    %3878 = vmatprep.subr.mxu0 0.0
    %3879 = vmatpush1.msra.mxu0 0.0
    %3880 = vmatprep.subr.mxu0 0.0
    %3881 = vmatpush1.msra.mxu0 0.0
    %3882 = vmatprep.subr.mxu0 0.0
    %3883 = vmatpush1.msra.mxu0 0.0
    %3884 = vmatprep.subr.mxu0 0.0
    %3885 = vmatpush1.msra.mxu0 0.0
    %3886 = vmatprep.subr.mxu0 0.0
    %3887 = vmatpush1.msra.mxu0 0.0
    %3888 = vmatprep.subr.mxu0 0.0
    %3889 = vmatpush1.msra.mxu0 0.0
    %3890 = vmatprep.mubr.f32.mxu0 0.0
    %3891 = vmatmul.mubr.f32.gmra.mrb[0].mxu0 %v3821
    %v3892 = vpop.f32.mrb[0].mxu0
    %v3893 = vadd.f32 0.0, %v3892
    %v3894 = vpop.f32.mrb[0].mxu0
    %3895 = vmatprep.mubr.f32.mxu0 0.0
    %3896 = vmatmul.mubr.f32.gmra.mrb[0].mxu0 %v3824
    %v3897 = vpop.f32.mrb[0].mxu0
    %v3898 = vadd.f32 0.0, %v3897
    %v3899 = vpop.f32.mrb[0].mxu0
    %3900 = vdwg.mxu0
    %3901 = vrot.lane.b32.xlu0 %v2853, 64
    %v3902 = vpop.permute.xlu0 %3901
    %3903 = vrot.lane.b32.xlu0 %v2855, 64
    %v3904 = vpop.permute.xlu0 %3903
    %v3908 = vsel %vm1070, %v3715, 0
    %v3911 = vsel %vm1070, %v3716, 0
    %3913 = vmatprep.subr.mxu0 0.0
    %3914 = vmatpush1.msra.mxu0 %v3902
    %3915 = vmatprep.subr.mxu0 0.0
    %3916 = vmatpush1.msra.mxu0 %v3904
    %3917 = vmatprep.subr.mxu0 0.0
    %3918 = vmatpush1.msra.mxu0 0.0
    %3919 = vmatprep.subr.mxu0 0.0
    %3920 = vmatpush1.msra.mxu0 0.0
    %3921 = vmatprep.subr.mxu0 0.0
    %3922 = vmatpush1.msra.mxu0 0.0
    %3923 = vmatprep.subr.mxu0 0.0
    %3924 = vmatpush1.msra.mxu0 0.0
    %3925 = vmatprep.subr.mxu0 0.0
    %3926 = vmatpush1.msra.mxu0 0.0
    %3927 = vmatprep.subr.mxu0 0.0
    %3928 = vmatpush1.msra.mxu0 0.0
    %3929 = vmatprep.subr.mxu0 0.0
    %3930 = vmatpush1.msra.mxu0 0.0
    %3931 = vmatprep.subr.mxu0 0.0
    %3932 = vmatpush1.msra.mxu0 0.0
    %3933 = vmatprep.subr.mxu0 0.0
    %3934 = vmatpush1.msra.mxu0 0.0
    %3935 = vmatprep.subr.mxu0 0.0
    %3936 = vmatpush1.msra.mxu0 0.0
    %3937 = vmatprep.subr.mxu0 0.0
    %3938 = vmatpush1.msra.mxu0 0.0
    %3939 = vmatprep.subr.mxu0 0.0
    %3940 = vmatpush1.msra.mxu0 0.0
    %3941 = vmatprep.subr.mxu0 0.0
    %3942 = vmatpush1.msra.mxu0 0.0
    %3943 = vmatprep.subr.mxu0 0.0
    %3944 = vmatpush1.msra.mxu0 0.0
    %3945 = vmatprep.subr.mxu0 0.0
    %3946 = vmatpush1.msra.mxu0 0.0
    %3947 = vmatprep.subr.mxu0 0.0
    %3948 = vmatpush1.msra.mxu0 0.0
    %3949 = vmatprep.subr.mxu0 0.0
    %3950 = vmatpush1.msra.mxu0 0.0
    %3951 = vmatprep.subr.mxu0 0.0
    %3952 = vmatpush1.msra.mxu0 0.0
    %3953 = vmatprep.subr.mxu0 0.0
    %3954 = vmatpush1.msra.mxu0 0.0
    %3955 = vmatprep.subr.mxu0 0.0
    %3956 = vmatpush1.msra.mxu0 0.0
    %3957 = vmatprep.subr.mxu0 0.0
    %3958 = vmatpush1.msra.mxu0 0.0
    %3959 = vmatprep.subr.mxu0 0.0
    %3960 = vmatpush1.msra.mxu0 0.0
    %3961 = vmatprep.subr.mxu0 0.0
    %3962 = vmatpush1.msra.mxu0 0.0
    %3963 = vmatprep.subr.mxu0 0.0
    %3964 = vmatpush1.msra.mxu0 0.0
    %3965 = vmatprep.subr.mxu0 0.0
    %3966 = vmatpush1.msra.mxu0 0.0
    %3967 = vmatprep.subr.mxu0 0.0
    %3968 = vmatpush1.msra.mxu0 0.0
    %3969 = vmatprep.subr.mxu0 0.0
    %3970 = vmatpush1.msra.mxu0 0.0
    %3971 = vmatprep.subr.mxu0 0.0
    %3972 = vmatpush1.msra.mxu0 0.0
    %3973 = vmatprep.subr.mxu0 0.0
    %3974 = vmatpush1.msra.mxu0 0.0
    %3975 = vmatprep.subr.mxu0 0.0
    %3976 = vmatpush1.msra.mxu0 0.0
    %3977 = vmatprep.mubr.f32.mxu0 0.0
    %3978 = vmatmul.mubr.f32.gmra.mrb[0].mxu0 %v3908
    %v3979 = vpop.f32.mrb[0].mxu0
    %v3980 = vadd.f32 0.0, %v3979
    %v3981 = vpop.f32.mrb[0].mxu0
    %3982 = vmatprep.mubr.f32.mxu0 0.0
    %3983 = vmatmul.mubr.f32.gmra.mrb[0].mxu0 %v3911
    %v3984 = vpop.f32.mrb[0].mxu0
    %v3985 = vadd.f32 0.0, %v3984
    %v3986 = vpop.f32.mrb[0].mxu0
    %3987 = vdwg.mxu0
    %3988 = vrot.lane.b32.xlu0 %v2857, 64
    %v3989 = vpop.permute.xlu0 %3988
    %3990 = vrot.lane.b32.xlu0 %v2859, 64
    %v3991 = vpop.permute.xlu0 %3990
    %v3995 = vsel %vm1070, %v3717, 0
    %v3998 = vsel %vm1070, %v3718, 0
    %4000 = vmatprep.subr.mxu0 0.0
    %4001 = vmatpush1.msra.mxu0 %v3989
    %4002 = vmatprep.subr.mxu0 0.0
    %4003 = vmatpush1.msra.mxu0 %v3991
    %4004 = vmatprep.subr.mxu0 0.0
    %4005 = vmatpush1.msra.mxu0 0.0
    %4006 = vmatprep.subr.mxu0 0.0
    %4007 = vmatpush1.msra.mxu0 0.0
    %4008 = vmatprep.subr.mxu0 0.0
    %4009 = vmatpush1.msra.mxu0 0.0
    %4010 = vmatprep.subr.mxu0 0.0
    %4011 = vmatpush1.msra.mxu0 0.0
    %4012 = vmatprep.subr.mxu0 0.0
    %4013 = vmatpush1.msra.mxu0 0.0
    %4014 = vmatprep.subr.mxu0 0.0
    %4015 = vmatpush1.msra.mxu0 0.0
    %4016 = vmatprep.subr.mxu0 0.0
    %4017 = vmatpush1.msra.mxu0 0.0
    %4018 = vmatprep.subr.mxu0 0.0
    %4019 = vmatpush1.msra.mxu0 0.0
    %4020 = vmatprep.subr.mxu0 0.0
    %4021 = vmatpush1.msra.mxu0 0.0
    %4022 = vmatprep.subr.mxu0 0.0
    %4023 = vmatpush1.msra.mxu0 0.0
    %4024 = vmatprep.subr.mxu0 0.0
    %4025 = vmatpush1.msra.mxu0 0.0
    %4026 = vmatprep.subr.mxu0 0.0
    %4027 = vmatpush1.msra.mxu0 0.0
    %4028 = vmatprep.subr.mxu0 0.0
    %4029 = vmatpush1.msra.mxu0 0.0
    %4030 = vmatprep.subr.mxu0 0.0
    %4031 = vmatpush1.msra.mxu0 0.0
    %4032 = vmatprep.subr.mxu0 0.0
    %4033 = vmatpush1.msra.mxu0 0.0
    %4034 = vmatprep.subr.mxu0 0.0
    %4035 = vmatpush1.msra.mxu0 0.0
    %4036 = vmatprep.subr.mxu0 0.0
    %4037 = vmatpush1.msra.mxu0 0.0
    %4038 = vmatprep.subr.mxu0 0.0
    %4039 = vmatpush1.msra.mxu0 0.0
    %4040 = vmatprep.subr.mxu0 0.0
    %4041 = vmatpush1.msra.mxu0 0.0
    %4042 = vmatprep.subr.mxu0 0.0
    %4043 = vmatpush1.msra.mxu0 0.0
    %4044 = vmatprep.subr.mxu0 0.0
    %4045 = vmatpush1.msra.mxu0 0.0
    %4046 = vmatprep.subr.mxu0 0.0
    %4047 = vmatpush1.msra.mxu0 0.0
    %4048 = vmatprep.subr.mxu0 0.0
    %4049 = vmatpush1.msra.mxu0 0.0
    %4050 = vmatprep.subr.mxu0 0.0
    %4051 = vmatpush1.msra.mxu0 0.0
    %4052 = vmatprep.subr.mxu0 0.0
    %4053 = vmatpush1.msra.mxu0 0.0
    %4054 = vmatprep.subr.mxu0 0.0
    %4055 = vmatpush1.msra.mxu0 0.0
    %4056 = vmatprep.subr.mxu0 0.0
    %4057 = vmatpush1.msra.mxu0 0.0
    %4058 = vmatprep.subr.mxu0 0.0
    %4059 = vmatpush1.msra.mxu0 0.0
    %4060 = vmatprep.subr.mxu0 0.0
    %4061 = vmatpush1.msra.mxu0 0.0
    %4062 = vmatprep.subr.mxu0 0.0
    %4063 = vmatpush1.msra.mxu0 0.0
    %4064 = vmatprep.mubr.f32.mxu0 0.0
    %4065 = vmatmul.mubr.f32.gmra.mrb[0].mxu0 %v3995
    %v4066 = vpop.f32.mrb[0].mxu0
    %v4067 = vadd.f32 0.0, %v4066
    %v4068 = vpop.f32.mrb[0].mxu0
    %4069 = vmatprep.mubr.f32.mxu0 0.0
    %4070 = vmatmul.mubr.f32.gmra.mrb[0].mxu0 %v3998
    %v4071 = vpop.f32.mrb[0].mxu0
    %v4072 = vadd.f32 0.0, %v4071
    %v4073 = vpop.f32.mrb[0].mxu0
    %4074 = vdwg.mxu0
    %4075 = vrot.lane.b32.xlu0 %v2861, 64
    %v4076 = vpop.permute.xlu0 %4075
    %4077 = vrot.lane.b32.xlu0 %v2863, 64
    %v4078 = vpop.permute.xlu0 %4077
    %v4082 = vsel %vm1070, %v3719, 0
    %v4085 = vsel %vm1070, %v3720, 0
    %4087 = vmatprep.subr.mxu0 0.0
    %4088 = vmatpush1.msra.mxu0 %v4076
    %4089 = vmatprep.subr.mxu0 0.0
    %4090 = vmatpush1.msra.mxu0 %v4078
    %4091 = vmatprep.subr.mxu0 0.0
    %4092 = vmatpush1.msra.mxu0 0.0
    %4093 = vmatprep.subr.mxu0 0.0
    %4094 = vmatpush1.msra.mxu0 0.0
    %4095 = vmatprep.subr.mxu0 0.0
    %4096 = vmatpush1.msra.mxu0 0.0
    %4097 = vmatprep.subr.mxu0 0.0
    %4098 = vmatpush1.msra.mxu0 0.0
    %4099 = vmatprep.subr.mxu0 0.0
    %4100 = vmatpush1.msra.mxu0 0.0
    %4101 = vmatprep.subr.mxu0 0.0
    %4102 = vmatpush1.msra.mxu0 0.0
    %4103 = vmatprep.subr.mxu0 0.0
    %4104 = vmatpush1.msra.mxu0 0.0
    %4105 = vmatprep.subr.mxu0 0.0
    %4106 = vmatpush1.msra.mxu0 0.0
    %4107 = vmatprep.subr.mxu0 0.0
    %4108 = vmatpush1.msra.mxu0 0.0
    %4109 = vmatprep.subr.mxu0 0.0
    %4110 = vmatpush1.msra.mxu0 0.0
    %4111 = vmatprep.subr.mxu0 0.0
    %4112 = vmatpush1.msra.mxu0 0.0
    %4113 = vmatprep.subr.mxu0 0.0
    %4114 = vmatpush1.msra.mxu0 0.0
    %4115 = vmatprep.subr.mxu0 0.0
    %4116 = vmatpush1.msra.mxu0 0.0
    %4117 = vmatprep.subr.mxu0 0.0
    %4118 = vmatpush1.msra.mxu0 0.0
    %4119 = vmatprep.subr.mxu0 0.0
    %4120 = vmatpush1.msra.mxu0 0.0
    %4121 = vmatprep.subr.mxu0 0.0
    %4122 = vmatpush1.msra.mxu0 0.0
    %4123 = vmatprep.subr.mxu0 0.0
    %4124 = vmatpush1.msra.mxu0 0.0
    %4125 = vmatprep.subr.mxu0 0.0
    %4126 = vmatpush1.msra.mxu0 0.0
    %4127 = vmatprep.subr.mxu0 0.0
    %4128 = vmatpush1.msra.mxu0 0.0
    %4129 = vmatprep.subr.mxu0 0.0
    %4130 = vmatpush1.msra.mxu0 0.0
    %4131 = vmatprep.subr.mxu0 0.0
    %4132 = vmatpush1.msra.mxu0 0.0
    %4133 = vmatprep.subr.mxu0 0.0
    %4134 = vmatpush1.msra.mxu0 0.0
    %4135 = vmatprep.subr.mxu0 0.0
    %4136 = vmatpush1.msra.mxu0 0.0
    %4137 = vmatprep.subr.mxu0 0.0
    %4138 = vmatpush1.msra.mxu0 0.0
    %4139 = vmatprep.subr.mxu0 0.0
    %4140 = vmatpush1.msra.mxu0 0.0
    %4141 = vmatprep.subr.mxu0 0.0
    %4142 = vmatpush1.msra.mxu0 0.0
    %4143 = vmatprep.subr.mxu0 0.0
    %4144 = vmatpush1.msra.mxu0 0.0
    %4145 = vmatprep.subr.mxu0 0.0
    %4146 = vmatpush1.msra.mxu0 0.0
    %4147 = vmatprep.subr.mxu0 0.0
    %4148 = vmatpush1.msra.mxu0 0.0
    %4149 = vmatprep.subr.mxu0 0.0
    %4150 = vmatpush1.msra.mxu0 0.0
    %4151 = vmatprep.mubr.f32.mxu0 0.0
    %4152 = vmatmul.mubr.f32.gmra.mrb[0].mxu0 %v4082
    %v4153 = vpop.f32.mrb[0].mxu0
    %v4154 = vadd.f32 0.0, %v4153
    %v4155 = vpop.f32.mrb[0].mxu0
    %4156 = vmatprep.mubr.f32.mxu0 0.0
    %4157 = vmatmul.mubr.f32.gmra.mrb[0].mxu0 %v4085
    %v4158 = vpop.f32.mrb[0].mxu0
    %v4159 = vadd.f32 0.0, %v4158
    %v4160 = vpop.f32.mrb[0].mxu0
    %4161 = vdwg.mxu0
    %4162 = vrot.lane.b32.xlu0 %v2865, 64
    %v4163 = vpop.permute.xlu0 %4162
    %4164 = vrot.lane.b32.xlu0 %v2867, 64
    %v4165 = vpop.permute.xlu0 %4164
    %v4169 = vsel %vm1070, %v3721, 0
    %v4172 = vsel %vm1070, %v3722, 0
    %4174 = vmatprep.subr.mxu0 0.0
    %4175 = vmatpush1.msra.mxu0 %v4163
    %4176 = vmatprep.subr.mxu0 0.0
    %4177 = vmatpush1.msra.mxu0 %v4165
    %4178 = vmatprep.subr.mxu0 0.0
    %4179 = vmatpush1.msra.mxu0 0.0
    %4180 = vmatprep.subr.mxu0 0.0
    %4181 = vmatpush1.msra.mxu0 0.0
    %4182 = vmatprep.subr.mxu0 0.0
    %4183 = vmatpush1.msra.mxu0 0.0
    %4184 = vmatprep.subr.mxu0 0.0
    %4185 = vmatpush1.msra.mxu0 0.0
    %4186 = vmatprep.subr.mxu0 0.0
    %4187 = vmatpush1.msra.mxu0 0.0
    %4188 = vmatprep.subr.mxu0 0.0
    %4189 = vmatpush1.msra.mxu0 0.0
    %4190 = vmatprep.subr.mxu0 0.0
    %4191 = vmatpush1.msra.mxu0 0.0
    %4192 = vmatprep.subr.mxu0 0.0
    %4193 = vmatpush1.msra.mxu0 0.0
    %4194 = vmatprep.subr.mxu0 0.0
    %4195 = vmatpush1.msra.mxu0 0.0
    %4196 = vmatprep.subr.mxu0 0.0
    %4197 = vmatpush1.msra.mxu0 0.0
    %4198 = vmatprep.subr.mxu0 0.0
    %4199 = vmatpush1.msra.mxu0 0.0
    %4200 = vmatprep.subr.mxu0 0.0
    %4201 = vmatpush1.msra.mxu0 0.0
    %4202 = vmatprep.subr.mxu0 0.0
    %4203 = vmatpush1.msra.mxu0 0.0
    %4204 = vmatprep.subr.mxu0 0.0
    %4205 = vmatpush1.msra.mxu0 0.0
    %4206 = vmatprep.subr.mxu0 0.0
    %4207 = vmatpush1.msra.mxu0 0.0
    %4208 = vmatprep.subr.mxu0 0.0
    %4209 = vmatpush1.msra.mxu0 0.0
    %4210 = vmatprep.subr.mxu0 0.0
    %4211 = vmatpush1.msra.mxu0 0.0
    %4212 = vmatprep.subr.mxu0 0.0
    %4213 = vmatpush1.msra.mxu0 0.0
    %4214 = vmatprep.subr.mxu0 0.0
    %4215 = vmatpush1.msra.mxu0 0.0
    %4216 = vmatprep.subr.mxu0 0.0
    %4217 = vmatpush1.msra.mxu0 0.0
    %4218 = vmatprep.subr.mxu0 0.0
    %4219 = vmatpush1.msra.mxu0 0.0
    %4220 = vmatprep.subr.mxu0 0.0
    %4221 = vmatpush1.msra.mxu0 0.0
    %4222 = vmatprep.subr.mxu0 0.0
    %4223 = vmatpush1.msra.mxu0 0.0
    %4224 = vmatprep.subr.mxu0 0.0
    %4225 = vmatpush1.msra.mxu0 0.0
    %4226 = vmatprep.subr.mxu0 0.0
    %4227 = vmatpush1.msra.mxu0 0.0
    %4228 = vmatprep.subr.mxu0 0.0
    %4229 = vmatpush1.msra.mxu0 0.0
    %4230 = vmatprep.subr.mxu0 0.0
    %4231 = vmatpush1.msra.mxu0 0.0
    %4232 = vmatprep.subr.mxu0 0.0
    %4233 = vmatpush1.msra.mxu0 0.0
    %4234 = vmatprep.subr.mxu0 0.0
    %4235 = vmatpush1.msra.mxu0 0.0
    %4236 = vmatprep.subr.mxu0 0.0
    %4237 = vmatpush1.msra.mxu0 0.0
    %4238 = vmatprep.mubr.f32.mxu0 0.0
    %4239 = vmatmul.mubr.f32.gmra.mrb[0].mxu0 %v4169
    %v4240 = vpop.f32.mrb[0].mxu0
    %v4241 = vadd.f32 0.0, %v4240
    %v4242 = vpop.f32.mrb[0].mxu0
    %4243 = vmatprep.mubr.f32.mxu0 0.0
    %4244 = vmatmul.mubr.f32.gmra.mrb[0].mxu0 %v4172
    %v4245 = vpop.f32.mrb[0].mxu0
    %v4246 = vadd.f32 0.0, %v4245
    %v4247 = vpop.f32.mrb[0].mxu0
    %4248 = vdwg.mxu0
    %4249 = vrot.lane.b32.xlu0 %v2869, 64
    %v4250 = vpop.permute.xlu0 %4249
    %4251 = vrot.lane.b32.xlu0 %v2871, 64
    %v4252 = vpop.permute.xlu0 %4251
    %v4256 = vsel %vm1070, %v3723, 0
    %v4259 = vsel %vm1070, %v3724, 0
    %4261 = vmatprep.subr.mxu0 0.0
    %4262 = vmatpush1.msra.mxu0 %v4250
    %4263 = vmatprep.subr.mxu0 0.0
    %4264 = vmatpush1.msra.mxu0 %v4252
    %4265 = vmatprep.subr.mxu0 0.0
    %4266 = vmatpush1.msra.mxu0 0.0
    %4267 = vmatprep.subr.mxu0 0.0
    %4268 = vmatpush1.msra.mxu0 0.0
    %4269 = vmatprep.subr.mxu0 0.0
    %4270 = vmatpush1.msra.mxu0 0.0
    %4271 = vmatprep.subr.mxu0 0.0
    %4272 = vmatpush1.msra.mxu0 0.0
    %4273 = vmatprep.subr.mxu0 0.0
    %4274 = vmatpush1.msra.mxu0 0.0
    %4275 = vmatprep.subr.mxu0 0.0
    %4276 = vmatpush1.msra.mxu0 0.0
    %4277 = vmatprep.subr.mxu0 0.0
    %4278 = vmatpush1.msra.mxu0 0.0
    %4279 = vmatprep.subr.mxu0 0.0
    %4280 = vmatpush1.msra.mxu0 0.0
    %4281 = vmatprep.subr.mxu0 0.0
    %4282 = vmatpush1.msra.mxu0 0.0
    %4283 = vmatprep.subr.mxu0 0.0
    %4284 = vmatpush1.msra.mxu0 0.0
    %4285 = vmatprep.subr.mxu0 0.0
    %4286 = vmatpush1.msra.mxu0 0.0
    %4287 = vmatprep.subr.mxu0 0.0
    %4288 = vmatpush1.msra.mxu0 0.0
    %4289 = vmatprep.subr.mxu0 0.0
    %4290 = vmatpush1.msra.mxu0 0.0
    %4291 = vmatprep.subr.mxu0 0.0
    %4292 = vmatpush1.msra.mxu0 0.0
    %4293 = vmatprep.subr.mxu0 0.0
    %4294 = vmatpush1.msra.mxu0 0.0
    %4295 = vmatprep.subr.mxu0 0.0
    %4296 = vmatpush1.msra.mxu0 0.0
    %4297 = vmatprep.subr.mxu0 0.0
    %4298 = vmatpush1.msra.mxu0 0.0
    %4299 = vmatprep.subr.mxu0 0.0
    %4300 = vmatpush1.msra.mxu0 0.0
    %4301 = vmatprep.subr.mxu0 0.0
    %4302 = vmatpush1.msra.mxu0 0.0
    %4303 = vmatprep.subr.mxu0 0.0
    %4304 = vmatpush1.msra.mxu0 0.0
    %4305 = vmatprep.subr.mxu0 0.0
    %4306 = vmatpush1.msra.mxu0 0.0
    %4307 = vmatprep.subr.mxu0 0.0
    %4308 = vmatpush1.msra.mxu0 0.0
    %4309 = vmatprep.subr.mxu0 0.0
    %4310 = vmatpush1.msra.mxu0 0.0
    %4311 = vmatprep.subr.mxu0 0.0
    %4312 = vmatpush1.msra.mxu0 0.0
    %4313 = vmatprep.subr.mxu0 0.0
    %4314 = vmatpush1.msra.mxu0 0.0
    %4315 = vmatprep.subr.mxu0 0.0
    %4316 = vmatpush1.msra.mxu0 0.0
    %4317 = vmatprep.subr.mxu0 0.0
    %4318 = vmatpush1.msra.mxu0 0.0
    %4319 = vmatprep.subr.mxu0 0.0
    %4320 = vmatpush1.msra.mxu0 0.0
    %4321 = vmatprep.subr.mxu0 0.0
    %4322 = vmatpush1.msra.mxu0 0.0
    %4323 = vmatprep.subr.mxu0 0.0
    %4324 = vmatpush1.msra.mxu0 0.0
    %4325 = vmatprep.mubr.f32.mxu0 0.0
    %4326 = vmatmul.mubr.f32.gmra.mrb[0].mxu0 %v4256
    %v4327 = vpop.f32.mrb[0].mxu0
    %v4328 = vadd.f32 0.0, %v4327
    %v4329 = vpop.f32.mrb[0].mxu0
    %4330 = vmatprep.mubr.f32.mxu0 0.0
    %4331 = vmatmul.mubr.f32.gmra.mrb[0].mxu0 %v4259
    %v4332 = vpop.f32.mrb[0].mxu0
    %v4333 = vadd.f32 0.0, %v4332
    %v4334 = vpop.f32.mrb[0].mxu0
    %4335 = vdwg.mxu0
    %4336 = vrot.lane.b32.xlu0 %v2873, 64
    %v4337 = vpop.permute.xlu0 %4336
    %4338 = vrot.lane.b32.xlu0 %v2875, 64
    %v4339 = vpop.permute.xlu0 %4338
    %v4343 = vsel %vm1070, %v3725, 0
    %v4346 = vsel %vm1070, %v3726, 0
    %4348 = vmatprep.subr.mxu0 0.0
    %4349 = vmatpush1.msra.mxu0 %v4337
    %4350 = vmatprep.subr.mxu0 0.0
    %4351 = vmatpush1.msra.mxu0 %v4339
    %4352 = vmatprep.subr.mxu0 0.0
    %4353 = vmatpush1.msra.mxu0 0.0
    %4354 = vmatprep.subr.mxu0 0.0
    %4355 = vmatpush1.msra.mxu0 0.0
    %4356 = vmatprep.subr.mxu0 0.0
    %4357 = vmatpush1.msra.mxu0 0.0
    %4358 = vmatprep.subr.mxu0 0.0
    %4359 = vmatpush1.msra.mxu0 0.0
    %4360 = vmatprep.subr.mxu0 0.0
    %4361 = vmatpush1.msra.mxu0 0.0
    %4362 = vmatprep.subr.mxu0 0.0
    %4363 = vmatpush1.msra.mxu0 0.0
    %4364 = vmatprep.subr.mxu0 0.0
    %4365 = vmatpush1.msra.mxu0 0.0
    %4366 = vmatprep.subr.mxu0 0.0
    %4367 = vmatpush1.msra.mxu0 0.0
    %4368 = vmatprep.subr.mxu0 0.0
    %4369 = vmatpush1.msra.mxu0 0.0
    %4370 = vmatprep.subr.mxu0 0.0
    %4371 = vmatpush1.msra.mxu0 0.0
    %4372 = vmatprep.subr.mxu0 0.0
    %4373 = vmatpush1.msra.mxu0 0.0
    %4374 = vmatprep.subr.mxu0 0.0
    %4375 = vmatpush1.msra.mxu0 0.0
    %4376 = vmatprep.subr.mxu0 0.0
    %4377 = vmatpush1.msra.mxu0 0.0
    %4378 = vmatprep.subr.mxu0 0.0
    %4379 = vmatpush1.msra.mxu0 0.0
    %4380 = vmatprep.subr.mxu0 0.0
    %4381 = vmatpush1.msra.mxu0 0.0
    %4382 = vmatprep.subr.mxu0 0.0
    %4383 = vmatpush1.msra.mxu0 0.0
    %4384 = vmatprep.subr.mxu0 0.0
    %4385 = vmatpush1.msra.mxu0 0.0
    %4386 = vmatprep.subr.mxu0 0.0
    %4387 = vmatpush1.msra.mxu0 0.0
    %4388 = vmatprep.subr.mxu0 0.0
    %4389 = vmatpush1.msra.mxu0 0.0
    %4390 = vmatprep.subr.mxu0 0.0
    %4391 = vmatpush1.msra.mxu0 0.0
    %4392 = vmatprep.subr.mxu0 0.0
    %4393 = vmatpush1.msra.mxu0 0.0
    %4394 = vmatprep.subr.mxu0 0.0
    %4395 = vmatpush1.msra.mxu0 0.0
    %4396 = vmatprep.subr.mxu0 0.0
    %4397 = vmatpush1.msra.mxu0 0.0
    %4398 = vmatprep.subr.mxu0 0.0
    %4399 = vmatpush1.msra.mxu0 0.0
    %4400 = vmatprep.subr.mxu0 0.0
    %4401 = vmatpush1.msra.mxu0 0.0
    %4402 = vmatprep.subr.mxu0 0.0
    %4403 = vmatpush1.msra.mxu0 0.0
    %4404 = vmatprep.subr.mxu0 0.0
    %4405 = vmatpush1.msra.mxu0 0.0
    %4406 = vmatprep.subr.mxu0 0.0
    %4407 = vmatpush1.msra.mxu0 0.0
    %4408 = vmatprep.subr.mxu0 0.0
    %4409 = vmatpush1.msra.mxu0 0.0
    %4410 = vmatprep.subr.mxu0 0.0
    %4411 = vmatpush1.msra.mxu0 0.0
    %4412 = vmatprep.mubr.f32.mxu0 0.0
    %4413 = vmatmul.mubr.f32.gmra.mrb[0].mxu0 %v4343
    %v4414 = vpop.f32.mrb[0].mxu0
    %v4415 = vadd.f32 0.0, %v4414
    %v4416 = vpop.f32.mrb[0].mxu0
    %4417 = vmatprep.mubr.f32.mxu0 0.0
    %4418 = vmatmul.mubr.f32.gmra.mrb[0].mxu0 %v4346
    %v4419 = vpop.f32.mrb[0].mxu0
    %v4420 = vadd.f32 0.0, %v4419
    %v4421 = vpop.f32.mrb[0].mxu0
    %4422 = vdwg.mxu0
    %v4424 = vsel %vm377, %v3806, 0
    %v4427 = vsel %vm377, %v3811, 0
    %4429 = vmatprep.subr.mxu0 0.0
    %4430 = vmatpush1.msra.mxu0 %v2878
    %4431 = vmatprep.subr.mxu0 0.0
    %4432 = vmatpush1.msra.mxu0 0.0
    %4433 = vmatprep.subr.mxu0 0.0
    %4434 = vmatpush1.msra.mxu0 0.0
    %4435 = vmatprep.subr.mxu0 0.0
    %4436 = vmatpush1.msra.mxu0 0.0
    %4437 = vmatprep.subr.mxu0 0.0
    %4438 = vmatpush1.msra.mxu0 0.0
    %4439 = vmatprep.subr.mxu0 0.0
    %4440 = vmatpush1.msra.mxu0 0.0
    %4441 = vmatprep.subr.mxu0 0.0
    %4442 = vmatpush1.msra.mxu0 0.0
    %4443 = vmatprep.subr.mxu0 0.0
    %4444 = vmatpush1.msra.mxu0 0.0
    %4445 = vmatprep.subr.mxu0 0.0
    %4446 = vmatpush1.msra.mxu0 0.0
    %4447 = vmatprep.subr.mxu0 0.0
    %4448 = vmatpush1.msra.mxu0 0.0
    %4449 = vmatprep.subr.mxu0 0.0
    %4450 = vmatpush1.msra.mxu0 0.0
    %4451 = vmatprep.subr.mxu0 0.0
    %4452 = vmatpush1.msra.mxu0 0.0
    %4453 = vmatprep.subr.mxu0 0.0
    %4454 = vmatpush1.msra.mxu0 0.0
    %4455 = vmatprep.subr.mxu0 0.0
    %4456 = vmatpush1.msra.mxu0 0.0
    %4457 = vmatprep.subr.mxu0 0.0
    %4458 = vmatpush1.msra.mxu0 0.0
    %4459 = vmatprep.subr.mxu0 0.0
    %4460 = vmatpush1.msra.mxu0 0.0
    %4461 = vmatprep.subr.mxu0 0.0
    %4462 = vmatpush1.msra.mxu0 0.0
    %4463 = vmatprep.subr.mxu0 0.0
    %4464 = vmatpush1.msra.mxu0 0.0
    %4465 = vmatprep.subr.mxu0 0.0
    %4466 = vmatpush1.msra.mxu0 0.0
    %4467 = vmatprep.subr.mxu0 0.0
    %4468 = vmatpush1.msra.mxu0 0.0
    %4469 = vmatprep.subr.mxu0 0.0
    %4470 = vmatpush1.msra.mxu0 0.0
    %4471 = vmatprep.subr.mxu0 0.0
    %4472 = vmatpush1.msra.mxu0 0.0
    %4473 = vmatprep.subr.mxu0 0.0
    %4474 = vmatpush1.msra.mxu0 0.0
    %4475 = vmatprep.subr.mxu0 0.0
    %4476 = vmatpush1.msra.mxu0 0.0
    %4477 = vmatprep.subr.mxu0 0.0
    %4478 = vmatpush1.msra.mxu0 0.0
    %4479 = vmatprep.subr.mxu0 0.0
    %4480 = vmatpush1.msra.mxu0 0.0
    %4481 = vmatprep.subr.mxu0 0.0
    %4482 = vmatpush1.msra.mxu0 0.0
    %4483 = vmatprep.subr.mxu0 0.0
    %4484 = vmatpush1.msra.mxu0 0.0
    %4485 = vmatprep.subr.mxu0 0.0
    %4486 = vmatpush1.msra.mxu0 0.0
    %4487 = vmatprep.subr.mxu0 0.0
    %4488 = vmatpush1.msra.mxu0 0.0
    %4489 = vmatprep.subr.mxu0 0.0
    %4490 = vmatpush1.msra.mxu0 0.0
    %4491 = vmatprep.subr.mxu0 0.0
    %4492 = vmatpush1.msra.mxu0 0.0
    %4493 = vmatprep.mubr.f32.mxu0 0.0
    %4494 = vmatmul.mubr.f32.gmra.mrb[0].mxu0 %v4424
    %v4495 = vpop.f32.mrb[0].mxu0
    %v4496 = vadd.f32 0.0, %v4495
    %v4497 = vpop.f32.mrb[0].mxu0
    %4498 = vmatprep.mubr.f32.mxu0 0.0
    %4499 = vmatmul.mubr.f32.gmra.mrb[0].mxu0 %v4427
    %v4500 = vpop.f32.mrb[0].mxu0
    %v4501 = vadd.f32 0.0, %v4500
    %v4502 = vpop.f32.mrb[0].mxu0
    %4503 = vdwg.mxu0
    %v4505 = vsel %vm377, %v3893, 0
    %v4508 = vsel %vm377, %v3898, 0
    %4510 = vmatprep.subr.mxu0 0.0
    %4511 = vmatpush1.msra.mxu0 %v2879
    %4512 = vmatprep.subr.mxu0 0.0
    %4513 = vmatpush1.msra.mxu0 0.0
    %4514 = vmatprep.subr.mxu0 0.0
    %4515 = vmatpush1.msra.mxu0 0.0
    %4516 = vmatprep.subr.mxu0 0.0
    %4517 = vmatpush1.msra.mxu0 0.0
    %4518 = vmatprep.subr.mxu0 0.0
    %4519 = vmatpush1.msra.mxu0 0.0
    %4520 = vmatprep.subr.mxu0 0.0
    %4521 = vmatpush1.msra.mxu0 0.0
    %4522 = vmatprep.subr.mxu0 0.0
    %4523 = vmatpush1.msra.mxu0 0.0
    %4524 = vmatprep.subr.mxu0 0.0
    %4525 = vmatpush1.msra.mxu0 0.0
    %4526 = vmatprep.subr.mxu0 0.0
    %4527 = vmatpush1.msra.mxu0 0.0
    %4528 = vmatprep.subr.mxu0 0.0
    %4529 = vmatpush1.msra.mxu0 0.0
    %4530 = vmatprep.subr.mxu0 0.0
    %4531 = vmatpush1.msra.mxu0 0.0
    %4532 = vmatprep.subr.mxu0 0.0
    %4533 = vmatpush1.msra.mxu0 0.0
    %4534 = vmatprep.subr.mxu0 0.0
    %4535 = vmatpush1.msra.mxu0 0.0
    %4536 = vmatprep.subr.mxu0 0.0
    %4537 = vmatpush1.msra.mxu0 0.0
    %4538 = vmatprep.subr.mxu0 0.0
    %4539 = vmatpush1.msra.mxu0 0.0
    %4540 = vmatprep.subr.mxu0 0.0
    %4541 = vmatpush1.msra.mxu0 0.0
    %4542 = vmatprep.subr.mxu0 0.0
    %4543 = vmatpush1.msra.mxu0 0.0
    %4544 = vmatprep.subr.mxu0 0.0
    %4545 = vmatpush1.msra.mxu0 0.0
    %4546 = vmatprep.subr.mxu0 0.0
    %4547 = vmatpush1.msra.mxu0 0.0
    %4548 = vmatprep.subr.mxu0 0.0
    %4549 = vmatpush1.msra.mxu0 0.0
    %4550 = vmatprep.subr.mxu0 0.0
    %4551 = vmatpush1.msra.mxu0 0.0
    %4552 = vmatprep.subr.mxu0 0.0
    %4553 = vmatpush1.msra.mxu0 0.0
    %4554 = vmatprep.subr.mxu0 0.0
    %4555 = vmatpush1.msra.mxu0 0.0
    %4556 = vmatprep.subr.mxu0 0.0
    %4557 = vmatpush1.msra.mxu0 0.0
    %4558 = vmatprep.subr.mxu0 0.0
    %4559 = vmatpush1.msra.mxu0 0.0
    %4560 = vmatprep.subr.mxu0 0.0
    %4561 = vmatpush1.msra.mxu0 0.0
    %4562 = vmatprep.subr.mxu0 0.0
    %4563 = vmatpush1.msra.mxu0 0.0
    %4564 = vmatprep.subr.mxu0 0.0
    %4565 = vmatpush1.msra.mxu0 0.0
    %4566 = vmatprep.subr.mxu0 0.0
    %4567 = vmatpush1.msra.mxu0 0.0
    %4568 = vmatprep.subr.mxu0 0.0
    %4569 = vmatpush1.msra.mxu0 0.0
    %4570 = vmatprep.subr.mxu0 0.0
    %4571 = vmatpush1.msra.mxu0 0.0
    %4572 = vmatprep.subr.mxu0 0.0
    %4573 = vmatpush1.msra.mxu0 0.0
    %4574 = vmatprep.mubr.f32.mxu0 0.0
    %4575 = vmatmul.mubr.f32.gmra.mrb[0].mxu0 %v4505
    %v4576 = vpop.f32.mrb[0].mxu0
    %v4577 = vadd.f32 0.0, %v4576
    %v4578 = vpop.f32.mrb[0].mxu0
    %4579 = vmatprep.mubr.f32.mxu0 0.0
    %4580 = vmatmul.mubr.f32.gmra.mrb[0].mxu0 %v4508
    %v4581 = vpop.f32.mrb[0].mxu0
    %v4582 = vadd.f32 0.0, %v4581
    %v4583 = vpop.f32.mrb[0].mxu0
    %4584 = vdwg.mxu0
    %v4586 = vsel %vm377, %v3980, 0
    %v4589 = vsel %vm377, %v3985, 0
    %4591 = vmatprep.subr.mxu0 0.0
    %4592 = vmatpush1.msra.mxu0 %v2880
    %4593 = vmatprep.subr.mxu0 0.0
    %4594 = vmatpush1.msra.mxu0 0.0
    %4595 = vmatprep.subr.mxu0 0.0
    %4596 = vmatpush1.msra.mxu0 0.0
    %4597 = vmatprep.subr.mxu0 0.0
    %4598 = vmatpush1.msra.mxu0 0.0
    %4599 = vmatprep.subr.mxu0 0.0
    %4600 = vmatpush1.msra.mxu0 0.0
    %4601 = vmatprep.subr.mxu0 0.0
    %4602 = vmatpush1.msra.mxu0 0.0
    %4603 = vmatprep.subr.mxu0 0.0
    %4604 = vmatpush1.msra.mxu0 0.0
    %4605 = vmatprep.subr.mxu0 0.0
    %4606 = vmatpush1.msra.mxu0 0.0
    %4607 = vmatprep.subr.mxu0 0.0
    %4608 = vmatpush1.msra.mxu0 0.0
    %4609 = vmatprep.subr.mxu0 0.0
    %4610 = vmatpush1.msra.mxu0 0.0
    %4611 = vmatprep.subr.mxu0 0.0
    %4612 = vmatpush1.msra.mxu0 0.0
    %4613 = vmatprep.subr.mxu0 0.0
    %4614 = vmatpush1.msra.mxu0 0.0
    %4615 = vmatprep.subr.mxu0 0.0
    %4616 = vmatpush1.msra.mxu0 0.0
    %4617 = vmatprep.subr.mxu0 0.0
    %4618 = vmatpush1.msra.mxu0 0.0
    %4619 = vmatprep.subr.mxu0 0.0
    %4620 = vmatpush1.msra.mxu0 0.0
    %4621 = vmatprep.subr.mxu0 0.0
    %4622 = vmatpush1.msra.mxu0 0.0
    %4623 = vmatprep.subr.mxu0 0.0
    %4624 = vmatpush1.msra.mxu0 0.0
    %4625 = vmatprep.subr.mxu0 0.0
    %4626 = vmatpush1.msra.mxu0 0.0
    %4627 = vmatprep.subr.mxu0 0.0
    %4628 = vmatpush1.msra.mxu0 0.0
    %4629 = vmatprep.subr.mxu0 0.0
    %4630 = vmatpush1.msra.mxu0 0.0
    %4631 = vmatprep.subr.mxu0 0.0
    %4632 = vmatpush1.msra.mxu0 0.0
    %4633 = vmatprep.subr.mxu0 0.0
    %4634 = vmatpush1.msra.mxu0 0.0
    %4635 = vmatprep.subr.mxu0 0.0
    %4636 = vmatpush1.msra.mxu0 0.0
    %4637 = vmatprep.subr.mxu0 0.0
    %4638 = vmatpush1.msra.mxu0 0.0
    %4639 = vmatprep.subr.mxu0 0.0
    %4640 = vmatpush1.msra.mxu0 0.0
    %4641 = vmatprep.subr.mxu0 0.0
    %4642 = vmatpush1.msra.mxu0 0.0
    %4643 = vmatprep.subr.mxu0 0.0
    %4644 = vmatpush1.msra.mxu0 0.0
    %4645 = vmatprep.subr.mxu0 0.0
    %4646 = vmatpush1.msra.mxu0 0.0
    %4647 = vmatprep.subr.mxu0 0.0
    %4648 = vmatpush1.msra.mxu0 0.0
    %4649 = vmatprep.subr.mxu0 0.0
    %4650 = vmatpush1.msra.mxu0 0.0
    %4651 = vmatprep.subr.mxu0 0.0
    %4652 = vmatpush1.msra.mxu0 0.0
    %4653 = vmatprep.subr.mxu0 0.0
    %4654 = vmatpush1.msra.mxu0 0.0
    %4655 = vmatprep.mubr.f32.mxu0 0.0
    %4656 = vmatmul.mubr.f32.gmra.mrb[0].mxu0 %v4586
    %v4657 = vpop.f32.mrb[0].mxu0
    %v4658 = vadd.f32 0.0, %v4657
    %v4659 = vpop.f32.mrb[0].mxu0
    %4660 = vmatprep.mubr.f32.mxu0 0.0
    %4661 = vmatmul.mubr.f32.gmra.mrb[0].mxu0 %v4589
    %v4662 = vpop.f32.mrb[0].mxu0
    %v4663 = vadd.f32 0.0, %v4662
    %v4664 = vpop.f32.mrb[0].mxu0
    %4665 = vdwg.mxu0
    %v4667 = vsel %vm377, %v4067, 0
    %v4670 = vsel %vm377, %v4072, 0
    %4672 = vmatprep.subr.mxu0 0.0
    %4673 = vmatpush1.msra.mxu0 %v2881
    %4674 = vmatprep.subr.mxu0 0.0
    %4675 = vmatpush1.msra.mxu0 0.0
    %4676 = vmatprep.subr.mxu0 0.0
    %4677 = vmatpush1.msra.mxu0 0.0
    %4678 = vmatprep.subr.mxu0 0.0
    %4679 = vmatpush1.msra.mxu0 0.0
    %4680 = vmatprep.subr.mxu0 0.0
    %4681 = vmatpush1.msra.mxu0 0.0
    %4682 = vmatprep.subr.mxu0 0.0
    %4683 = vmatpush1.msra.mxu0 0.0
    %4684 = vmatprep.subr.mxu0 0.0
    %4685 = vmatpush1.msra.mxu0 0.0
    %4686 = vmatprep.subr.mxu0 0.0
    %4687 = vmatpush1.msra.mxu0 0.0
    %4688 = vmatprep.subr.mxu0 0.0
    %4689 = vmatpush1.msra.mxu0 0.0
    %4690 = vmatprep.subr.mxu0 0.0
    %4691 = vmatpush1.msra.mxu0 0.0
    %4692 = vmatprep.subr.mxu0 0.0
    %4693 = vmatpush1.msra.mxu0 0.0
    %4694 = vmatprep.subr.mxu0 0.0
    %4695 = vmatpush1.msra.mxu0 0.0
    %4696 = vmatprep.subr.mxu0 0.0
    %4697 = vmatpush1.msra.mxu0 0.0
    %4698 = vmatprep.subr.mxu0 0.0
    %4699 = vmatpush1.msra.mxu0 0.0
    %4700 = vmatprep.subr.mxu0 0.0
    %4701 = vmatpush1.msra.mxu0 0.0
    %4702 = vmatprep.subr.mxu0 0.0
    %4703 = vmatpush1.msra.mxu0 0.0
    %4704 = vmatprep.subr.mxu0 0.0
    %4705 = vmatpush1.msra.mxu0 0.0
    %4706 = vmatprep.subr.mxu0 0.0
    %4707 = vmatpush1.msra.mxu0 0.0
    %4708 = vmatprep.subr.mxu0 0.0
    %4709 = vmatpush1.msra.mxu0 0.0
    %4710 = vmatprep.subr.mxu0 0.0
    %4711 = vmatpush1.msra.mxu0 0.0
    %4712 = vmatprep.subr.mxu0 0.0
    %4713 = vmatpush1.msra.mxu0 0.0
    %4714 = vmatprep.subr.mxu0 0.0
    %4715 = vmatpush1.msra.mxu0 0.0
    %4716 = vmatprep.subr.mxu0 0.0
    %4717 = vmatpush1.msra.mxu0 0.0
    %4718 = vmatprep.subr.mxu0 0.0
    %4719 = vmatpush1.msra.mxu0 0.0
    %4720 = vmatprep.subr.mxu0 0.0
    %4721 = vmatpush1.msra.mxu0 0.0
    %4722 = vmatprep.subr.mxu0 0.0
    %4723 = vmatpush1.msra.mxu0 0.0
    %4724 = vmatprep.subr.mxu0 0.0
    %4725 = vmatpush1.msra.mxu0 0.0
    %4726 = vmatprep.subr.mxu0 0.0
    %4727 = vmatpush1.msra.mxu0 0.0
    %4728 = vmatprep.subr.mxu0 0.0
    %4729 = vmatpush1.msra.mxu0 0.0
    %4730 = vmatprep.subr.mxu0 0.0
    %4731 = vmatpush1.msra.mxu0 0.0
    %4732 = vmatprep.subr.mxu0 0.0
    %4733 = vmatpush1.msra.mxu0 0.0
    %4734 = vmatprep.subr.mxu0 0.0
    %4735 = vmatpush1.msra.mxu0 0.0
    %4736 = vmatprep.mubr.f32.mxu0 0.0
    %4737 = vmatmul.mubr.f32.gmra.mrb[0].mxu0 %v4667
    %v4738 = vpop.f32.mrb[0].mxu0
    %v4739 = vadd.f32 0.0, %v4738
    %v4740 = vpop.f32.mrb[0].mxu0
    %4741 = vmatprep.mubr.f32.mxu0 0.0
    %4742 = vmatmul.mubr.f32.gmra.mrb[0].mxu0 %v4670
    %v4743 = vpop.f32.mrb[0].mxu0
    %v4744 = vadd.f32 0.0, %v4743
    %v4745 = vpop.f32.mrb[0].mxu0
    %4746 = vdwg.mxu0
    %v4748 = vsel %vm377, %v4154, 0
    %v4751 = vsel %vm377, %v4159, 0
    %4753 = vmatprep.subr.mxu0 0.0
    %4754 = vmatpush1.msra.mxu0 %v2882
    %4755 = vmatprep.subr.mxu0 0.0
    %4756 = vmatpush1.msra.mxu0 0.0
    %4757 = vmatprep.subr.mxu0 0.0
    %4758 = vmatpush1.msra.mxu0 0.0
    %4759 = vmatprep.subr.mxu0 0.0
    %4760 = vmatpush1.msra.mxu0 0.0
    %4761 = vmatprep.subr.mxu0 0.0
    %4762 = vmatpush1.msra.mxu0 0.0
    %4763 = vmatprep.subr.mxu0 0.0
    %4764 = vmatpush1.msra.mxu0 0.0
    %4765 = vmatprep.subr.mxu0 0.0
    %4766 = vmatpush1.msra.mxu0 0.0
    %4767 = vmatprep.subr.mxu0 0.0
    %4768 = vmatpush1.msra.mxu0 0.0
    %4769 = vmatprep.subr.mxu0 0.0
    %4770 = vmatpush1.msra.mxu0 0.0
    %4771 = vmatprep.subr.mxu0 0.0
    %4772 = vmatpush1.msra.mxu0 0.0
    %4773 = vmatprep.subr.mxu0 0.0
    %4774 = vmatpush1.msra.mxu0 0.0
    %4775 = vmatprep.subr.mxu0 0.0
    %4776 = vmatpush1.msra.mxu0 0.0
    %4777 = vmatprep.subr.mxu0 0.0
    %4778 = vmatpush1.msra.mxu0 0.0
    %4779 = vmatprep.subr.mxu0 0.0
    %4780 = vmatpush1.msra.mxu0 0.0
    %4781 = vmatprep.subr.mxu0 0.0
    %4782 = vmatpush1.msra.mxu0 0.0
    %4783 = vmatprep.subr.mxu0 0.0
    %4784 = vmatpush1.msra.mxu0 0.0
    %4785 = vmatprep.subr.mxu0 0.0
    %4786 = vmatpush1.msra.mxu0 0.0
    %4787 = vmatprep.subr.mxu0 0.0
    %4788 = vmatpush1.msra.mxu0 0.0
    %4789 = vmatprep.subr.mxu0 0.0
    %4790 = vmatpush1.msra.mxu0 0.0
    %4791 = vmatprep.subr.mxu0 0.0
    %4792 = vmatpush1.msra.mxu0 0.0
    %4793 = vmatprep.subr.mxu0 0.0
    %4794 = vmatpush1.msra.mxu0 0.0
    %4795 = vmatprep.subr.mxu0 0.0
    %4796 = vmatpush1.msra.mxu0 0.0
    %4797 = vmatprep.subr.mxu0 0.0
    %4798 = vmatpush1.msra.mxu0 0.0
    %4799 = vmatprep.subr.mxu0 0.0
    %4800 = vmatpush1.msra.mxu0 0.0
    %4801 = vmatprep.subr.mxu0 0.0
    %4802 = vmatpush1.msra.mxu0 0.0
    %4803 = vmatprep.subr.mxu0 0.0
    %4804 = vmatpush1.msra.mxu0 0.0
    %4805 = vmatprep.subr.mxu0 0.0
    %4806 = vmatpush1.msra.mxu0 0.0
    %4807 = vmatprep.subr.mxu0 0.0
    %4808 = vmatpush1.msra.mxu0 0.0
    %4809 = vmatprep.subr.mxu0 0.0
    %4810 = vmatpush1.msra.mxu0 0.0
    %4811 = vmatprep.subr.mxu0 0.0
    %4812 = vmatpush1.msra.mxu0 0.0
    %4813 = vmatprep.subr.mxu0 0.0
    %4814 = vmatpush1.msra.mxu0 0.0
    %4815 = vmatprep.subr.mxu0 0.0
    %4816 = vmatpush1.msra.mxu0 0.0
    %4817 = vmatprep.mubr.f32.mxu0 0.0
    %4818 = vmatmul.mubr.f32.gmra.mrb[0].mxu0 %v4748
    %v4819 = vpop.f32.mrb[0].mxu0
    %v4820 = vadd.f32 0.0, %v4819
    %v4821 = vpop.f32.mrb[0].mxu0
    %4822 = vmatprep.mubr.f32.mxu0 0.0
    %4823 = vmatmul.mubr.f32.gmra.mrb[0].mxu0 %v4751
    %v4824 = vpop.f32.mrb[0].mxu0
    %v4825 = vadd.f32 0.0, %v4824
    %v4826 = vpop.f32.mrb[0].mxu0
    %4827 = vdwg.mxu0
    %v4829 = vsel %vm377, %v4241, 0
    %v4832 = vsel %vm377, %v4246, 0
    %4834 = vmatprep.subr.mxu0 0.0
    %4835 = vmatpush1.msra.mxu0 %v2883
    %4836 = vmatprep.subr.mxu0 0.0
    %4837 = vmatpush1.msra.mxu0 0.0
    %4838 = vmatprep.subr.mxu0 0.0
    %4839 = vmatpush1.msra.mxu0 0.0
    %4840 = vmatprep.subr.mxu0 0.0
    %4841 = vmatpush1.msra.mxu0 0.0
    %4842 = vmatprep.subr.mxu0 0.0
    %4843 = vmatpush1.msra.mxu0 0.0
    %4844 = vmatprep.subr.mxu0 0.0
    %4845 = vmatpush1.msra.mxu0 0.0
    %4846 = vmatprep.subr.mxu0 0.0
    %4847 = vmatpush1.msra.mxu0 0.0
    %4848 = vmatprep.subr.mxu0 0.0
    %4849 = vmatpush1.msra.mxu0 0.0
    %4850 = vmatprep.subr.mxu0 0.0
    %4851 = vmatpush1.msra.mxu0 0.0
    %4852 = vmatprep.subr.mxu0 0.0
    %4853 = vmatpush1.msra.mxu0 0.0
    %4854 = vmatprep.subr.mxu0 0.0
    %4855 = vmatpush1.msra.mxu0 0.0
    %4856 = vmatprep.subr.mxu0 0.0
    %4857 = vmatpush1.msra.mxu0 0.0
    %4858 = vmatprep.subr.mxu0 0.0
    %4859 = vmatpush1.msra.mxu0 0.0
    %4860 = vmatprep.subr.mxu0 0.0
    %4861 = vmatpush1.msra.mxu0 0.0
    %4862 = vmatprep.subr.mxu0 0.0
    %4863 = vmatpush1.msra.mxu0 0.0
    %4864 = vmatprep.subr.mxu0 0.0
    %4865 = vmatpush1.msra.mxu0 0.0
    %4866 = vmatprep.subr.mxu0 0.0
    %4867 = vmatpush1.msra.mxu0 0.0
    %4868 = vmatprep.subr.mxu0 0.0
    %4869 = vmatpush1.msra.mxu0 0.0
    %4870 = vmatprep.subr.mxu0 0.0
    %4871 = vmatpush1.msra.mxu0 0.0
    %4872 = vmatprep.subr.mxu0 0.0
    %4873 = vmatpush1.msra.mxu0 0.0
    %4874 = vmatprep.subr.mxu0 0.0
    %4875 = vmatpush1.msra.mxu0 0.0
    %4876 = vmatprep.subr.mxu0 0.0
    %4877 = vmatpush1.msra.mxu0 0.0
    %4878 = vmatprep.subr.mxu0 0.0
    %4879 = vmatpush1.msra.mxu0 0.0
    %4880 = vmatprep.subr.mxu0 0.0
    %4881 = vmatpush1.msra.mxu0 0.0
    %4882 = vmatprep.subr.mxu0 0.0
    %4883 = vmatpush1.msra.mxu0 0.0
    %4884 = vmatprep.subr.mxu0 0.0
    %4885 = vmatpush1.msra.mxu0 0.0
    %4886 = vmatprep.subr.mxu0 0.0
    %4887 = vmatpush1.msra.mxu0 0.0
    %4888 = vmatprep.subr.mxu0 0.0
    %4889 = vmatpush1.msra.mxu0 0.0
    %4890 = vmatprep.subr.mxu0 0.0
    %4891 = vmatpush1.msra.mxu0 0.0
    %4892 = vmatprep.subr.mxu0 0.0
    %4893 = vmatpush1.msra.mxu0 0.0
    %4894 = vmatprep.subr.mxu0 0.0
    %4895 = vmatpush1.msra.mxu0 0.0
    %4896 = vmatprep.subr.mxu0 0.0
    %4897 = vmatpush1.msra.mxu0 0.0
    %4898 = vmatprep.mubr.f32.mxu0 0.0
    %4899 = vmatmul.mubr.f32.gmra.mrb[0].mxu0 %v4829
    %v4900 = vpop.f32.mrb[0].mxu0
    %v4901 = vadd.f32 0.0, %v4900
    %v4902 = vpop.f32.mrb[0].mxu0
    %4903 = vmatprep.mubr.f32.mxu0 0.0
    %4904 = vmatmul.mubr.f32.gmra.mrb[0].mxu0 %v4832
    %v4905 = vpop.f32.mrb[0].mxu0
    %v4906 = vadd.f32 0.0, %v4905
    %v4907 = vpop.f32.mrb[0].mxu0
    %4908 = vdwg.mxu0
    %v4910 = vsel %vm377, %v4328, 0
    %v4913 = vsel %vm377, %v4333, 0
    %4915 = vmatprep.subr.mxu0 0.0
    %4916 = vmatpush1.msra.mxu0 %v2884
    %4917 = vmatprep.subr.mxu0 0.0
    %4918 = vmatpush1.msra.mxu0 0.0
    %4919 = vmatprep.subr.mxu0 0.0
    %4920 = vmatpush1.msra.mxu0 0.0
    %4921 = vmatprep.subr.mxu0 0.0
    %4922 = vmatpush1.msra.mxu0 0.0
    %4923 = vmatprep.subr.mxu0 0.0
    %4924 = vmatpush1.msra.mxu0 0.0
    %4925 = vmatprep.subr.mxu0 0.0
    %4926 = vmatpush1.msra.mxu0 0.0
    %4927 = vmatprep.subr.mxu0 0.0
    %4928 = vmatpush1.msra.mxu0 0.0
    %4929 = vmatprep.subr.mxu0 0.0
    %4930 = vmatpush1.msra.mxu0 0.0
    %4931 = vmatprep.subr.mxu0 0.0
    %4932 = vmatpush1.msra.mxu0 0.0
    %4933 = vmatprep.subr.mxu0 0.0
    %4934 = vmatpush1.msra.mxu0 0.0
    %4935 = vmatprep.subr.mxu0 0.0
    %4936 = vmatpush1.msra.mxu0 0.0
    %4937 = vmatprep.subr.mxu0 0.0
    %4938 = vmatpush1.msra.mxu0 0.0
    %4939 = vmatprep.subr.mxu0 0.0
    %4940 = vmatpush1.msra.mxu0 0.0
    %4941 = vmatprep.subr.mxu0 0.0
    %4942 = vmatpush1.msra.mxu0 0.0
    %4943 = vmatprep.subr.mxu0 0.0
    %4944 = vmatpush1.msra.mxu0 0.0
    %4945 = vmatprep.subr.mxu0 0.0
    %4946 = vmatpush1.msra.mxu0 0.0
    %4947 = vmatprep.subr.mxu0 0.0
    %4948 = vmatpush1.msra.mxu0 0.0
    %4949 = vmatprep.subr.mxu0 0.0
    %4950 = vmatpush1.msra.mxu0 0.0
    %4951 = vmatprep.subr.mxu0 0.0
    %4952 = vmatpush1.msra.mxu0 0.0
    %4953 = vmatprep.subr.mxu0 0.0
    %4954 = vmatpush1.msra.mxu0 0.0
    %4955 = vmatprep.subr.mxu0 0.0
    %4956 = vmatpush1.msra.mxu0 0.0
    %4957 = vmatprep.subr.mxu0 0.0
    %4958 = vmatpush1.msra.mxu0 0.0
    %4959 = vmatprep.subr.mxu0 0.0
    %4960 = vmatpush1.msra.mxu0 0.0
    %4961 = vmatprep.subr.mxu0 0.0
    %4962 = vmatpush1.msra.mxu0 0.0
    %4963 = vmatprep.subr.mxu0 0.0
    %4964 = vmatpush1.msra.mxu0 0.0
    %4965 = vmatprep.subr.mxu0 0.0
    %4966 = vmatpush1.msra.mxu0 0.0
    %4967 = vmatprep.subr.mxu0 0.0
    %4968 = vmatpush1.msra.mxu0 0.0
    %4969 = vmatprep.subr.mxu0 0.0
    %4970 = vmatpush1.msra.mxu0 0.0
    %4971 = vmatprep.subr.mxu0 0.0
    %4972 = vmatpush1.msra.mxu0 0.0
    %4973 = vmatprep.subr.mxu0 0.0
    %4974 = vmatpush1.msra.mxu0 0.0
    %4975 = vmatprep.subr.mxu0 0.0
    %4976 = vmatpush1.msra.mxu0 0.0
    %4977 = vmatprep.subr.mxu0 0.0
    %4978 = vmatpush1.msra.mxu0 0.0
    %4979 = vmatprep.mubr.f32.mxu0 0.0
    %4980 = vmatmul.mubr.f32.gmra.mrb[0].mxu0 %v4910
    %v4981 = vpop.f32.mrb[0].mxu0
    %v4982 = vadd.f32 0.0, %v4981
    %v4983 = vpop.f32.mrb[0].mxu0
    %4984 = vmatprep.mubr.f32.mxu0 0.0
    %4985 = vmatmul.mubr.f32.gmra.mrb[0].mxu0 %v4913
    %v4986 = vpop.f32.mrb[0].mxu0
    %v4987 = vadd.f32 0.0, %v4986
    %v4988 = vpop.f32.mrb[0].mxu0
    %4989 = vdwg.mxu0
    %v4991 = vsel %vm377, %v4415, 0
    %v4994 = vsel %vm377, %v4420, 0
    %4996 = vmatprep.subr.mxu0 0.0
    %4997 = vmatpush1.msra.mxu0 %v2885
    %4998 = vmatprep.subr.mxu0 0.0
    %4999 = vmatpush1.msra.mxu0 0.0
    %5000 = vmatprep.subr.mxu0 0.0
    %5001 = vmatpush1.msra.mxu0 0.0
    %5002 = vmatprep.subr.mxu0 0.0
    %5003 = vmatpush1.msra.mxu0 0.0
    %5004 = vmatprep.subr.mxu0 0.0
    %5005 = vmatpush1.msra.mxu0 0.0
    %5006 = vmatprep.subr.mxu0 0.0
    %5007 = vmatpush1.msra.mxu0 0.0
    %5008 = vmatprep.subr.mxu0 0.0
    %5009 = vmatpush1.msra.mxu0 0.0
    %5010 = vmatprep.subr.mxu0 0.0
    %5011 = vmatpush1.msra.mxu0 0.0
    %5012 = vmatprep.subr.mxu0 0.0
    %5013 = vmatpush1.msra.mxu0 0.0
    %5014 = vmatprep.subr.mxu0 0.0
    %5015 = vmatpush1.msra.mxu0 0.0
    %5016 = vmatprep.subr.mxu0 0.0
    %5017 = vmatpush1.msra.mxu0 0.0
    %5018 = vmatprep.subr.mxu0 0.0
    %5019 = vmatpush1.msra.mxu0 0.0
    %5020 = vmatprep.subr.mxu0 0.0
    %5021 = vmatpush1.msra.mxu0 0.0
    %5022 = vmatprep.subr.mxu0 0.0
    %5023 = vmatpush1.msra.mxu0 0.0
    %5024 = vmatprep.subr.mxu0 0.0
    %5025 = vmatpush1.msra.mxu0 0.0
    %5026 = vmatprep.subr.mxu0 0.0
    %5027 = vmatpush1.msra.mxu0 0.0
    %5028 = vmatprep.subr.mxu0 0.0
    %5029 = vmatpush1.msra.mxu0 0.0
    %5030 = vmatprep.subr.mxu0 0.0
    %5031 = vmatpush1.msra.mxu0 0.0
    %5032 = vmatprep.subr.mxu0 0.0
    %5033 = vmatpush1.msra.mxu0 0.0
    %5034 = vmatprep.subr.mxu0 0.0
    %5035 = vmatpush1.msra.mxu0 0.0
    %5036 = vmatprep.subr.mxu0 0.0
    %5037 = vmatpush1.msra.mxu0 0.0
    %5038 = vmatprep.subr.mxu0 0.0
    %5039 = vmatpush1.msra.mxu0 0.0
    %5040 = vmatprep.subr.mxu0 0.0
    %5041 = vmatpush1.msra.mxu0 0.0
    %5042 = vmatprep.subr.mxu0 0.0
    %5043 = vmatpush1.msra.mxu0 0.0
    %5044 = vmatprep.subr.mxu0 0.0
    %5045 = vmatpush1.msra.mxu0 0.0
    %5046 = vmatprep.subr.mxu0 0.0
    %5047 = vmatpush1.msra.mxu0 0.0
    %5048 = vmatprep.subr.mxu0 0.0
    %5049 = vmatpush1.msra.mxu0 0.0
    %5050 = vmatprep.subr.mxu0 0.0
    %5051 = vmatpush1.msra.mxu0 0.0
    %5052 = vmatprep.subr.mxu0 0.0
    %5053 = vmatpush1.msra.mxu0 0.0
    %5054 = vmatprep.subr.mxu0 0.0
    %5055 = vmatpush1.msra.mxu0 0.0
    %5056 = vmatprep.subr.mxu0 0.0
    %5057 = vmatpush1.msra.mxu0 0.0
    %5058 = vmatprep.subr.mxu0 0.0
    %5059 = vmatpush1.msra.mxu0 0.0
    %5060 = vmatprep.mubr.f32.mxu0 0.0
    %5061 = vmatmul.mubr.f32.gmra.mrb[0].mxu0 %v4991
    %v5062 = vpop.f32.mrb[0].mxu0
    %v5063 = vadd.f32 0.0, %v5062
    %v5064 = vpop.f32.mrb[0].mxu0
    %5065 = vmatprep.mubr.f32.mxu0 0.0
    %5066 = vmatmul.mubr.f32.gmra.mrb[0].mxu0 %v4994
    %v5067 = vpop.f32.mrb[0].mxu0
    %v5068 = vadd.f32 0.0, %v5067
    %v5069 = vpop.f32.mrb[0].mxu0
    %5070 = vdwg.mxu0
    %v5071 = vsel %vm204, %v4496, 0.0
    %v5072 = vsel %vm204, %v4577, 0.0
    %v5073 = vadd.f32 %v5071, %v5072
    %v5074 = vsel %vm204, %v4658, 0.0
    %v5075 = vadd.f32 %v5073, %v5074
    %v5076 = vsel %vm204, %v4739, 0.0
    %v5077 = vadd.f32 %v5075, %v5076
    %v5078 = vsel %vm204, %v4820, 0.0
    %v5079 = vadd.f32 %v5077, %v5078
    %v5080 = vsel %vm204, %v4901, 0.0
    %v5081 = vadd.f32 %v5079, %v5080
    %v5082 = vsel %vm204, %v4982, 0.0
    %v5083 = vadd.f32 %v5081, %v5082
    %v5084 = vsel %vm204, %v5063, 0.0
    %v5085 = vadd.f32 %v5083, %v5084
    %v5086 = vsel %vm204, %v4501, 0.0
    %v5087 = vsel %vm204, %v4582, 0.0
    %v5088 = vadd.f32 %v5086, %v5087
    %v5089 = vsel %vm204, %v4663, 0.0
    %v5090 = vadd.f32 %v5088, %v5089
    %v5091 = vsel %vm204, %v4744, 0.0
    %v5092 = vadd.f32 %v5090, %v5091
    %v5093 = vsel %vm204, %v4825, 0.0
    %v5094 = vadd.f32 %v5092, %v5093
    %v5095 = vsel %vm204, %v4906, 0.0
    %v5096 = vadd.f32 %v5094, %v5095
    %v5097 = vsel %vm204, %v4987, 0.0
    %v5098 = vadd.f32 %v5096, %v5097
    %v5099 = vsel %vm204, %v5068, 0.0
    %v5100 = vadd.f32 %v5098, %v5099
    %v5102 = vlaneseq
    %v5103 = vshrl.u32 %v5102, 7
    %v5104 = vsub.s32 0, %v5103
    %v5105 = vrot.slane %v2886, %v5104
    %v5107 = vadd.f32 %v5085, %v5105
    %v5108 = vadd.f32 %v5100, %v5105
    %v5109 = vadd.f32 %v2622, %v5107
    %v5110 = vadd.f32 %v2623, %v5108
    %v5111 = vld [vmem:[%s18 + $0x2] sm:$0x1]
    %v5112 = vld [vmem:[%s18 + $0x3] sm:$0x1]
    %v5113 = vsel %vm204, %v5109, 0.0
    %5114 = vadd.xlane.f32.xlu0 %v5113
    %v5115 = vpop.xlane.xlu0 %5114
    %v5116 = vsel %vm204, %v5110, 0.0
    %5117 = vadd.xlane.f32.xlu0 %v5116
    %v5118 = vpop.xlane.xlu0 %5117
    %v5119 = vmul.f32 %v5115, %v2591
    %v5120 = vmul.f32 %v5118, %v2591
    %v5121 = vsub.f32 %v5109, %v5119
    %v5122 = vsub.f32 %v5110, %v5120
    %v5123 = vmul.f32 %v5121, %v5121
    %v5124 = vmul.f32 %v5122, %v5122
    %v5125 = vsel %vm204, %v5123, 0.0
    %5126 = vadd.xlane.f32.xlu0 %v5125
    %v5127 = vpop.xlane.xlu0 %5126
    %v5128 = vsel %vm204, %v5124, 0.0
    %5129 = vadd.xlane.f32.xlu0 %v5128
    %v5130 = vpop.xlane.xlu0 %5129
    %v5131 = vmul.f32 %v5127, %v2591
    %v5132 = vmul.f32 %v5130, %v2591
    %v5133 = vadd.f32 %v5131, 1e-05
    %v5134 = vadd.f32 %v5132, 1e-05
    %v5135 = vrsqrt.pop %v5133
    %v5136 = vrsqrt.pop %v5134
    %v5137 = vmul.f32 %v5121, %v5135
    %v5138 = vmul.f32 %v5122, %v5136
    %v5139 = vlaneseq
    %v5140 = vshrl.u32 %v5139, 7
    %v5141 = vsub.s32 0, %v5140
    %v5142 = vrot.slane %v5111, %v5141
    %v5143 = vmul.f32 %v5137, %v5142
    %v5144 = vmul.f32 %v5138, %v5142
    %v5145 = vlaneseq
    %v5146 = vshrl.u32 %v5145, 7
    %v5147 = vsub.s32 0, %v5146
    %v5148 = vrot.slane %v5112, %v5147
    %v5149 = vadd.f32 %v5143, %v5148
    %v5150 = vadd.f32 %v5144, %v5148
    %v5151 = vld [vmem:[#allocation14] sm:$0xff]
    %v5152 = vld [vmem:[#allocation14 + $0x8] sm:$0xff]
    %v5153 = vld [vmem:[#allocation14 + $0x10] sm:$0xff]
    %v5154 = vld [vmem:[#allocation14 + $0x18] sm:$0xff]
    %v5155 = vld [vmem:[#allocation14 + $0x20] sm:$0xff]
    %v5156 = vld [vmem:[#allocation14 + $0x28] sm:$0xff]
    %v5157 = vld [vmem:[#allocation14 + $0x30] sm:$0xff]
    %v5158 = vld [vmem:[#allocation14 + $0x38] sm:$0xff]
    %v5159 = vld [vmem:[%s15] sm:$0x1]
    %v5161 = vlaneseq
    %v5162 = vshrl.u32 %v5161, 7
    %v5163 = vsub.s32 0, %v5162
    %v5164 = vrot.slane %v5159, %v5163
    %v5167 = vsel %vm204, %v5149, 0
    %v5170 = vsel %vm204, %v5150, 0
    %5172 = vmatprep.subr.mxu0 0.0
    %5173 = vmatpush1.msra.mxu0 %v5151
    %5174 = vmatprep.subr.mxu0 0.0
    %5175 = vmatpush1.msra.mxu0 %v5152
    %5176 = vmatprep.subr.mxu0 0.0
    %5177 = vmatpush1.msra.mxu0 %v5153
    %5178 = vmatprep.subr.mxu0 0.0
    %5179 = vmatpush1.msra.mxu0 %v5154
    %5180 = vmatprep.subr.mxu0 0.0
    %5181 = vmatpush1.msra.mxu0 %v5155
    %5182 = vmatprep.subr.mxu0 0.0
    %5183 = vmatpush1.msra.mxu0 %v5156
    %5184 = vmatprep.subr.mxu0 0.0
    %5185 = vmatpush1.msra.mxu0 %v5157
    %5186 = vmatprep.subr.mxu0 0.0
    %5187 = vmatpush1.msra.mxu0 %v5158
    %5188 = vmatprep.subr.mxu0 0.0
    %5189 = vmatpush1.msra.mxu0 0.0
    %5190 = vmatprep.subr.mxu0 0.0
    %5191 = vmatpush1.msra.mxu0 0.0
    %5192 = vmatprep.subr.mxu0 0.0
    %5193 = vmatpush1.msra.mxu0 0.0
    %5194 = vmatprep.subr.mxu0 0.0
    %5195 = vmatpush1.msra.mxu0 0.0
    %5196 = vmatprep.subr.mxu0 0.0
    %5197 = vmatpush1.msra.mxu0 0.0
    %5198 = vmatprep.subr.mxu0 0.0
    %5199 = vmatpush1.msra.mxu0 0.0
    %5200 = vmatprep.subr.mxu0 0.0
    %5201 = vmatpush1.msra.mxu0 0.0
    %5202 = vmatprep.subr.mxu0 0.0
    %5203 = vmatpush1.msra.mxu0 0.0
    %5204 = vmatprep.subr.mxu0 0.0
    %5205 = vmatpush1.msra.mxu0 0.0
    %5206 = vmatprep.subr.mxu0 0.0
    %5207 = vmatpush1.msra.mxu0 0.0
    %5208 = vmatprep.subr.mxu0 0.0
    %5209 = vmatpush1.msra.mxu0 0.0
    %5210 = vmatprep.subr.mxu0 0.0
    %5211 = vmatpush1.msra.mxu0 0.0
    %5212 = vmatprep.subr.mxu0 0.0
    %5213 = vmatpush1.msra.mxu0 0.0
    %5214 = vmatprep.subr.mxu0 0.0
    %5215 = vmatpush1.msra.mxu0 0.0
    %5216 = vmatprep.subr.mxu0 0.0
    %5217 = vmatpush1.msra.mxu0 0.0
    %5218 = vmatprep.subr.mxu0 0.0
    %5219 = vmatpush1.msra.mxu0 0.0
    %5220 = vmatprep.subr.mxu0 0.0
    %5221 = vmatpush1.msra.mxu0 0.0
    %5222 = vmatprep.subr.mxu0 0.0
    %5223 = vmatpush1.msra.mxu0 0.0
    %5224 = vmatprep.subr.mxu0 0.0
    %5225 = vmatpush1.msra.mxu0 0.0
    %5226 = vmatprep.subr.mxu0 0.0
    %5227 = vmatpush1.msra.mxu0 0.0
    %5228 = vmatprep.subr.mxu0 0.0
    %5229 = vmatpush1.msra.mxu0 0.0
    %5230 = vmatprep.subr.mxu0 0.0
    %5231 = vmatpush1.msra.mxu0 0.0
    %5232 = vmatprep.subr.mxu0 0.0
    %5233 = vmatpush1.msra.mxu0 0.0
    %5234 = vmatprep.subr.mxu0 0.0
    %5235 = vmatpush1.msra.mxu0 0.0
    %5236 = vmatprep.mubr.f32.mxu0 0.0
    %5237 = vmatmul.mubr.f32.gmra.mrb[0].mxu0 %v5167
    %v5238 = vpop.f32.mrb[0].mxu0
    %v5239 = vadd.f32 %v5164, %v5238
    %v5240 = vpop.f32.mrb[0].mxu0
    %5241 = vmatprep.mubr.f32.mxu0 0.0
    %5242 = vmatmul.mubr.f32.gmra.mrb[0].mxu0 %v5170
    %v5243 = vpop.f32.mrb[0].mxu0
    %v5244 = vadd.f32 %v5164, %v5243
    %v5245 = vpop.f32.mrb[0].mxu0
    %5246 = vdwg.mxu0
    %v5247 = vmax.f32 %v5239, 0.0
    %v5248 = vmax.f32 %v5244, 0.0
    %v5249 = vld [vmem:[%s16] sm:$0xff]
    %v5250 = vld [vmem:[%s16 + $0x8] sm:$0xff]
    %v5251 = vld [vmem:[%s16 + $0x10] sm:$0xff]
    %v5252 = vld [vmem:[%s16 + $0x18] sm:$0xff]
    %v5253 = vld [vmem:[%s16 + $0x20] sm:$0xff]
    %v5254 = vld [vmem:[%s16 + $0x28] sm:$0xff]
    %v5255 = vld [vmem:[%s16 + $0x30] sm:$0xff]
    %v5256 = vld [vmem:[%s16 + $0x38] sm:$0xff]
    %v5257 = vld [vmem:[%s16 + $0x40] sm:$0xff]
    %v5258 = vld [vmem:[%s16 + $0x48] sm:$0xff]
    %v5259 = vld [vmem:[%s16 + $0x50] sm:$0xff]
    %v5260 = vld [vmem:[%s16 + $0x58] sm:$0xff]
    %v5261 = vld [vmem:[%s16 + $0x60] sm:$0xff]
    %v5262 = vld [vmem:[%s16 + $0x68] sm:$0xff]
    %v5263 = vld [vmem:[%s16 + $0x70] sm:$0xff]
    %v5264 = vld [vmem:[%s16 + $0x78] sm:$0xff]
    %v5265 = vld [vmem:[%s17] sm:$0x1]
    %v5267 = vlaneseq
    %v5268 = vshrl.u32 %v5267, 7
    %v5269 = vsub.s32 0, %v5268
    %v5270 = vrot.slane %v5265, %v5269
    %5272 = vmatprep.subr.mxu0 0.0
    %5273 = vmatpush1.msra.mxu0 %v5249
    %5274 = vmatprep.subr.mxu0 0.0
    %5275 = vmatpush1.msra.mxu0 %v5250
    %5276 = vmatprep.subr.mxu0 0.0
    %5277 = vmatpush1.msra.mxu0 %v5251
    %5278 = vmatprep.subr.mxu0 0.0
    %5279 = vmatpush1.msra.mxu0 %v5252
    %5280 = vmatprep.subr.mxu0 0.0
    %5281 = vmatpush1.msra.mxu0 %v5253
    %5282 = vmatprep.subr.mxu0 0.0
    %5283 = vmatpush1.msra.mxu0 %v5254
    %5284 = vmatprep.subr.mxu0 0.0
    %5285 = vmatpush1.msra.mxu0 %v5255
    %5286 = vmatprep.subr.mxu0 0.0
    %5287 = vmatpush1.msra.mxu0 %v5256
    %5288 = vmatprep.subr.mxu0 0.0
    %5289 = vmatpush1.msra.mxu0 %v5257
    %5290 = vmatprep.subr.mxu0 0.0
    %5291 = vmatpush1.msra.mxu0 %v5258
    %5292 = vmatprep.subr.mxu0 0.0
    %5293 = vmatpush1.msra.mxu0 %v5259
    %5294 = vmatprep.subr.mxu0 0.0
    %5295 = vmatpush1.msra.mxu0 %v5260
    %5296 = vmatprep.subr.mxu0 0.0
    %5297 = vmatpush1.msra.mxu0 %v5261
    %5298 = vmatprep.subr.mxu0 0.0
    %5299 = vmatpush1.msra.mxu0 %v5262
    %5300 = vmatprep.subr.mxu0 0.0
    %5301 = vmatpush1.msra.mxu0 %v5263
    %5302 = vmatprep.subr.mxu0 0.0
    %5303 = vmatpush1.msra.mxu0 %v5264
    %5304 = vmatprep.subr.mxu0 0.0
    %5305 = vmatpush1.msra.mxu0 0.0
    %5306 = vmatprep.subr.mxu0 0.0
    %5307 = vmatpush1.msra.mxu0 0.0
    %5308 = vmatprep.subr.mxu0 0.0
    %5309 = vmatpush1.msra.mxu0 0.0
    %5310 = vmatprep.subr.mxu0 0.0
    %5311 = vmatpush1.msra.mxu0 0.0
    %5312 = vmatprep.subr.mxu0 0.0
    %5313 = vmatpush1.msra.mxu0 0.0
    %5314 = vmatprep.subr.mxu0 0.0
    %5315 = vmatpush1.msra.mxu0 0.0
    %5316 = vmatprep.subr.mxu0 0.0
    %5317 = vmatpush1.msra.mxu0 0.0
    %5318 = vmatprep.subr.mxu0 0.0
    %5319 = vmatpush1.msra.mxu0 0.0
    %5320 = vmatprep.subr.mxu0 0.0
    %5321 = vmatpush1.msra.mxu0 0.0
    %5322 = vmatprep.subr.mxu0 0.0
    %5323 = vmatpush1.msra.mxu0 0.0
    %5324 = vmatprep.subr.mxu0 0.0
    %5325 = vmatpush1.msra.mxu0 0.0
    %5326 = vmatprep.subr.mxu0 0.0
    %5327 = vmatpush1.msra.mxu0 0.0
    %5328 = vmatprep.subr.mxu0 0.0
    %5329 = vmatpush1.msra.mxu0 0.0
    %5330 = vmatprep.subr.mxu0 0.0
    %5331 = vmatpush1.msra.mxu0 0.0
    %5332 = vmatprep.subr.mxu0 0.0
    %5333 = vmatpush1.msra.mxu0 0.0
    %5334 = vmatprep.subr.mxu0 0.0
    %5335 = vmatpush1.msra.mxu0 0.0
    %5336 = vmatprep.mubr.f32.mxu0 0.0
    %5337 = vmatmul.mubr.f32.gmra.mrb[0].mxu0 %v5247
    %v5338 = vpop.f32.mrb[0].mxu0
    %v5339 = vadd.f32 %v5270, %v5338
    %v5340 = vpop.f32.mrb[0].mxu0
    %5341 = vmatprep.mubr.f32.mxu0 0.0
    %5342 = vmatmul.mubr.f32.gmra.mrb[0].mxu0 %v5248
    %v5343 = vpop.f32.mrb[0].mxu0
    %v5344 = vadd.f32 %v5270, %v5343
    %v5345 = vpop.f32.mrb[0].mxu0
    %5346 = vdwg.mxu0
    %v5347 = vadd.f32 %v5149, %v5339
    %v5348 = vadd.f32 %v5150, %v5344
    %v5349 = vld [vmem:[%s18 + $0x4] sm:$0x1]
    %v5350 = vld [vmem:[%s18 + $0x5] sm:$0x1]
    %v5351 = vsel %vm204, %v5347, 0.0
    %5352 = vadd.xlane.f32.xlu0 %v5351
    %v5353 = vpop.xlane.xlu0 %5352
    %v5354 = vsel %vm204, %v5348, 0.0
    %5355 = vadd.xlane.f32.xlu0 %v5354
    %v5356 = vpop.xlane.xlu0 %5355
    %v5357 = vmul.f32 %v5353, %v2591
    %v5358 = vmul.f32 %v5356, %v2591
    %v5359 = vsub.f32 %v5347, %v5357
    %v5360 = vsub.f32 %v5348, %v5358
    %v5361 = vmul.f32 %v5359, %v5359
    %v5362 = vmul.f32 %v5360, %v5360
    %v5363 = vsel %vm204, %v5361, 0.0
    %5364 = vadd.xlane.f32.xlu0 %v5363
    %v5365 = vpop.xlane.xlu0 %5364
    %v5366 = vsel %vm204, %v5362, 0.0
    %5367 = vadd.xlane.f32.xlu0 %v5366
    %v5368 = vpop.xlane.xlu0 %5367
    %v5369 = vmul.f32 %v5365, %v2591
    %v5370 = vmul.f32 %v5368, %v2591
    %v5371 = vadd.f32 %v5369, 1e-05
    %v5372 = vadd.f32 %v5370, 1e-05
    %v5373 = vrsqrt.pop %v5371
    %v5374 = vrsqrt.pop %v5372
    %v5375 = vmul.f32 %v5359, %v5373
    %v5376 = vmul.f32 %v5360, %v5374
    %v5377 = vlaneseq
    %v5378 = vshrl.u32 %v5377, 7
    %v5379 = vsub.s32 0, %v5378
    %v5380 = vrot.slane %v5349, %v5379
    %v5381 = vmul.f32 %v5375, %v5380
    %v5382 = vmul.f32 %v5376, %v5380
    %v5383 = vlaneseq
    %v5384 = vshrl.u32 %v5383, 7
    %v5385 = vsub.s32 0, %v5384
    %v5386 = vrot.slane %v5350, %v5385
    %v5387 = vadd.f32 %v5381, %v5386
    %v5388 = vadd.f32 %v5382, %v5386
    %5390 = vrot.lane.b32.xlu0 %v5388, 64
    %v5391 = vpop.permute.xlu0 %5390
    %v5393 = vsel %vm204, %v5387, %v5391
    %5394 = vst [vmem:[#allocation16] sm:$0xff] %v5393
    // Predicated region
    $region110: #{tpu_custom_call.1} parent=1 // pred_check
      _
    $region111: #{tpu_custom_call.1} parent=1 // pred_check_branch
      %5396 = sbr.rel (0) target = $region113
    $region112: #{tpu_custom_call.1} parent=1 // pred_region
      %s5398 = ssub.s32 128, 128
      %5399 = vsyncadd [#allocation4], %s5398
      %s5401 = sshll.u32 [#allocation16], 4
      %s5402 = int_to_ptr.vmem [resolvable:$true] %s5401
      %5404 = dma.vmem_to_hbm [thread:$0]  %s5402, 128, %s19, [#allocation4]
    $region113: #{tpu_custom_call.1} parent=1 // pred_fallthru
      _
    // Predicated region
    $region114: #{tpu_custom_call.1} parent=1 // pred_check
      _
    $region115: #{tpu_custom_call.1} parent=1 // pred_check_branch
      %5406 = sbr.rel (0) target = $region117
    $region116: #{tpu_custom_call.1} parent=1 // pred_region
      %5407 = dma.done [#allocation4], 128
    $region117: #{tpu_custom_call.1} parent=1 // pred_fallthru
      _
    %5408 = vsyncpa [#allocation3], 1
    %5409 = vsyncpa [#allocation6], 1
    %5410 = vsyncpa [#allocation9], 1
    %5411 = vsyncpa [#allocation12], 1
    %5412 = vsyncpa [#allocation15], 1
    %5413 = vsyncpa [#allocation4], 1

</llo_original>
